<compile_context>
chip_gen: v7x
topology: tpu7x:2x2x1
jax: 0.10.0
libtpu: 0.0.40
codegen_flags: <defaults>
</compile_context>

<pallas_src>
import functools

import jax
import jax.numpy as jnp
import numpy as np
from jax import lax
from jax.experimental import pallas as pl
from jax.experimental.pallas import tpu as pltpu

BN_EPS = 1e-5


def _batchnorm(x, gamma, beta):
    # training-mode BatchNorm1d: normalize over the batch (row) axis, biased var.
    mu = jnp.mean(x, axis=0, keepdims=True)
    var = jnp.mean((x - mu) ** 2, axis=0, keepdims=True)
    return (x - mu) * lax.rsqrt(var + BN_EPS) * gamma + beta


def _cgcnn_kernel(
    # inputs (VMEM)
    x_ref, edge_ref, srcc_ref, dstc_ref, dstr_ref,
    wsrc_ref, bsrc_ref, wdst_ref, bdst_ref, wedge_ref, bedge_ref,
    gm_ref, bm_ref, gn_ref, bn_ref,
    # output
    out_ref,
    # scratch
    hsrc_ref, hdst_ref, ssum_ref, ssq_ref, hacc_ref,
    *, n_edges, n_nodes, n_feat, tile_e,
):
    p = pl.program_id(0)          # 0 = statistics pass, 1 = apply/scatter pass
    t = pl.program_id(1)          # edge tile index
    nt = pl.num_programs(1)
    n_pad = hsrc_ref.shape[0]
    base = t * tile_e

    # ---- one-time init: node linears + zero accumulators ---------------------
    @pl.when((p == 0) & (t == 0))
    def _init():
        hsrc_ref[...] = (
            jnp.dot(x_ref[...], wsrc_ref[...], preferred_element_type=jnp.float32)
            + bsrc_ref[...]
        )
        hdst_ref[...] = (
            jnp.dot(x_ref[...], wdst_ref[...], preferred_element_type=jnp.float32)
            + bdst_ref[...]
        )
        ssum_ref[...] = jnp.zeros_like(ssum_ref)
        ssq_ref[...] = jnp.zeros_like(ssq_ref)
        hacc_ref[...] = jnp.zeros_like(hacc_ref)

    # ---- per-tile message pre-activation (vectorized one-hot gather) --------
    #   m_e = h_src[src[e]] + h_dst[dst[e]] + W_e edge_e + b_e
    node_iota = lax.broadcasted_iota(jnp.int32, (tile_e, n_pad), 1)
    oh_src = (node_iota == srcc_ref[...]).astype(jnp.float32)    # [TE, Np]
    oh_dst = (node_iota == dstc_ref[...]).astype(jnp.float32)    # [TE, Np]
    m = (
        jnp.dot(edge_ref[...], wedge_ref[...], preferred_element_type=jnp.float32)
        + bedge_ref[...]
        + jnp.dot(oh_src, hsrc_ref[...], preferred_element_type=jnp.float32)
        + jnp.dot(oh_dst, hdst_ref[...], preferred_element_type=jnp.float32)
    )                                                            # [TE, 2F]

    # mask for tail padding of the edge axis (padded edges also have idx = -1,
    # so their one-hot rows are all-zero -> no gather/scatter contribution)
    edge_ids = base + lax.broadcasted_iota(jnp.int32, (tile_e, 1), 0)
    valid = edge_ids < n_edges

    # ---- pass 0: accumulate bn_message statistics over all (valid) edges ----
    @pl.when(p == 0)
    def _stats():
        mm = jnp.where(valid, m, 0.0)
        ssum_ref[...] += jnp.sum(mm, axis=0, keepdims=True)
        ssq_ref[...] += jnp.sum(mm * mm, axis=0, keepdims=True)

    # ---- pass 1 (first tile): fold stats into scale/shift (in place) --------
    @pl.when((p == 1) & (t == 0))
    def _fold():
        inv_e = 1.0 / float(n_edges)
        mean = ssum_ref[...] * inv_e
        var = jnp.maximum(ssq_ref[...] * inv_e - mean * mean, 0.0)
        scale = gm_ref[...] * lax.rsqrt(var + BN_EPS)
        shift = bm_ref[...] - mean * scale
        ssum_ref[...] = scale      # reuse stat scratch as scale
        ssq_ref[...] = shift       # reuse stat scratch as shift

    # ---- pass 1: BN + gating + one-hot MXU scatter into node accumulator ----
    @pl.when(p == 1)
    def _apply():
        mn = m * ssum_ref[...] + ssq_ref[...]                    # [TE, 2F]
        gate = jax.nn.sigmoid(mn[:, :n_feat])
        filt = jax.nn.softplus(mn[:, n_feat:])
        msg = jnp.where(valid, gate * filt, 0.0)                 # [TE, F]
        oh_nd = (
            lax.broadcasted_iota(jnp.int32, (n_pad, tile_e), 0) == dstr_ref[...]
        ).astype(jnp.float32)                                    # [Np, TE]
        hacc_ref[...] += jnp.dot(oh_nd, msg, preferred_element_type=jnp.float32)

    # ---- finalize: bn_node + residual + softplus -----------------------------
    @pl.when((p == 1) & (t == nt - 1))
    def _final():
        h = hacc_ref[...]                                        # [Np, F]
        nvalid = lax.broadcasted_iota(jnp.int32, (n_pad, 1), 0) < n_nodes
        inv_n = 1.0 / float(n_nodes)
        hm = jnp.where(nvalid, h, 0.0)
        mu = jnp.sum(hm, axis=0, keepdims=True) * inv_n
        var = jnp.sum(jnp.where(nvalid, (h - mu) ** 2, 0.0),
                      axis=0, keepdims=True) * inv_n
        hn = (h - mu) * lax.rsqrt(var + BN_EPS) * gn_ref[...] + bn_ref[...]
        out_ref[...] = jax.nn.softplus(x_ref[...] + hn)


def cgcnn_conv(node_feats, edge_feats, src, dst, params, *, tile_e=256):
    n, f = node_feats.shape
    e, fe = edge_feats.shape
    f2 = 2 * f

    # --- padding / alignment --------------------------------------------------
    # edge tiles must be lane-aligned: the scatter one-hot index block is
    # [1, tile_e] (edge axis on lanes), so keep tile_e a multiple of 128.
    tile_e = max(128, (int(tile_e) // 128) * 128)
    e_round = 128 * pl.cdiv(e, 128)
    tile_e = min(tile_e, e_round)
    e_pad = tile_e * pl.cdiv(e, tile_e)

    n_pad = 8 * pl.cdiv(n, 8)               # sublane-align the node axis
    fe_pad = 128 * pl.cdiv(fe, 128)          # lane-dense edge-feature blocks

    x = node_feats.astype(jnp.float32)
    if n_pad != n:
        x = jnp.pad(x, ((0, n_pad - n), (0, 0)))
    ef = jnp.pad(edge_feats.astype(jnp.float32),
                 ((0, e_pad - e), (0, fe_pad - fe)))

    src = src.astype(jnp.int32)
    dst = dst.astype(jnp.int32)
    if e_pad != e:
        # padded edges get index -1 -> all-zero one-hot rows (no gather/scatter)
        src = jnp.pad(src, (0, e_pad - e), constant_values=-1)
        dst = jnp.pad(dst, (0, e_pad - e), constant_values=-1)
    src_col = src.reshape(e_pad, 1)
    dst_col = dst.reshape(e_pad, 1)
    dst_row = dst.reshape(1, e_pad)

    w_src = params["w_src"]
    b_src = params["b_src"].reshape(1, f2)
    w_dst = params["w_dst"]
    b_dst = params["b_dst"].reshape(1, f2)
    w_edge = jnp.pad(params["w_edge"], ((0, fe_pad - fe), (0, 0)))
    b_edge = params["b_edge"].reshape(1, f2)
    gm = params["gamma_m"].reshape(1, f2)
    bm = params["beta_m"].reshape(1, f2)
    gn = params["gamma_n"].reshape(1, f)
    bn = params["beta_n"].reshape(1, f)

    n_tiles = e_pad // tile_e
    grid = (2, n_tiles)   # (pass, edge tile); both carry state -> "arbitrary"

    const = lambda p_, t_: (0, 0)
    etile = lambda p_, t_: (t_, 0)
    etile_r = lambda p_, t_: (0, t_)

    grid_spec = pltpu.PrefetchScalarGridSpec(
        num_scalar_prefetch=0,
        grid=grid,
        in_specs=[
            pl.BlockSpec((n_pad, f), const),           # x            (resident)
            pl.BlockSpec((tile_e, fe_pad), etile),     # edge feats   (tiled)
            pl.BlockSpec((tile_e, 1), etile),          # src  (column)
            pl.BlockSpec((tile_e, 1), etile),          # dst  (column)
            pl.BlockSpec((1, tile_e), etile_r),        # dst  (row, for scatter)
            pl.BlockSpec((f, f2), const),              # w_src
            pl.BlockSpec((1, f2), const),              # b_src
            pl.BlockSpec((f, f2), const),              # w_dst
            pl.BlockSpec((1, f2), const),              # b_dst
            pl.BlockSpec((fe_pad, f2), const),         # w_edge
            pl.BlockSpec((1, f2), const),              # b_edge
            pl.BlockSpec((1, f2), const),              # gamma_m
            pl.BlockSpec((1, f2), const),              # beta_m
            pl.BlockSpec((1, f), const),               # gamma_n
            pl.BlockSpec((1, f), const),               # beta_n
        ],
        out_specs=pl.BlockSpec((n_pad, f), const),
        scratch_shapes=[
            pltpu.VMEM((n_pad, f2), jnp.float32),      # h_src
            pltpu.VMEM((n_pad, f2), jnp.float32),      # h_dst
            pltpu.VMEM((1, f2), jnp.float32),          # BN sum  -> later scale
            pltpu.VMEM((1, f2), jnp.float32),          # BN sumsq-> later shift
            pltpu.VMEM((n_pad, f), jnp.float32),       # node scatter accumulator
        ],
    )

    # --- VMEM accounting (floats) ----------------------------------------------
    resident = (
        2 * n_pad * f                       # x, out
        + 2 * f * f2 + fe_pad * f2          # weights
        + 6 * f2 + 2 * f                    # biases / BN params
        + 2 * n_pad * f2 + n_pad * f + 2 * f2   # scratch
    )
    tiled = 2 * (tile_e * fe_pad + 3 * tile_e)          # double-buffered edge blocks
    temps = tile_e * (2 * n_pad + 3 * f2)                # in-kernel one-hots / m
    vmem_bytes = int(min(max(2 * 4 * (resident + tiled + temps), 32 << 20), 64 << 20))

    flops = int(
        2 * n_pad * f * f2 * 2                           # node linears (once)
        + 2 * (2 * e_pad * fe_pad * f2)                  # edge linear (both passes)
        + 2 * (2 * e_pad * n_pad * f2 * 2)               # one-hot gathers (both passes)
        + 2 * e_pad * n_pad * f                          # one-hot scatter (pass 1)
        + e_pad * 10 * f + n_pad * 10 * f                # elementwise epilogues
    )
    transcendentals = int(e_pad * 3 * f + n_pad * f)
    bytes_accessed = int(4 * (2 * n_pad * f + e_pad * fe_pad + 3 * e_pad
                              + 2 * f * f2 + fe_pad * f2 + 8 * f))

    kernel = functools.partial(
        _cgcnn_kernel, n_edges=e, n_nodes=n, n_feat=f, tile_e=tile_e
    )

    out = pl.pallas_call(
        kernel,
        grid_spec=grid_spec,
        out_shape=jax.ShapeDtypeStruct((n_pad, f), jnp.float32),
        compiler_params=pltpu.CompilerParams(
            dimension_semantics=("arbitrary", "arbitrary"),
            vmem_limit_bytes=vmem_bytes,
        ),
        cost_estimate=pl.CostEstimate(
            flops=flops, transcendentals=transcendentals, bytes_accessed=bytes_accessed
        ),
    )(x, ef, src_col, dst_col, dst_row,
      w_src, b_src, w_dst, b_dst, w_edge, b_edge, gm, bm, gn, bn)

    return out[:n] if n_pad != n else out


def cgcnn_conv_ref(node_feats, edge_feats, src, dst, params):
    """Pure-JAX reference mirroring the PyTorch forward."""
    h_src = node_feats @ params["w_src"] + params["b_src"]
    h_dst = node_feats @ params["w_dst"] + params["b_dst"]
    h_edge = edge_feats @ params["w_edge"] + params["b_edge"]
    m = h_src[src] + h_dst[dst] + h_edge
    m = _batchnorm(m, params["gamma_m"], params["beta_m"])
    f = node_feats.shape[1]
    msg = jax.nn.sigmoid(m[:, :f]) * jax.nn.softplus(m[:, f:])
    h = jnp.zeros_like(node_feats).at[dst].add(msg)
    h = _batchnorm(h, params["gamma_n"], params["beta_n"])
    return jax.nn.softplus(node_feats + h)


def make_params(key, node_features, edge_features):
    ks = jax.random.split(key, 6)
    f2 = 2 * node_features

    def lin(kw, kb, fan_in, fan_out):
        bound = 1.0 / np.sqrt(fan_in)
        w = jax.random.uniform(kw, (fan_in, fan_out), jnp.float32, -bound, bound)
        b = jax.random.uniform(kb, (fan_out,), jnp.float32, -bound, bound)
        return w, b

    w_src, b_src = lin(ks[0], ks[1], node_features, f2)
    w_dst, b_dst = lin(ks[2], ks[3], node_features, f2)
    w_edge, b_edge = lin(ks[4], ks[5], edge_features, f2)
    return dict(
        w_src=w_src, b_src=b_src,
        w_dst=w_dst, b_dst=b_dst,
        w_edge=w_edge, b_edge=b_edge,
        # BatchNorm affine params at PyTorch defaults (gamma=1, beta=0).
        gamma_m=jnp.ones((f2,), jnp.float32), beta_m=jnp.zeros((f2,), jnp.float32),
        gamma_n=jnp.ones((node_features,), jnp.float32),
        beta_n=jnp.zeros((node_features,), jnp.float32),
    )


if __name__ == "__main__":
    node_features, edge_features = 64, 32
    n_nodes, n_edges = 8, 20     # 20 edges -> exercises edge-tile padding + masking

    key = jax.random.PRNGKey(0)
    k_node, k_edge, k_src, k_dst, k_param = jax.random.split(key, 5)

    node_feats = jax.random.normal(k_node, (n_nodes, node_features), jnp.float32)
    edge_feats = jax.random.normal(k_edge, (n_edges, edge_features), jnp.float32)
    src = jax.random.randint(k_src, (n_edges,), 0, n_nodes)
    dst = jax.random.randint(k_dst, (n_edges,), 0, n_nodes)

    params = make_params(k_param, node_features, edge_features)

    out = jax.block_until_ready(
        cgcnn_conv(node_feats, edge_feats, src, dst, params, tile_e=256)
    )
    ref = jax.block_until_ready(cgcnn_conv_ref(node_feats, edge_feats, src, dst, params))
    np.testing.assert_allclose(np.asarray(out), np.asarray(ref), rtol=2e-3, atol=2e-3)

    print("KERNEL_OK")
</pallas_src>

<mosaic_0001>
module attributes {stable_mosaic.version = 11 : i64} {
  func.func @_cgcnn_kernel(%arg0: i32, %arg1: i32, %arg2: memref<8x64xf32, #tpu.memory_space<vmem>>, %arg3: memref<128x128xf32, #tpu.memory_space<vmem>>, %arg4: memref<128x1xi32, #tpu.memory_space<vmem>>, %arg5: memref<128x1xi32, #tpu.memory_space<vmem>>, %arg6: memref<1x128xi32, #tpu.memory_space<vmem>>, %arg7: memref<64x128xf32, #tpu.memory_space<vmem>>, %arg8: memref<1x128xf32, #tpu.memory_space<vmem>>, %arg9: memref<64x128xf32, #tpu.memory_space<vmem>>, %arg10: memref<1x128xf32, #tpu.memory_space<vmem>>, %arg11: memref<128x128xf32, #tpu.memory_space<vmem>>, %arg12: memref<1x128xf32, #tpu.memory_space<vmem>>, %arg13: memref<1x128xf32, #tpu.memory_space<vmem>>, %arg14: memref<1x128xf32, #tpu.memory_space<vmem>>, %arg15: memref<1x64xf32, #tpu.memory_space<vmem>>, %arg16: memref<1x64xf32, #tpu.memory_space<vmem>>, %arg17: memref<8x64xf32, #tpu.memory_space<vmem>>, %arg18: memref<8x128xf32, #tpu.memory_space<vmem>>, %arg19: memref<8x128xf32, #tpu.memory_space<vmem>>, %arg20: memref<1x128xf32, #tpu.memory_space<vmem>>, %arg21: memref<1x128xf32, #tpu.memory_space<vmem>>, %arg22: memref<8x64xf32, #tpu.memory_space<vmem>>) attributes {dimension_semantics = [#tpu.dimension_semantics<arbitrary>, #tpu.dimension_semantics<arbitrary>], iteration_bounds = array<i64: 2, 1>, scalar_prefetch = 0 : i64, scratch_operands = 5 : i64, tpu.core_type = #tpu.core_type<tc>, window_params = [{pipeline_mode = #tpu.pipeline_mode<synchronous>, transform_indices = @transform_0, window_bounds = array<i64: 8, 64>}, {transform_indices = @transform_1, window_bounds = array<i64: 128, 128>}, {transform_indices = @transform_2, window_bounds = array<i64: 128, 1>}, {transform_indices = @transform_3, window_bounds = array<i64: 128, 1>}, {transform_indices = @transform_4, window_bounds = array<i64: 1, 128>}, {pipeline_mode = #tpu.pipeline_mode<synchronous>, transform_indices = @transform_5, window_bounds = array<i64: 64, 128>}, {pipeline_mode = #tpu.pipeline_mode<synchronous>, transform_indices = @transform_6, window_bounds = array<i64: 1, 128>}, {pipeline_mode = #tpu.pipeline_mode<synchronous>, transform_indices = @transform_7, window_bounds = array<i64: 64, 128>}, {pipeline_mode = #tpu.pipeline_mode<synchronous>, transform_indices = @transform_8, window_bounds = array<i64: 1, 128>}, {pipeline_mode = #tpu.pipeline_mode<synchronous>, transform_indices = @transform_9, window_bounds = array<i64: 128, 128>}, {pipeline_mode = #tpu.pipeline_mode<synchronous>, transform_indices = @transform_10, window_bounds = array<i64: 1, 128>}, {pipeline_mode = #tpu.pipeline_mode<synchronous>, transform_indices = @transform_11, window_bounds = array<i64: 1, 128>}, {pipeline_mode = #tpu.pipeline_mode<synchronous>, transform_indices = @transform_12, window_bounds = array<i64: 1, 128>}, {pipeline_mode = #tpu.pipeline_mode<synchronous>, transform_indices = @transform_13, window_bounds = array<i64: 1, 64>}, {pipeline_mode = #tpu.pipeline_mode<synchronous>, transform_indices = @transform_14, window_bounds = array<i64: 1, 64>}, {pipeline_mode = #tpu.pipeline_mode<synchronous>, transform_indices = @transform_15, window_bounds = array<i64: 8, 64>}]} {
    %c128_i32 = arith.constant 128 : i32
    %0 = arith.muli %arg1, %c128_i32 : i32
    %c0_i32 = arith.constant 0 : i32
    %1 = arith.cmpi eq, %arg0, %c0_i32 : i32
    %c0_i32_0 = arith.constant 0 : i32
    %2 = arith.cmpi eq, %arg1, %c0_i32_0 : i32
    %3 = arith.andi %1, %2 : i1
    %4 = arith.extui %3 : i1 to i32
    %c0_i32_1 = arith.constant 0 : i32
    %5 = arith.cmpi ne, %4, %c0_i32_1 : i32
    scf.if %5 {
      %c0_26 = arith.constant 0 : index
      %c0_27 = arith.constant 0 : index
      %50 = vector.load %arg2[%c0_26, %c0_27] : memref<8x64xf32, #tpu.memory_space<vmem>>, vector<8x64xf32>
      %c0_28 = arith.constant 0 : index
      %c0_29 = arith.constant 0 : index
      %51 = vector.load %arg7[%c0_28, %c0_29] : memref<64x128xf32, #tpu.memory_space<vmem>>, vector<64x128xf32>
      %cst_30 = arith.constant dense<0.000000e+00> : vector<8x128xf32>
      %52 = tpu.matmul %50, %51, %cst_30 {dimension_numbers = #tpu.dot_dimension_numbers<[1], [0], [0], [1], [0, 0, 1, 1], [], []>} : vector<8x64xf32>, vector<64x128xf32>, vector<8x128xf32> -> vector<8x128xf32>
      %c0_31 = arith.constant 0 : index
      %c0_32 = arith.constant 0 : index
      %53 = vector.load %arg8[%c0_31, %c0_32] : memref<1x128xf32, #tpu.memory_space<vmem>>, vector<1x128xf32>
      %54 = vector.broadcast %53 : vector<1x128xf32> to vector<8x128xf32>
      %55 = arith.addf %52, %54 : vector<8x128xf32>
      %c0_33 = arith.constant 0 : index
      %c0_34 = arith.constant 0 : index
      %56 = vector.load %arg18[%c0_33, %c0_34] : memref<8x128xf32, #tpu.memory_space<vmem>>, vector<8x128xf32>
      tpu.vector_store %arg18[%c0_33, %c0_34], %55 {strides = array<i32>} : memref<8x128xf32, #tpu.memory_space<vmem>>, vector<8x128xf32>,
      %c0_35 = arith.constant 0 : index
      %c0_36 = arith.constant 0 : index
      %57 = vector.load %arg2[%c0_35, %c0_36] : memref<8x64xf32, #tpu.memory_space<vmem>>, vector<8x64xf32>
      %c0_37 = arith.constant 0 : index
      %c0_38 = arith.constant 0 : index
      %58 = vector.load %arg9[%c0_37, %c0_38] : memref<64x128xf32, #tpu.memory_space<vmem>>, vector<64x128xf32>
      %cst_39 = arith.constant dense<0.000000e+00> : vector<8x128xf32>
      %59 = tpu.matmul %57, %58, %cst_39 {dimension_numbers = #tpu.dot_dimension_numbers<[1], [0], [0], [1], [0, 0, 1, 1], [], []>} : vector<8x64xf32>, vector<64x128xf32>, vector<8x128xf32> -> vector<8x128xf32>
      %c0_40 = arith.constant 0 : index
      %c0_41 = arith.constant 0 : index
      %60 = vector.load %arg10[%c0_40, %c0_41] : memref<1x128xf32, #tpu.memory_space<vmem>>, vector<1x128xf32>
      %61 = vector.broadcast %60 : vector<1x128xf32> to vector<8x128xf32>
      %62 = arith.addf %59, %61 : vector<8x128xf32>
      %c0_42 = arith.constant 0 : index
      %c0_43 = arith.constant 0 : index
      %63 = vector.load %arg19[%c0_42, %c0_43] : memref<8x128xf32, #tpu.memory_space<vmem>>, vector<8x128xf32>
      tpu.vector_store %arg19[%c0_42, %c0_43], %62 {strides = array<i32>} : memref<8x128xf32, #tpu.memory_space<vmem>>, vector<8x128xf32>,
      %cst_44 = arith.constant 0.000000e+00 : f32
      %64 = vector.broadcast %cst_44 : f32 to vector<1x128xf32>
      %c0_45 = arith.constant 0 : index
      %c0_46 = arith.constant 0 : index
      %65 = vector.load %arg20[%c0_45, %c0_46] : memref<1x128xf32, #tpu.memory_space<vmem>>, vector<1x128xf32>
      tpu.vector_store %arg20[%c0_45, %c0_46], %64 {strides = array<i32>} : memref<1x128xf32, #tpu.memory_space<vmem>>, vector<1x128xf32>,
      %cst_47 = arith.constant 0.000000e+00 : f32
      %66 = vector.broadcast %cst_47 : f32 to vector<1x128xf32>
      %c0_48 = arith.constant 0 : index
      %c0_49 = arith.constant 0 : index
      %67 = vector.load %arg21[%c0_48, %c0_49] : memref<1x128xf32, #tpu.memory_space<vmem>>, vector<1x128xf32>
      tpu.vector_store %arg21[%c0_48, %c0_49], %66 {strides = array<i32>} : memref<1x128xf32, #tpu.memory_space<vmem>>, vector<1x128xf32>,
      %cst_50 = arith.constant 0.000000e+00 : f32
      %68 = vector.broadcast %cst_50 : f32 to vector<8x64xf32>
      %c0_51 = arith.constant 0 : index
      %c0_52 = arith.constant 0 : index
      %69 = vector.load %arg22[%c0_51, %c0_52] : memref<8x64xf32, #tpu.memory_space<vmem>>, vector<8x64xf32>
      tpu.vector_store %arg22[%c0_51, %c0_52], %68 {strides = array<i32>} : memref<8x64xf32, #tpu.memory_space<vmem>>, vector<8x64xf32>,
    } else {
    }
    %6 = tpu.iota {dimensions = array<i32: 1>} : vector<128x8xi32>
    %c0 = arith.constant 0 : index
    %c0_2 = arith.constant 0 : index
    %7 = vector.load %arg4[%c0, %c0_2] : memref<128x1xi32, #tpu.memory_space<vmem>>, vector<128x1xi32>
    %8 = vector.broadcast %7 : vector<128x1xi32> to vector<128x8xi32>
    %9 = arith.cmpi eq, %6, %8 : vector<128x8xi32>
    %10 = arith.extui %9 : vector<128x8xi1> to vector<128x8xi32>
    %11 = arith.sitofp %10 : vector<128x8xi32> to vector<128x8xf32>
    %c0_3 = arith.constant 0 : index
    %c0_4 = arith.constant 0 : index
    %12 = vector.load %arg5[%c0_3, %c0_4] : memref<128x1xi32, #tpu.memory_space<vmem>>, vector<128x1xi32>
    %13 = vector.broadcast %12 : vector<128x1xi32> to vector<128x8xi32>
    %14 = arith.cmpi eq, %6, %13 : vector<128x8xi32>
    %15 = arith.extui %14 : vector<128x8xi1> to vector<128x8xi32>
    %16 = arith.sitofp %15 : vector<128x8xi32> to vector<128x8xf32>
    %c0_5 = arith.constant 0 : index
    %c0_6 = arith.constant 0 : index
    %17 = vector.load %arg3[%c0_5, %c0_6] : memref<128x128xf32, #tpu.memory_space<vmem>>, vector<128x128xf32>
    %c0_7 = arith.constant 0 : index
    %c0_8 = arith.constant 0 : index
    %18 = vector.load %arg11[%c0_7, %c0_8] : memref<128x128xf32, #tpu.memory_space<vmem>>, vector<128x128xf32>
    %cst = arith.constant dense<0.000000e+00> : vector<128x128xf32>
    %19 = tpu.matmul %17, %18, %cst {dimension_numbers = #tpu.dot_dimension_numbers<[1], [0], [0], [1], [0, 0, 1, 1], [], []>} : vector<128x128xf32>, vector<128x128xf32>, vector<128x128xf32> -> vector<128x128xf32>
    %c0_9 = arith.constant 0 : index
    %c0_10 = arith.constant 0 : index
    %20 = vector.load %arg12[%c0_9, %c0_10] : memref<1x128xf32, #tpu.memory_space<vmem>>, vector<1x128xf32>
    %21 = vector.broadcast %20 : vector<1x128xf32> to vector<128x128xf32>
    %22 = arith.addf %19, %21 : vector<128x128xf32>
    %c0_11 = arith.constant 0 : index
    %c0_12 = arith.constant 0 : index
    %23 = vector.load %arg18[%c0_11, %c0_12] : memref<8x128xf32, #tpu.memory_space<vmem>>, vector<8x128xf32>
    %cst_13 = arith.constant dense<0.000000e+00> : vector<128x128xf32>
    %24 = tpu.matmul %11, %23, %cst_13 {dimension_numbers = #tpu.dot_dimension_numbers<[1], [0], [0], [1], [0, 0, 1, 1], [], []>} : vector<128x8xf32>, vector<8x128xf32>, vector<128x128xf32> -> vector<128x128xf32>
    %25 = arith.addf %22, %24 : vector<128x128xf32>
    %c0_14 = arith.constant 0 : index
    %c0_15 = arith.constant 0 : index
    %26 = vector.load %arg19[%c0_14, %c0_15] : memref<8x128xf32, #tpu.memory_space<vmem>>, vector<8x128xf32>
    %cst_16 = arith.constant dense<0.000000e+00> : vector<128x128xf32>
    %27 = tpu.matmul %16, %26, %cst_16 {dimension_numbers = #tpu.dot_dimension_numbers<[1], [0], [0], [1], [0, 0, 1, 1], [], []>} : vector<128x8xf32>, vector<8x128xf32>, vector<128x128xf32> -> vector<128x128xf32>
    %28 = arith.addf %25, %27 : vector<128x128xf32>
    %29 = tpu.iota {dimensions = array<i32: 0>} : vector<128x1xi32>
    %30 = vector.broadcast %0 : i32 to vector<128x1xi32>
    %31 = arith.addi %30, %29 : vector<128x1xi32>
    %c20_i32 = arith.constant 20 : i32
    %32 = vector.broadcast %c20_i32 : i32 to vector<128x1xi32>
    %33 = arith.cmpi slt, %31, %32 : vector<128x1xi32>
    %c0_i32_17 = arith.constant 0 : i32
    %34 = arith.cmpi eq, %arg0, %c0_i32_17 : i32
    %35 = arith.extui %34 : i1 to i32
    %c0_i32_18 = arith.constant 0 : i32
    %36 = arith.cmpi ne, %35, %c0_i32_18 : i32
    scf.if %36 {
      %cst_26 = arith.constant 0.000000e+00 : f32
      %50 = vector.shape_cast %33 : vector<128x1xi1> to vector<128x1xi1>
      %51 = vector.broadcast %50 : vector<128x1xi1> to vector<128x128xi1>
      %52 = vector.broadcast %cst_26 : f32 to vector<128x128xf32>
      %53 = arith.select %51, %28, %52 : vector<128x128xi1>, vector<128x128xf32>
      %c0_27 = arith.constant 0 : index
      %c0_28 = arith.constant 0 : index
      %54 = vector.load %arg20[%c0_27, %c0_28] : memref<1x128xf32, #tpu.memory_space<vmem>>, vector<1x128xf32>
      %cst_29 = arith.constant dense<0.000000e+00> : vector<128xf32>
      %55 = vector.multi_reduction <add>, %53, %cst_29 [0] : vector<128x128xf32> to vector<128xf32>
      %56 = vector.shape_cast %55 : vector<128xf32> to vector<1x128xf32>
      %57 = arith.addf %54, %56 : vector<1x128xf32>
      %c0_30 = arith.constant 0 : index
      %c0_31 = arith.constant 0 : index
      %58 = vector.load %arg20[%c0_30, %c0_31] : memref<1x128xf32, #tpu.memory_space<vmem>>, vector<1x128xf32>
      tpu.vector_store %arg20[%c0_30, %c0_31], %57 {strides = array<i32>} : memref<1x128xf32, #tpu.memory_space<vmem>>, vector<1x128xf32>,
      %c0_32 = arith.constant 0 : index
      %c0_33 = arith.constant 0 : index
      %59 = vector.load %arg21[%c0_32, %c0_33] : memref<1x128xf32, #tpu.memory_space<vmem>>, vector<1x128xf32>
      %60 = arith.mulf %53, %53 : vector<128x128xf32>
      %cst_34 = arith.constant dense<0.000000e+00> : vector<128xf32>
      %61 = vector.multi_reduction <add>, %60, %cst_34 [0] : vector<128x128xf32> to vector<128xf32>
      %62 = vector.shape_cast %61 : vector<128xf32> to vector<1x128xf32>
      %63 = arith.addf %59, %62 : vector<1x128xf32>
      %c0_35 = arith.constant 0 : index
      %c0_36 = arith.constant 0 : index
      %64 = vector.load %arg21[%c0_35, %c0_36] : memref<1x128xf32, #tpu.memory_space<vmem>>, vector<1x128xf32>
      tpu.vector_store %arg21[%c0_35, %c0_36], %63 {strides = array<i32>} : memref<1x128xf32, #tpu.memory_space<vmem>>, vector<1x128xf32>,
    } else {
    }
    %c1_i32 = arith.constant 1 : i32
    %37 = arith.cmpi eq, %arg0, %c1_i32 : i32
    %c0_i32_19 = arith.constant 0 : i32
    %38 = arith.cmpi eq, %arg1, %c0_i32_19 : i32
    %39 = arith.andi %37, %38 : i1
    %40 = arith.extui %39 : i1 to i32
    %c0_i32_20 = arith.constant 0 : i32
    %41 = arith.cmpi ne, %40, %c0_i32_20 : i32
    scf.if %41 {
      %c0_26 = arith.constant 0 : index
      %c0_27 = arith.constant 0 : index
      %50 = vector.load %arg20[%c0_26, %c0_27] : memref<1x128xf32, #tpu.memory_space<vmem>>, vector<1x128xf32>
      %cst_28 = arith.constant 5.000000e-02 : f32
      %51 = vector.broadcast %cst_28 : f32 to vector<1x128xf32>
      %52 = arith.mulf %50, %51 : vector<1x128xf32>
      %c0_29 = arith.constant 0 : index
      %c0_30 = arith.constant 0 : index
      %53 = vector.load %arg21[%c0_29, %c0_30] : memref<1x128xf32, #tpu.memory_space<vmem>>, vector<1x128xf32>
      %cst_31 = arith.constant 5.000000e-02 : f32
      %54 = vector.broadcast %cst_31 : f32 to vector<1x128xf32>
      %55 = arith.mulf %53, %54 : vector<1x128xf32>
      %56 = arith.mulf %52, %52 : vector<1x128xf32>
      %57 = arith.subf %55, %56 : vector<1x128xf32>
      %cst_32 = arith.constant 0.000000e+00 : f32
      %58 = vector.broadcast %cst_32 : f32 to vector<1x128xf32>
      %59 = arith.maximumf %57, %58 : vector<1x128xf32>
      %c0_33 = arith.constant 0 : index
      %c0_34 = arith.constant 0 : index
      %60 = vector.load %arg13[%c0_33, %c0_34] : memref<1x128xf32, #tpu.memory_space<vmem>>, vector<1x128xf32>
      %cst_35 = arith.constant 9.99999974E-6 : f32
      %61 = vector.broadcast %cst_35 : f32 to vector<1x128xf32>
      %62 = arith.addf %59, %61 : vector<1x128xf32>
      %63 = math.rsqrt %62 : vector<1x128xf32>
      %64 = arith.mulf %60, %63 : vector<1x128xf32>
      %c0_36 = arith.constant 0 : index
      %c0_37 = arith.constant 0 : index
      %65 = vector.load %arg14[%c0_36, %c0_37] : memref<1x128xf32, #tpu.memory_space<vmem>>, vector<1x128xf32>
      %66 = arith.mulf %52, %64 : vector<1x128xf32>
      %67 = arith.subf %65, %66 : vector<1x128xf32>
      %c0_38 = arith.constant 0 : index
      %c0_39 = arith.constant 0 : index
      %68 = vector.load %arg20[%c0_38, %c0_39] : memref<1x128xf32, #tpu.memory_space<vmem>>, vector<1x128xf32>
      tpu.vector_store %arg20[%c0_38, %c0_39], %64 {strides = array<i32>} : memref<1x128xf32, #tpu.memory_space<vmem>>, vector<1x128xf32>,
      %c0_40 = arith.constant 0 : index
      %c0_41 = arith.constant 0 : index
      %69 = vector.load %arg21[%c0_40, %c0_41] : memref<1x128xf32, #tpu.memory_space<vmem>>, vector<1x128xf32>
      tpu.vector_store %arg21[%c0_40, %c0_41], %67 {strides = array<i32>} : memref<1x128xf32, #tpu.memory_space<vmem>>, vector<1x128xf32>,
    } else {
    }
    %c1_i32_21 = arith.constant 1 : i32
    %42 = arith.cmpi eq, %arg0, %c1_i32_21 : i32
    %43 = arith.extui %42 : i1 to i32
    %c0_i32_22 = arith.constant 0 : i32
    %44 = arith.cmpi ne, %43, %c0_i32_22 : i32
    scf.if %44 {
      %c0_26 = arith.constant 0 : index
      %c0_27 = arith.constant 0 : index
      %50 = vector.load %arg20[%c0_26, %c0_27] : memref<1x128xf32, #tpu.memory_space<vmem>>, vector<1x128xf32>
      %51 = vector.broadcast %50 : vector<1x128xf32> to vector<128x128xf32>
      %52 = arith.mulf %28, %51 : vector<128x128xf32>
      %c0_28 = arith.constant 0 : index
      %c0_29 = arith.constant 0 : index
      %53 = vector.load %arg21[%c0_28, %c0_29] : memref<1x128xf32, #tpu.memory_space<vmem>>, vector<1x128xf32>
      %54 = vector.broadcast %53 : vector<1x128xf32> to vector<128x128xf32>
      %55 = arith.addf %52, %54 : vector<128x128xf32>
      %56 = vector.extract_strided_slice %55 {offsets = [0, 0], sizes = [128, 64], strides = [1, 1]} : vector<128x128xf32> to vector<128x64xf32>
      %57 = arith.negf %56 : vector<128x64xf32>
      %58 = math.exp %57 : vector<128x64xf32>
      %cst_30 = arith.constant 1.000000e+00 : f32
      %59 = vector.broadcast %cst_30 : f32 to vector<128x64xf32>
      %60 = arith.addf %59, %58 : vector<128x64xf32>
      %61 = arith.divf %59, %60 : vector<128x64xf32>
      %62 = vector.extract_strided_slice %55 {offsets = [0, 64], sizes = [128, 64], strides = [1, 1]} : vector<128x128xf32> to vector<128x64xf32>
      %cst_31 = arith.constant 0.000000e+00 : f32
      %63 = vector.broadcast %cst_31 : f32 to vector<128x64xf32>
      %64 = arith.maximumf %62, %63 : vector<128x64xf32>
      %65 = vector.broadcast %cst_31 : f32 to vector<128x64xf32>
      %66 = arith.subf %62, %65 : vector<128x64xf32>
      %67 = arith.cmpf one, %66, %66 : vector<128x64xf32>
      %68 = vector.broadcast %cst_31 : f32 to vector<128x64xf32>
      %69 = arith.addf %62, %68 : vector<128x64xf32>
      %70 = math.absf %66 : vector<128x64xf32>
      %cst_32 = arith.constant 0.000000e+00 : f32
      %71 = vector.broadcast %cst_32 : f32 to vector<128x64xf32>
      %72 = arith.subf %71, %70 : vector<128x64xf32>
      %73 = math.exp %72 : vector<128x64xf32>
      %74 = math.log1p %73 : vector<128x64xf32>
      %75 = arith.addf %64, %74 : vector<128x64xf32>
      %76 = arith.select %67, %69, %75 : vector<128x64xi1>, vector<128x64xf32>
      %77 = arith.mulf %61, %76 : vector<128x64xf32>
      %cst_33 = arith.constant 0.000000e+00 : f32
      %78 = vector.shape_cast %33 : vector<128x1xi1> to vector<128x1xi1>
      %79 = vector.broadcast %78 : vector<128x1xi1> to vector<128x64xi1>
      %80 = vector.broadcast %cst_33 : f32 to vector<128x64xf32>
      %81 = arith.select %79, %77, %80 : vector<128x64xi1>, vector<128x64xf32>
      %82 = tpu.iota {dimensions = array<i32: 0>} : vector<8x128xi32>
      %c0_34 = arith.constant 0 : index
      %c0_35 = arith.constant 0 : index
      %83 = vector.load %arg6[%c0_34, %c0_35] : memref<1x128xi32, #tpu.memory_space<vmem>>, vector<1x128xi32>
      %84 = vector.broadcast %83 : vector<1x128xi32> to vector<8x128xi32>
      %85 = arith.cmpi eq, %82, %84 : vector<8x128xi32>
      %86 = arith.extui %85 : vector<8x128xi1> to vector<8x128xi32>
      %87 = arith.sitofp %86 : vector<8x128xi32> to vector<8x128xf32>
      %c0_36 = arith.constant 0 : index
      %c0_37 = arith.constant 0 : index
      %88 = vector.load %arg22[%c0_36, %c0_37] : memref<8x64xf32, #tpu.memory_space<vmem>>, vector<8x64xf32>
      %cst_38 = arith.constant dense<0.000000e+00> : vector<8x64xf32>
      %89 = tpu.matmul %87, %81, %cst_38 {dimension_numbers = #tpu.dot_dimension_numbers<[1], [0], [0], [1], [0, 0, 1, 1], [], []>} : vector<8x128xf32>, vector<128x64xf32>, vector<8x64xf32> -> vector<8x64xf32>
      %90 = arith.addf %88, %89 : vector<8x64xf32>
      %c0_39 = arith.constant 0 : index
      %c0_40 = arith.constant 0 : index
      %91 = vector.load %arg22[%c0_39, %c0_40] : memref<8x64xf32, #tpu.memory_space<vmem>>, vector<8x64xf32>
      tpu.vector_store %arg22[%c0_39, %c0_40], %90 {strides = array<i32>} : memref<8x64xf32, #tpu.memory_space<vmem>>, vector<8x64xf32>,
    } else {
    }
    %c1_i32_23 = arith.constant 1 : i32
    %45 = arith.cmpi eq, %arg0, %c1_i32_23 : i32
    %c0_i32_24 = arith.constant 0 : i32
    %46 = arith.cmpi eq, %arg1, %c0_i32_24 : i32
    %47 = arith.andi %45, %46 : i1
    %48 = arith.extui %47 : i1 to i32
    %c0_i32_25 = arith.constant 0 : i32
    %49 = arith.cmpi ne, %48, %c0_i32_25 : i32
    scf.if %49 {
      %c0_26 = arith.constant 0 : index
      %c0_27 = arith.constant 0 : index
      %50 = vector.load %arg22[%c0_26, %c0_27] : memref<8x64xf32, #tpu.memory_space<vmem>>, vector<8x64xf32>
      %51 = tpu.iota {dimensions = array<i32: 0>} : vector<8x1xi32>
      %c8_i32 = arith.constant 8 : i32
      %52 = vector.broadcast %c8_i32 : i32 to vector<8x1xi32>
      %53 = arith.cmpi slt, %51, %52 : vector<8x1xi32>
      %cst_28 = arith.constant 0.000000e+00 : f32
      %54 = vector.shape_cast %53 : vector<8x1xi1> to vector<8x1xi1>
      %55 = vector.broadcast %54 : vector<8x1xi1> to vector<8x64xi1>
      %56 = vector.broadcast %cst_28 : f32 to vector<8x64xf32>
      %57 = arith.select %55, %50, %56 : vector<8x64xi1>, vector<8x64xf32>
      %cst_29 = arith.constant dense<0.000000e+00> : vector<64xf32>
      %58 = vector.multi_reduction <add>, %57, %cst_29 [0] : vector<8x64xf32> to vector<64xf32>
      %59 = vector.shape_cast %58 : vector<64xf32> to vector<1x64xf32>
      %cst_30 = arith.constant 1.250000e-01 : f32
      %60 = vector.broadcast %cst_30 : f32 to vector<1x64xf32>
      %61 = arith.mulf %59, %60 : vector<1x64xf32>
      %62 = vector.broadcast %61 : vector<1x64xf32> to vector<8x64xf32>
      %63 = arith.subf %50, %62 : vector<8x64xf32>
      %64 = arith.mulf %63, %63 : vector<8x64xf32>
      %cst_31 = arith.constant 0.000000e+00 : f32
      %65 = vector.shape_cast %53 : vector<8x1xi1> to vector<8x1xi1>
      %66 = vector.broadcast %65 : vector<8x1xi1> to vector<8x64xi1>
      %67 = vector.broadcast %cst_31 : f32 to vector<8x64xf32>
      %68 = arith.select %66, %64, %67 : vector<8x64xi1>, vector<8x64xf32>
      %cst_32 = arith.constant dense<0.000000e+00> : vector<64xf32>
      %69 = vector.multi_reduction <add>, %68, %cst_32 [0] : vector<8x64xf32> to vector<64xf32>
      %70 = vector.shape_cast %69 : vector<64xf32> to vector<1x64xf32>
      %cst_33 = arith.constant 1.250000e-01 : f32
      %71 = vector.broadcast %cst_33 : f32 to vector<1x64xf32>
      %72 = arith.mulf %70, %71 : vector<1x64xf32>
      %73 = vector.broadcast %61 : vector<1x64xf32> to vector<8x64xf32>
      %74 = arith.subf %50, %73 : vector<8x64xf32>
      %cst_34 = arith.constant 9.99999974E-6 : f32
      %75 = vector.broadcast %cst_34 : f32 to vector<1x64xf32>
      %76 = arith.addf %72, %75 : vector<1x64xf32>
      %77 = math.rsqrt %76 : vector<1x64xf32>
      %78 = vector.broadcast %77 : vector<1x64xf32> to vector<8x64xf32>
      %79 = arith.mulf %74, %78 : vector<8x64xf32>
      %c0_35 = arith.constant 0 : index
      %c0_36 = arith.constant 0 : index
      %80 = vector.load %arg15[%c0_35, %c0_36] : memref<1x64xf32, #tpu.memory_space<vmem>>, vector<1x64xf32>
      %81 = vector.broadcast %80 : vector<1x64xf32> to vector<8x64xf32>
      %82 = arith.mulf %79, %81 : vector<8x64xf32>
      %c0_37 = arith.constant 0 : index
      %c0_38 = arith.constant 0 : index
      %83 = vector.load %arg16[%c0_37, %c0_38] : memref<1x64xf32, #tpu.memory_space<vmem>>, vector<1x64xf32>
      %84 = vector.broadcast %83 : vector<1x64xf32> to vector<8x64xf32>
      %85 = arith.addf %82, %84 : vector<8x64xf32>
      %c0_39 = arith.constant 0 : index
      %c0_40 = arith.constant 0 : index
      %86 = vector.load %arg2[%c0_39, %c0_40] : memref<8x64xf32, #tpu.memory_space<vmem>>, vector<8x64xf32>
      %87 = arith.addf %86, %85 : vector<8x64xf32>
      %cst_41 = arith.constant 0.000000e+00 : f32
      %88 = vector.broadcast %cst_41 : f32 to vector<8x64xf32>
      %89 = arith.maximumf %87, %88 : vector<8x64xf32>
      %90 = vector.broadcast %cst_41 : f32 to vector<8x64xf32>
      %91 = arith.subf %87, %90 : vector<8x64xf32>
      %92 = arith.cmpf one, %91, %91 : vector<8x64xf32>
      %93 = vector.broadcast %cst_41 : f32 to vector<8x64xf32>
      %94 = arith.addf %87, %93 : vector<8x64xf32>
      %95 = math.absf %91 : vector<8x64xf32>
      %cst_42 = arith.constant 0.000000e+00 : f32
      %96 = vector.broadcast %cst_42 : f32 to vector<8x64xf32>
      %97 = arith.subf %96, %95 : vector<8x64xf32>
      %98 = math.exp %97 : vector<8x64xf32>
      %99 = math.log1p %98 : vector<8x64xf32>
      %100 = arith.addf %89, %99 : vector<8x64xf32>
      %101 = arith.select %92, %94, %100 : vector<8x64xi1>, vector<8x64xf32>
      %c0_43 = arith.constant 0 : index
      %c0_44 = arith.constant 0 : index
      %102 = vector.load %arg17[%c0_43, %c0_44] : memref<8x64xf32, #tpu.memory_space<vmem>>, vector<8x64xf32>
      tpu.vector_store %arg17[%c0_43, %c0_44], %101 {strides = array<i32>} : memref<8x64xf32, #tpu.memory_space<vmem>>, vector<8x64xf32>,
    } else {
    }
    return
  }
  func.func @transform_0(%arg0: i32, %arg1: i32) -> (i32, i32) {
    %c0_i32 = arith.constant 0 : i32
    %c0_i32_0 = arith.constant 0 : i32
    %c0_i32_1 = arith.constant 0 : i32
    return %c0_i32, %c0_i32_0 : i32, i32
  }
  func.func @transform_1(%arg0: i32, %arg1: i32) -> (i32, i32) {
    %c0_i32 = arith.constant 0 : i32
    %c0_i32_0 = arith.constant 0 : i32
    return %arg1, %c0_i32 : i32, i32
  }
  func.func @transform_2(%arg0: i32, %arg1: i32) -> (i32, i32) {
    %c0_i32 = arith.constant 0 : i32
    %c0_i32_0 = arith.constant 0 : i32
    return %arg1, %c0_i32 : i32, i32
  }
  func.func @transform_3(%arg0: i32, %arg1: i32) -> (i32, i32) {
    %c0_i32 = arith.constant 0 : i32
    %c0_i32_0 = arith.constant 0 : i32
    return %arg1, %c0_i32 : i32, i32
  }
  func.func @transform_4(%arg0: i32, %arg1: i32) -> (i32, i32) {
    %c0_i32 = arith.constant 0 : i32
    %c0_i32_0 = arith.constant 0 : i32
    return %c0_i32, %arg1 : i32, i32
  }
  func.func @transform_5(%arg0: i32, %arg1: i32) -> (i32, i32) {
    %c0_i32 = arith.constant 0 : i32
    %c0_i32_0 = arith.constant 0 : i32
    %c0_i32_1 = arith.constant 0 : i32
    return %c0_i32, %c0_i32_0 : i32, i32
  }
  func.func @transform_6(%arg0: i32, %arg1: i32) -> (i32, i32) {
    %c0_i32 = arith.constant 0 : i32
    %c0_i32_0 = arith.constant 0 : i32
    %c0_i32_1 = arith.constant 0 : i32
    return %c0_i32, %c0_i32_0 : i32, i32
  }
  func.func @transform_7(%arg0: i32, %arg1: i32) -> (i32, i32) {
    %c0_i32 = arith.constant 0 : i32
    %c0_i32_0 = arith.constant 0 : i32
    %c0_i32_1 = arith.constant 0 : i32
    return %c0_i32, %c0_i32_0 : i32, i32
  }
  func.func @transform_8(%arg0: i32, %arg1: i32) -> (i32, i32) {
    %c0_i32 = arith.constant 0 : i32
    %c0_i32_0 = arith.constant 0 : i32
    %c0_i32_1 = arith.constant 0 : i32
    return %c0_i32, %c0_i32_0 : i32, i32
  }
  func.func @transform_9(%arg0: i32, %arg1: i32) -> (i32, i32) {
    %c0_i32 = arith.constant 0 : i32
    %c0_i32_0 = arith.constant 0 : i32
    %c0_i32_1 = arith.constant 0 : i32
    return %c0_i32, %c0_i32_0 : i32, i32
  }
  func.func @transform_10(%arg0: i32, %arg1: i32) -> (i32, i32) {
    %c0_i32 = arith.constant 0 : i32
    %c0_i32_0 = arith.constant 0 : i32
    %c0_i32_1 = arith.constant 0 : i32
    return %c0_i32, %c0_i32_0 : i32, i32
  }
  func.func @transform_11(%arg0: i32, %arg1: i32) -> (i32, i32) {
    %c0_i32 = arith.constant 0 : i32
    %c0_i32_0 = arith.constant 0 : i32
    %c0_i32_1 = arith.constant 0 : i32
    return %c0_i32, %c0_i32_0 : i32, i32
  }
  func.func @transform_12(%arg0: i32, %arg1: i32) -> (i32, i32) {
    %c0_i32 = arith.constant 0 : i32
    %c0_i32_0 = arith.constant 0 : i32
    %c0_i32_1 = arith.constant 0 : i32
    return %c0_i32, %c0_i32_0 : i32, i32
  }
  func.func @transform_13(%arg0: i32, %arg1: i32) -> (i32, i32) {
    %c0_i32 = arith.constant 0 : i32
    %c0_i32_0 = arith.constant 0 : i32
    %c0_i32_1 = arith.constant 0 : i32
    return %c0_i32, %c0_i32_0 : i32, i32
  }
  func.func @transform_14(%arg0: i32, %arg1: i32) -> (i32, i32) {
    %c0_i32 = arith.constant 0 : i32
    %c0_i32_0 = arith.constant 0 : i32
    %c0_i32_1 = arith.constant 0 : i32
    return %c0_i32, %c0_i32_0 : i32, i32
  }
  func.func @transform_15(%arg0: i32, %arg1: i32) -> (i32, i32) {
    %c0_i32 = arith.constant 0 : i32
    %c0_i32_0 = arith.constant 0 : i32
    %c0_i32_1 = arith.constant 0 : i32
    return %c0_i32, %c0_i32_0 : i32, i32
  }
}

</mosaic_0001>

<llo_original>
// kernel: tpu_custom_call.1
$region0: #{tpu_custom_call.1}
  #allocation0 [shape = 'u32[]', space=smem, size = 0x4, offset = 0x4, fixed_abs, tag = 'smem constant byte address 0x4 - core index']
  #allocation1 [shape = 'u32[144,128]{1,0:T(1,128)}', space=vmem, size = 0x12000, scoped, tag = 'internal scratch']
  #allocation2 [shape = 'f32[8,128]{1,0:T(8,128)}', space=vmem, size = 0x1000, scoped, tag = 'scratch operand']
  #allocation3 [shape = 'f32[8,128]{1,0:T(8,128)}', space=vmem, size = 0x1000, scoped, tag = 'scratch operand']
  #allocation4 [shape = 'f32[1,128]{1,0:T(1,128)}', space=vmem, size = 0x200, scoped, tag = 'scratch operand']
  #allocation5 [shape = 'f32[1,128]{1,0:T(1,128)}', space=vmem, size = 0x200, scoped, tag = 'scratch operand']
  #allocation6 [shape = 'f32[8,64]{1,0:T(8,128)}', space=vmem, size = 0x1000, scoped, tag = 'scratch operand']
  %s0 = inlined_call_operand.hbm [shape: f32[8,64], index: 0, kind: input, shape index: {}]
  %s1 = inlined_call_operand.vmem [shape: f32[128,128], index: 1, kind: input, shape index: {}]
  %s2 = inlined_call_operand.vmem [shape: s32[128,1], index: 2, kind: input, shape index: {}]
  %s3 = inlined_call_operand.vmem [shape: s32[128,1], index: 3, kind: input, shape index: {}]
  %s4 = inlined_call_operand.vmem [shape: s32[1,128], index: 4, kind: input, shape index: {}]
  %s5 = inlined_call_operand.hbm [shape: f32[64,128], index: 5, kind: input, shape index: {}]
  %s6 = inlined_call_operand.vmem [shape: f32[1,128], index: 6, kind: input, shape index: {}]
  %s7 = inlined_call_operand.hbm [shape: f32[64,128], index: 7, kind: input, shape index: {}]
  %s8 = inlined_call_operand.vmem [shape: f32[1,128], index: 8, kind: input, shape index: {}]
  %s9 = inlined_call_operand.vmem [shape: f32[128,128], index: 9, kind: input, shape index: {}]
  %s10 = inlined_call_operand.vmem [shape: f32[1,128], index: 10, kind: input, shape index: {}]
  %s11 = inlined_call_operand.vmem [shape: f32[1,128], index: 11, kind: input, shape index: {}]
  %s12 = inlined_call_operand.vmem [shape: f32[1,128], index: 12, kind: input, shape index: {}]
  %s13 = inlined_call_operand.vmem [shape: f32[1,64], index: 13, kind: input, shape index: {}]
  %s14 = inlined_call_operand.vmem [shape: f32[1,64], index: 14, kind: input, shape index: {}]
  %s15 = inlined_call_operand.hbm [shape: f32[8,64], index: 15, kind: output, shape index: {}]
  %s16 = sld [smem:[#allocation0]]
  $region125: #{tpu_custom_call.1} parent=0
    _
  %s18 = ssub.s32 1, %s16
  %s19 = scalar_select 0, %s18, %s16
  $region1: #{tpu_custom_call.1} parent=0
    #allocation7 [shape = 'u8[4096]{0}', space=vmem, size = 0x1000, scoped, tag = 'input window, operand 0, single buffered']
    #allocation8 [shape = 's32[2]{0}', space=sflag, size = 0x8, scoped, tag = 'scoped memory for tpu_custom_call.1']
    #allocation9 [shape = 's32[2]{0}', space=sflag, size = 0x8, scoped, tag = 'scoped memory for tpu_custom_call.1']
    #allocation10 [shape = 'u8[32768]{0}', space=vmem, size = 0x8000, scoped, tag = 'input window, operand 5, single buffered']
    #allocation11 [shape = 's32[1]{0}', space=sflag, size = 0x4, scoped, tag = 'scoped memory for tpu_custom_call.1']
    #allocation12 [shape = 'u8[32768]{0}', space=vmem, size = 0x8000, scoped, tag = 'input window, operand 7, single buffered']
    #allocation13 [shape = 'u8[4096]{0}', space=vmem, size = 0x1000, scoped, tag = 'output window, operand 0, single buffered']
    %20 = vsyncpa [#allocation8], 0
    %21 = vsyncpa [#allocation11], 0
    %22 = vsyncpa [#allocation9], 0
    loop: start=0, step=1, limit=4
    $region2: #{tpu_custom_call.1} parent=1 // loop_pre_header
      _
    $region3: #{tpu_custom_call.1} parent=1 // loop_header
      %s24 = sphi 0, %s28
      %p25 = scmp.ge.s32.totalorder %s24, 4
      %s31 = sphi 0, %s43
      %s32 = sphi 0, %s39
      %s33 = sphi 0, %s31
      %s34 = sphi 0, %s32
      %s35 = sphi 0, %s33
      %s36 = sphi 0, %s34
      %s44 = sphi 0, %s44
      %s46 = sphi 0, %s44
      %s47 = sphi 0, %s46
      %s61 = sphi 0, %s47
      %s67 = sphi 0, %s69
      %s70 = sphi 0, %s67
      %s71 = sphi 0, %s70
      %s87 = sphi 0, %s71
      %s93 = sphi 0, %s95
      %s96 = sphi 0, %s93
      %s97 = sphi 0, %s96
      %s113 = sphi 0, %s97
      %s119 = sphi 0, %s121
      %s122 = sphi 0, %s119
      %s123 = sphi 0, %s122
      %s139 = sphi 0, %s123
      %s145 = sphi 0, %s147
      %s148 = sphi 0, %s145
      %s149 = sphi 0, %s148
      %s165 = sphi 0, %s149
      %s169 = sphi 0, %s169
      %s171 = sphi 0, %s169
      %s172 = sphi 0, %s171
      %s186 = sphi 0, %s172
      %s190 = sphi 0, %s190
      %s192 = sphi 0, %s190
      %s193 = sphi 0, %s192
      %s207 = sphi 0, %s193
      %s211 = sphi 0, %s211
      %s213 = sphi 0, %s211
      %s214 = sphi 0, %s213
      %s228 = sphi 0, %s214
      %s232 = sphi 0, %s232
      %s234 = sphi 0, %s232
      %s235 = sphi 0, %s234
      %s249 = sphi 0, %s235
      %s253 = sphi 0, %s253
      %s255 = sphi 0, %s253
      %s256 = sphi 0, %s255
      %s270 = sphi 0, %s256
      %s274 = sphi 0, %s274
      %s276 = sphi 0, %s274
      %s277 = sphi 0, %s276
      %s291 = sphi 0, %s277
      %s295 = sphi 0, %s295
      %s297 = sphi 0, %s295
      %s298 = sphi 0, %s297
      %s312 = sphi 0, %s298
      %s316 = sphi 0, %s316
      %s318 = sphi 0, %s316
      %s319 = sphi 0, %s318
      %s333 = sphi 0, %s319
      %s337 = sphi 0, %s337
      %s339 = sphi 0, %s337
      %s340 = sphi 0, %s339
      %s354 = sphi 0, %s340
      %s358 = sphi 0, %s358
      %s360 = sphi 0, %s358
      %s361 = sphi 0, %s360
      %s375 = sphi 0, %s361
      %s379 = sphi 0, %s379
      %s381 = sphi 0, %s379
      %s382 = sphi 0, %s381
      %s396 = sphi 0, %s382
    $region4: #{tpu_custom_call.1} parent=1 // loop_header_branch
      %27 = sbr.rel (%p25) target = $region8
    $region5: #{tpu_custom_call.1} parent=1 // loop_body
      %s29 = ssub.s32 %s24, 1
      %s30 = ssub.s32 %s24, 2
      %s37 = sadd.s32 1, %s32
      %p38 = scmp.ge.s32.totalorder %s37, 1
      %s39 = scalar_select %p38, 0, %s37
      %s40 = sadd.s32 1, %s31
      %s41 = scalar_select %p38, %s40, %s31
      %p42 = scmp.ge.s32.totalorder %s41, 2
      %s43 = scalar_select %p42, 0, %s41
      %s45 = sadd.s32 %s44, 1
      %p48 = scmp.eq.s32.totalorder %s24, 1
      %p49 = scmp.ne.s32.totalorder %s44, %s46
      %p50 = scmp.eq.s32.totalorder %s24, 0
      %p51 = por %p49, %p50
      %p52 = scmp.ne.s32.totalorder %s44, %s46
      %p53 = scmp.eq.s32.totalorder %s29, 1
      %p54 = por %p52, %p53
      %p55 = scmp.ne.s32.totalorder %s46, %s47
      %p56 = scmp.eq.s32.totalorder %s29, 0
      %p57 = por %p55, %p56
      %p58 = scmp.ne.s32.totalorder %s46, %s47
      %p59 = scmp.eq.s32.totalorder %s30, 1
      %p60 = por %p58, %p59
      %p62 = scmp.ne.s32.totalorder %s47, %s61
      %p63 = scmp.eq.s32.totalorder %s30, 0
      %p64 = por %p62, %p63
      %s65 = ssub.s32 %s32, %s39
      %p66 = scmp.eq.s32.totalorder %s65, 0
      %s68 = sadd.s32 %s67, 1
      %s69 = scalar_select %p66, %s67, %s68
      %p72 = pneg %p66
      %p73 = scmp.eq.s32.totalorder %s24, 1
      %p74 = por %p72, %p73
      %p75 = scmp.ne.s32.totalorder %s67, %s70
      %p76 = scmp.eq.s32.totalorder %s24, 0
      %p77 = por %p75, %p76
      %p78 = scmp.ne.s32.totalorder %s67, %s70
      %p79 = scmp.eq.s32.totalorder %s29, 1
      %p80 = por %p78, %p79
      %p81 = scmp.ne.s32.totalorder %s70, %s71
      %p82 = scmp.eq.s32.totalorder %s29, 0
      %p83 = por %p81, %p82
      %p84 = scmp.ne.s32.totalorder %s70, %s71
      %p85 = scmp.eq.s32.totalorder %s30, 1
      %p86 = por %p84, %p85
      %p88 = scmp.ne.s32.totalorder %s71, %s87
      %p89 = scmp.eq.s32.totalorder %s30, 0
      %p90 = por %p88, %p89
      %s91 = ssub.s32 %s32, %s39
      %p92 = scmp.eq.s32.totalorder %s91, 0
      %s94 = sadd.s32 %s93, 1
      %s95 = scalar_select %p92, %s93, %s94
      %p98 = pneg %p92
      %p99 = scmp.eq.s32.totalorder %s24, 1
      %p100 = por %p98, %p99
      %p101 = scmp.ne.s32.totalorder %s93, %s96
      %p102 = scmp.eq.s32.totalorder %s24, 0
      %p103 = por %p101, %p102
      %p104 = scmp.ne.s32.totalorder %s93, %s96
      %p105 = scmp.eq.s32.totalorder %s29, 1
      %p106 = por %p104, %p105
      %p107 = scmp.ne.s32.totalorder %s96, %s97
      %p108 = scmp.eq.s32.totalorder %s29, 0
      %p109 = por %p107, %p108
      %p110 = scmp.ne.s32.totalorder %s96, %s97
      %p111 = scmp.eq.s32.totalorder %s30, 1
      %p112 = por %p110, %p111
      %p114 = scmp.ne.s32.totalorder %s97, %s113
      %p115 = scmp.eq.s32.totalorder %s30, 0
      %p116 = por %p114, %p115
      %s117 = ssub.s32 %s32, %s39
      %p118 = scmp.eq.s32.totalorder %s117, 0
      %s120 = sadd.s32 %s119, 1
      %s121 = scalar_select %p118, %s119, %s120
      %p124 = pneg %p118
      %p125 = scmp.eq.s32.totalorder %s24, 1
      %p126 = por %p124, %p125
      %p127 = scmp.ne.s32.totalorder %s119, %s122
      %p128 = scmp.eq.s32.totalorder %s24, 0
      %p129 = por %p127, %p128
      %p130 = scmp.ne.s32.totalorder %s119, %s122
      %p131 = scmp.eq.s32.totalorder %s29, 1
      %p132 = por %p130, %p131
      %p133 = scmp.ne.s32.totalorder %s122, %s123
      %p134 = scmp.eq.s32.totalorder %s29, 0
      %p135 = por %p133, %p134
      %p136 = scmp.ne.s32.totalorder %s122, %s123
      %p137 = scmp.eq.s32.totalorder %s30, 1
      %p138 = por %p136, %p137
      %p140 = scmp.ne.s32.totalorder %s123, %s139
      %p141 = scmp.eq.s32.totalorder %s30, 0
      %p142 = por %p140, %p141
      %s143 = ssub.s32 %s32, %s39
      %p144 = scmp.eq.s32.totalorder %s143, 0
      %s146 = sadd.s32 %s145, 1
      %s147 = scalar_select %p144, %s145, %s146
      %p150 = pneg %p144
      %p151 = scmp.eq.s32.totalorder %s24, 1
      %p152 = por %p150, %p151
      %p153 = scmp.ne.s32.totalorder %s145, %s148
      %p154 = scmp.eq.s32.totalorder %s24, 0
      %p155 = por %p153, %p154
      %p156 = scmp.ne.s32.totalorder %s145, %s148
      %p157 = scmp.eq.s32.totalorder %s29, 1
      %p158 = por %p156, %p157
      %p159 = scmp.ne.s32.totalorder %s148, %s149
      %p160 = scmp.eq.s32.totalorder %s29, 0
      %p161 = por %p159, %p160
      %p162 = scmp.ne.s32.totalorder %s148, %s149
      %p163 = scmp.eq.s32.totalorder %s30, 1
      %p164 = por %p162, %p163
      %p166 = scmp.ne.s32.totalorder %s149, %s165
      %p167 = scmp.eq.s32.totalorder %s30, 0
      %p168 = por %p166, %p167
      %s170 = sadd.s32 %s169, 1
      %p173 = scmp.eq.s32.totalorder %s24, 1
      %p174 = scmp.ne.s32.totalorder %s169, %s171
      %p175 = scmp.eq.s32.totalorder %s24, 0
      %p176 = por %p174, %p175
      %p177 = scmp.ne.s32.totalorder %s169, %s171
      %p178 = scmp.eq.s32.totalorder %s29, 1
      %p179 = por %p177, %p178
      %p180 = scmp.ne.s32.totalorder %s171, %s172
      %p181 = scmp.eq.s32.totalorder %s29, 0
      %p182 = por %p180, %p181
      %p183 = scmp.ne.s32.totalorder %s171, %s172
      %p184 = scmp.eq.s32.totalorder %s30, 1
      %p185 = por %p183, %p184
      %p187 = scmp.ne.s32.totalorder %s172, %s186
      %p188 = scmp.eq.s32.totalorder %s30, 0
      %p189 = por %p187, %p188
      %s191 = sadd.s32 %s190, 1
      %p194 = scmp.eq.s32.totalorder %s24, 1
      %p195 = scmp.ne.s32.totalorder %s190, %s192
      %p196 = scmp.eq.s32.totalorder %s24, 0
      %p197 = por %p195, %p196
      %p198 = scmp.ne.s32.totalorder %s190, %s192
      %p199 = scmp.eq.s32.totalorder %s29, 1
      %p200 = por %p198, %p199
      %p201 = scmp.ne.s32.totalorder %s192, %s193
      %p202 = scmp.eq.s32.totalorder %s29, 0
      %p203 = por %p201, %p202
      %p204 = scmp.ne.s32.totalorder %s192, %s193
      %p205 = scmp.eq.s32.totalorder %s30, 1
      %p206 = por %p204, %p205
      %p208 = scmp.ne.s32.totalorder %s193, %s207
      %p209 = scmp.eq.s32.totalorder %s30, 0
      %p210 = por %p208, %p209
      %s212 = sadd.s32 %s211, 1
      %p215 = scmp.eq.s32.totalorder %s24, 1
      %p216 = scmp.ne.s32.totalorder %s211, %s213
      %p217 = scmp.eq.s32.totalorder %s24, 0
      %p218 = por %p216, %p217
      %p219 = scmp.ne.s32.totalorder %s211, %s213
      %p220 = scmp.eq.s32.totalorder %s29, 1
      %p221 = por %p219, %p220
      %p222 = scmp.ne.s32.totalorder %s213, %s214
      %p223 = scmp.eq.s32.totalorder %s29, 0
      %p224 = por %p222, %p223
      %p225 = scmp.ne.s32.totalorder %s213, %s214
      %p226 = scmp.eq.s32.totalorder %s30, 1
      %p227 = por %p225, %p226
      %p229 = scmp.ne.s32.totalorder %s214, %s228
      %p230 = scmp.eq.s32.totalorder %s30, 0
      %p231 = por %p229, %p230
      %s233 = sadd.s32 %s232, 1
      %p236 = scmp.eq.s32.totalorder %s24, 1
      %p237 = scmp.ne.s32.totalorder %s232, %s234
      %p238 = scmp.eq.s32.totalorder %s24, 0
      %p239 = por %p237, %p238
      %p240 = scmp.ne.s32.totalorder %s232, %s234
      %p241 = scmp.eq.s32.totalorder %s29, 1
      %p242 = por %p240, %p241
      %p243 = scmp.ne.s32.totalorder %s234, %s235
      %p244 = scmp.eq.s32.totalorder %s29, 0
      %p245 = por %p243, %p244
      %p246 = scmp.ne.s32.totalorder %s234, %s235
      %p247 = scmp.eq.s32.totalorder %s30, 1
      %p248 = por %p246, %p247
      %p250 = scmp.ne.s32.totalorder %s235, %s249
      %p251 = scmp.eq.s32.totalorder %s30, 0
      %p252 = por %p250, %p251
      %s254 = sadd.s32 %s253, 1
      %p257 = scmp.eq.s32.totalorder %s24, 1
      %p258 = scmp.ne.s32.totalorder %s253, %s255
      %p259 = scmp.eq.s32.totalorder %s24, 0
      %p260 = por %p258, %p259
      %p261 = scmp.ne.s32.totalorder %s253, %s255
      %p262 = scmp.eq.s32.totalorder %s29, 1
      %p263 = por %p261, %p262
      %p264 = scmp.ne.s32.totalorder %s255, %s256
      %p265 = scmp.eq.s32.totalorder %s29, 0
      %p266 = por %p264, %p265
      %p267 = scmp.ne.s32.totalorder %s255, %s256
      %p268 = scmp.eq.s32.totalorder %s30, 1
      %p269 = por %p267, %p268
      %p271 = scmp.ne.s32.totalorder %s256, %s270
      %p272 = scmp.eq.s32.totalorder %s30, 0
      %p273 = por %p271, %p272
      %s275 = sadd.s32 %s274, 1
      %p278 = scmp.eq.s32.totalorder %s24, 1
      %p279 = scmp.ne.s32.totalorder %s274, %s276
      %p280 = scmp.eq.s32.totalorder %s24, 0
      %p281 = por %p279, %p280
      %p282 = scmp.ne.s32.totalorder %s274, %s276
      %p283 = scmp.eq.s32.totalorder %s29, 1
      %p284 = por %p282, %p283
      %p285 = scmp.ne.s32.totalorder %s276, %s277
      %p286 = scmp.eq.s32.totalorder %s29, 0
      %p287 = por %p285, %p286
      %p288 = scmp.ne.s32.totalorder %s276, %s277
      %p289 = scmp.eq.s32.totalorder %s30, 1
      %p290 = por %p288, %p289
      %p292 = scmp.ne.s32.totalorder %s277, %s291
      %p293 = scmp.eq.s32.totalorder %s30, 0
      %p294 = por %p292, %p293
      %s296 = sadd.s32 %s295, 1
      %p299 = scmp.eq.s32.totalorder %s24, 1
      %p300 = scmp.ne.s32.totalorder %s295, %s297
      %p301 = scmp.eq.s32.totalorder %s24, 0
      %p302 = por %p300, %p301
      %p303 = scmp.ne.s32.totalorder %s295, %s297
      %p304 = scmp.eq.s32.totalorder %s29, 1
      %p305 = por %p303, %p304
      %p306 = scmp.ne.s32.totalorder %s297, %s298
      %p307 = scmp.eq.s32.totalorder %s29, 0
      %p308 = por %p306, %p307
      %p309 = scmp.ne.s32.totalorder %s297, %s298
      %p310 = scmp.eq.s32.totalorder %s30, 1
      %p311 = por %p309, %p310
      %p313 = scmp.ne.s32.totalorder %s298, %s312
      %p314 = scmp.eq.s32.totalorder %s30, 0
      %p315 = por %p313, %p314
      %s317 = sadd.s32 %s316, 1
      %p320 = scmp.eq.s32.totalorder %s24, 1
      %p321 = scmp.ne.s32.totalorder %s316, %s318
      %p322 = scmp.eq.s32.totalorder %s24, 0
      %p323 = por %p321, %p322
      %p324 = scmp.ne.s32.totalorder %s316, %s318
      %p325 = scmp.eq.s32.totalorder %s29, 1
      %p326 = por %p324, %p325
      %p327 = scmp.ne.s32.totalorder %s318, %s319
      %p328 = scmp.eq.s32.totalorder %s29, 0
      %p329 = por %p327, %p328
      %p330 = scmp.ne.s32.totalorder %s318, %s319
      %p331 = scmp.eq.s32.totalorder %s30, 1
      %p332 = por %p330, %p331
      %p334 = scmp.ne.s32.totalorder %s319, %s333
      %p335 = scmp.eq.s32.totalorder %s30, 0
      %p336 = por %p334, %p335
      %s338 = sadd.s32 %s337, 1
      %p341 = scmp.eq.s32.totalorder %s24, 1
      %p342 = scmp.ne.s32.totalorder %s337, %s339
      %p343 = scmp.eq.s32.totalorder %s24, 0
      %p344 = por %p342, %p343
      %p345 = scmp.ne.s32.totalorder %s337, %s339
      %p346 = scmp.eq.s32.totalorder %s29, 1
      %p347 = por %p345, %p346
      %p348 = scmp.ne.s32.totalorder %s339, %s340
      %p349 = scmp.eq.s32.totalorder %s29, 0
      %p350 = por %p348, %p349
      %p351 = scmp.ne.s32.totalorder %s339, %s340
      %p352 = scmp.eq.s32.totalorder %s30, 1
      %p353 = por %p351, %p352
      %p355 = scmp.ne.s32.totalorder %s340, %s354
      %p356 = scmp.eq.s32.totalorder %s30, 0
      %p357 = por %p355, %p356
      %s359 = sadd.s32 %s358, 1
      %p362 = scmp.eq.s32.totalorder %s24, 1
      %p363 = scmp.ne.s32.totalorder %s358, %s360
      %p364 = scmp.eq.s32.totalorder %s24, 0
      %p365 = por %p363, %p364
      %p366 = scmp.ne.s32.totalorder %s358, %s360
      %p367 = scmp.eq.s32.totalorder %s29, 1
      %p368 = por %p366, %p367
      %p369 = scmp.ne.s32.totalorder %s360, %s361
      %p370 = scmp.eq.s32.totalorder %s29, 0
      %p371 = por %p369, %p370
      %p372 = scmp.ne.s32.totalorder %s360, %s361
      %p373 = scmp.eq.s32.totalorder %s30, 1
      %p374 = por %p372, %p373
      %p376 = scmp.ne.s32.totalorder %s361, %s375
      %p377 = scmp.eq.s32.totalorder %s30, 0
      %p378 = por %p376, %p377
      %s380 = sadd.s32 %s379, 1
      %p383 = scmp.eq.s32.totalorder %s24, 1
      %p384 = scmp.ne.s32.totalorder %s379, %s381
      %p385 = scmp.eq.s32.totalorder %s24, 0
      %p386 = por %p384, %p385
      %p387 = scmp.ne.s32.totalorder %s379, %s381
      %p388 = scmp.eq.s32.totalorder %s29, 1
      %p389 = por %p387, %p388
      %p390 = scmp.ne.s32.totalorder %s381, %s382
      %p391 = scmp.eq.s32.totalorder %s29, 0
      %p392 = por %p390, %p391
      %p393 = scmp.ne.s32.totalorder %s381, %s382
      %p394 = scmp.eq.s32.totalorder %s30, 1
      %p395 = por %p393, %p394
      %p397 = scmp.ne.s32.totalorder %s382, %s396
      %p398 = scmp.eq.s32.totalorder %s30, 0
      %p399 = por %p397, %p398
      %p400 = scmp.le.s32.totalorder 1, %s24
      %p401 = scmp.lt.s32.totalorder %s24, 3
      %p402 = pnand %p400, %p401
      %p403 = pneg %p402
      // Predicated region
      $region9: #{tpu_custom_call.1} parent=5 // pred_check
        _
      $region10: #{tpu_custom_call.1} parent=5 // pred_check_branch
        %405 = sbr.rel (%p402) target = $region12
      $region11: #{tpu_custom_call.1} parent=5 // pred_region
        %s406 = ssub.s32 %s24, 1
        // Predicated region
        $region13: #{tpu_custom_call.1} parent=11 // pred_check
          %p407 = pneg %p57
        $region14: #{tpu_custom_call.1} parent=11 // pred_check_branch
          %409 = sbr.rel (%p407) target = $region16
        $region15: #{tpu_custom_call.1} parent=11 // pred_region
          %s411 = ssub.s32 128, 128
          %412 = vsyncadd [#allocation8], %s411
          %s414 = sshll.u32 [#allocation7], 4
          %s415 = int_to_ptr.vmem [resolvable:$true] %s414
          %417 = dma.hbm_to_vmem [thread:$0]  %s0, 128, %s415, [#allocation8]
        $region16: #{tpu_custom_call.1} parent=11 // pred_fallthru
          _
        // Predicated region
        $region17: #{tpu_custom_call.1} parent=11 // pred_check
          %p418 = pneg %p83
        $region18: #{tpu_custom_call.1} parent=11 // pred_check_branch
          %420 = sbr.rel (%p418) target = $region20
        $region19: #{tpu_custom_call.1} parent=11 // pred_region
          %s421 = smul.u32 16, %s34
          %p422 = scmp.lt.s32.totalorder %s421, 15
          %s423 = scalar_select %p422, %s421, 15
          %s424 = smul.addr %s423, 8
          %s425 = scalar_lea.vmem %s1, %s424
          %s426 = smul.u32 16, %s34
        $region20: #{tpu_custom_call.1} parent=11 // pred_fallthru
          _
        // Predicated region
        $region21: #{tpu_custom_call.1} parent=11 // pred_check
          %p427 = pneg %p109
        $region22: #{tpu_custom_call.1} parent=11 // pred_check_branch
          %429 = sbr.rel (%p427) target = $region24
        $region23: #{tpu_custom_call.1} parent=11 // pred_region
          %s430 = smul.u32 16, %s34
          %p431 = scmp.lt.s32.totalorder %s430, 15
          %s432 = scalar_select %p431, %s430, 15
          %s433 = smul.addr %s432, 8
          %s434 = scalar_lea.vmem %s2, %s433
          %s435 = smul.u32 16, %s34
        $region24: #{tpu_custom_call.1} parent=11 // pred_fallthru
          _
        // Predicated region
        $region25: #{tpu_custom_call.1} parent=11 // pred_check
          %p436 = pneg %p135
        $region26: #{tpu_custom_call.1} parent=11 // pred_check_branch
          %438 = sbr.rel (%p436) target = $region28
        $region27: #{tpu_custom_call.1} parent=11 // pred_region
          %s439 = smul.u32 16, %s34
          %p440 = scmp.lt.s32.totalorder %s439, 15
          %s441 = scalar_select %p440, %s439, 15
          %s442 = smul.addr %s441, 8
          %s443 = scalar_lea.vmem %s3, %s442
          %s444 = smul.u32 16, %s34
        $region28: #{tpu_custom_call.1} parent=11 // pred_fallthru
          _
        // Predicated region
        $region29: #{tpu_custom_call.1} parent=11 // pred_check
          %p445 = pneg %p161
        $region30: #{tpu_custom_call.1} parent=11 // pred_check_branch
          %447 = sbr.rel (%p445) target = $region32
        $region31: #{tpu_custom_call.1} parent=11 // pred_region
          %p448 = scmp.lt.s32.totalorder %s34, 0
          %s449 = scalar_select %p448, %s34, 0
          %s450 = scalar_lea.vmem %s4, %s449
        $region32: #{tpu_custom_call.1} parent=11 // pred_fallthru
          _
        // Predicated region
        $region33: #{tpu_custom_call.1} parent=11 // pred_check
          %p451 = pneg %p182
        $region34: #{tpu_custom_call.1} parent=11 // pred_check_branch
          %453 = sbr.rel (%p451) target = $region36
        $region35: #{tpu_custom_call.1} parent=11 // pred_region
          %s455 = ssub.s32 1024, 1024
          %456 = vsyncadd [#allocation11], %s455
          %s457 = sshll.u32 [#allocation10], 4
          %s458 = int_to_ptr.vmem [resolvable:$true] %s457
          %463 = dma.hbm_to_vmem [thread:$0]  %s5, 1024, %s458, [#allocation11], 128, 128, 8
        $region36: #{tpu_custom_call.1} parent=11 // pred_fallthru
          _
        // Predicated region
        $region37: #{tpu_custom_call.1} parent=11 // pred_check
          %p464 = pneg %p203
        $region38: #{tpu_custom_call.1} parent=11 // pred_check_branch
          %466 = sbr.rel (%p464) target = $region40
        $region39: #{tpu_custom_call.1} parent=11 // pred_region
          _
        $region40: #{tpu_custom_call.1} parent=11 // pred_fallthru
          _
        // Predicated region
        $region41: #{tpu_custom_call.1} parent=11 // pred_check
          %p467 = pneg %p224
        $region42: #{tpu_custom_call.1} parent=11 // pred_check_branch
          %469 = sbr.rel (%p467) target = $region44
        $region43: #{tpu_custom_call.1} parent=11 // pred_region
          %s471 = ssub.s32 1024, 1024
          %472 = vsyncadd [#allocation11], %s471
          %s473 = sshll.u32 [#allocation12], 4
          %s474 = int_to_ptr.vmem [resolvable:$true] %s473
          %479 = dma.hbm_to_vmem [thread:$0]  %s7, 1024, %s474, [#allocation11], 128, 128, 8
        $region44: #{tpu_custom_call.1} parent=11 // pred_fallthru
          _
        // Predicated region
        $region45: #{tpu_custom_call.1} parent=11 // pred_check
          %p480 = pneg %p245
        $region46: #{tpu_custom_call.1} parent=11 // pred_check_branch
          %482 = sbr.rel (%p480) target = $region48
        $region47: #{tpu_custom_call.1} parent=11 // pred_region
          _
        $region48: #{tpu_custom_call.1} parent=11 // pred_fallthru
          _
        // Predicated region
        $region49: #{tpu_custom_call.1} parent=11 // pred_check
          %p483 = pneg %p266
        $region50: #{tpu_custom_call.1} parent=11 // pred_check_branch
          %485 = sbr.rel (%p483) target = $region52
        $region51: #{tpu_custom_call.1} parent=11 // pred_region
          _
        $region52: #{tpu_custom_call.1} parent=11 // pred_fallthru
          _
        // Predicated region
        $region53: #{tpu_custom_call.1} parent=11 // pred_check
          %p486 = pneg %p287
        $region54: #{tpu_custom_call.1} parent=11 // pred_check_branch
          %488 = sbr.rel (%p486) target = $region56
        $region55: #{tpu_custom_call.1} parent=11 // pred_region
          _
        $region56: #{tpu_custom_call.1} parent=11 // pred_fallthru
          _
        // Predicated region
        $region57: #{tpu_custom_call.1} parent=11 // pred_check
          %p489 = pneg %p308
        $region58: #{tpu_custom_call.1} parent=11 // pred_check_branch
          %491 = sbr.rel (%p489) target = $region60
        $region59: #{tpu_custom_call.1} parent=11 // pred_region
          _
        $region60: #{tpu_custom_call.1} parent=11 // pred_fallthru
          _
        // Predicated region
        $region61: #{tpu_custom_call.1} parent=11 // pred_check
          %p492 = pneg %p329
        $region62: #{tpu_custom_call.1} parent=11 // pred_check_branch
          %494 = sbr.rel (%p492) target = $region64
        $region63: #{tpu_custom_call.1} parent=11 // pred_region
          _
        $region64: #{tpu_custom_call.1} parent=11 // pred_fallthru
          _
        // Predicated region
        $region65: #{tpu_custom_call.1} parent=11 // pred_check
          %p495 = pneg %p350
        $region66: #{tpu_custom_call.1} parent=11 // pred_check_branch
          %497 = sbr.rel (%p495) target = $region68
        $region67: #{tpu_custom_call.1} parent=11 // pred_region
          _
        $region68: #{tpu_custom_call.1} parent=11 // pred_fallthru
          _
        // Predicated region
        $region69: #{tpu_custom_call.1} parent=11 // pred_check
          %p498 = pneg %p371
        $region70: #{tpu_custom_call.1} parent=11 // pred_check_branch
          %500 = sbr.rel (%p498) target = $region72
        $region71: #{tpu_custom_call.1} parent=11 // pred_region
          _
        $region72: #{tpu_custom_call.1} parent=11 // pred_fallthru
          _
      $region12: #{tpu_custom_call.1} parent=5 // pred_fallthru
        _
      %p501 = scmp.lt.s32.totalorder %s24, 2
      // Predicated region
      $region73: #{tpu_custom_call.1} parent=5 // pred_check
        %p502 = pneg %p501
      $region74: #{tpu_custom_call.1} parent=5 // pred_check_branch
        %504 = sbr.rel (%p502) target = $region76
      $region75: #{tpu_custom_call.1} parent=5 // pred_region
        _
      $region76: #{tpu_custom_call.1} parent=5 // pred_fallthru
        _
      %p505 = scmp.le.s32.totalorder 1, %s24
      %p506 = scmp.lt.s32.totalorder %s24, 3
      %p507 = pnand %p505, %p506
      %p508 = pneg %p507
      // Predicated region
      $region77: #{tpu_custom_call.1} parent=5 // pred_check
        _
      $region78: #{tpu_custom_call.1} parent=5 // pred_check_branch
        %510 = sbr.rel (%p507) target = $region80
      $region79: #{tpu_custom_call.1} parent=5 // pred_region
        %s511 = ssub.s32 %s24, 1
        // Predicated region
        $region81: #{tpu_custom_call.1} parent=79 // pred_check
          %p512 = pneg %p57
        $region82: #{tpu_custom_call.1} parent=79 // pred_check_branch
          %514 = sbr.rel (%p512) target = $region84
        $region83: #{tpu_custom_call.1} parent=79 // pred_region
          %515 = dma.done [#allocation8], 128
        $region84: #{tpu_custom_call.1} parent=79 // pred_fallthru
          _
        // Predicated region
        $region85: #{tpu_custom_call.1} parent=79 // pred_check
          %p516 = pneg %p182
        $region86: #{tpu_custom_call.1} parent=79 // pred_check_branch
          %518 = sbr.rel (%p516) target = $region88
        $region87: #{tpu_custom_call.1} parent=79 // pred_region
          %519 = dma.done [#allocation11], 1024
        $region88: #{tpu_custom_call.1} parent=79 // pred_fallthru
          _
        // Predicated region
        $region89: #{tpu_custom_call.1} parent=79 // pred_check
          %p520 = pneg %p224
        $region90: #{tpu_custom_call.1} parent=79 // pred_check_branch
          %522 = sbr.rel (%p520) target = $region92
        $region91: #{tpu_custom_call.1} parent=79 // pred_region
          %523 = dma.done [#allocation11], 1024
        $region92: #{tpu_custom_call.1} parent=79 // pred_fallthru
          _
        %p524 = pneg %p57
        %p525 = pneg %p54
        %s526 = smul.u32 16, %s34
        %p527 = scmp.lt.s32.totalorder %s526, 15
        %s528 = scalar_select %p527, %s526, 15
        %s529 = smul.addr %s528, 8
        %s530 = scalar_lea.vmem %s1, %s529
        %p531 = pneg %p83
        %p532 = pneg %p80
        %s533 = smul.u32 16, %s34
        %p534 = scmp.lt.s32.totalorder %s533, 15
        %s535 = scalar_select %p534, %s533, 15
        %s536 = smul.addr %s535, 8
        %s537 = scalar_lea.vmem %s2, %s536
        %p538 = pneg %p109
        %p539 = pneg %p106
        %s540 = smul.u32 16, %s34
        %p541 = scmp.lt.s32.totalorder %s540, 15
        %s542 = scalar_select %p541, %s540, 15
        %s543 = smul.addr %s542, 8
        %s544 = scalar_lea.vmem %s3, %s543
        %p545 = pneg %p135
        %p546 = pneg %p132
        %p547 = scmp.lt.s32.totalorder %s34, 0
        %s548 = scalar_select %p547, %s34, 0
        %s549 = scalar_lea.vmem %s4, %s548
        %p550 = pneg %p161
        %p551 = pneg %p158
        %p552 = pneg %p182
        %p553 = pneg %p179
        %p554 = pneg %p203
        %p555 = pneg %p200
        %p556 = pneg %p224
        %p557 = pneg %p221
        %p558 = pneg %p245
        %p559 = pneg %p242
        %p560 = pneg %p266
        %p561 = pneg %p263
        %p562 = pneg %p287
        %p563 = pneg %p284
        %p564 = pneg %p308
        %p565 = pneg %p305
        %p566 = pneg %p329
        %p567 = pneg %p326
        %p568 = pneg %p350
        %p569 = pneg %p347
        %p570 = pneg %p371
        %p571 = pneg %p368
        %p572 = pneg %p392
        %p573 = pneg %p389
        %s574 = smul.u32 16, %s34
        %p575 = scmp.lt.s32.totalorder %s574, 15
        %s576 = scalar_select %p575, %s574, 15
        %s577 = smul.addr %s576, 8
        %s578 = scalar_lea.vmem %s1, %s577
        %s579 = smul.u32 16, %s34
        %s580 = smul.u32 16, %s34
        %p581 = scmp.lt.s32.totalorder %s580, 15
        %s582 = scalar_select %p581, %s580, 15
        %s583 = smul.addr %s582, 8
        %s584 = scalar_lea.vmem %s2, %s583
        %s585 = smul.u32 16, %s34
        %s586 = smul.u32 16, %s34
        %p587 = scmp.lt.s32.totalorder %s586, 15
        %s588 = scalar_select %p587, %s586, 15
        %s589 = smul.addr %s588, 8
        %s590 = scalar_lea.vmem %s3, %s589
        %s591 = smul.u32 16, %s34
        %p592 = scmp.lt.s32.totalorder %s34, 0
        %s593 = scalar_select %p592, %s34, 0
        %s594 = scalar_lea.vmem %s4, %s593
        %s595 = smul.u32 %s34, 128
        %p596 = scmp.eq.s32.totalorder %s33, 0
        %p597 = scmp.eq.s32.totalorder %s34, 0
        %p598 = pnand %p596, %p597
        %p599 = pneg %p598
        // Predicated region
        $region93: #{tpu_custom_call.1} parent=79 // pred_check
          _
        $region94: #{tpu_custom_call.1} parent=79 // pred_check_branch
          %601 = sbr.rel (%p598) target = $region96
        $region95: #{tpu_custom_call.1} parent=79 // pred_region
          %v602 = vld [vmem:[#allocation7] sm:$0xff]
          %v603 = vld [vmem:[#allocation10] sm:$0xff]
          %v604 = vld [vmem:[#allocation10 + $0x8] sm:$0xff]
          %v605 = vld [vmem:[#allocation10 + $0x10] sm:$0xff]
          %v606 = vld [vmem:[#allocation10 + $0x18] sm:$0xff]
          %v607 = vld [vmem:[#allocation10 + $0x20] sm:$0xff]
          %v608 = vld [vmem:[#allocation10 + $0x28] sm:$0xff]
          %v609 = vld [vmem:[#allocation10 + $0x30] sm:$0xff]
          %v610 = vld [vmem:[#allocation10 + $0x38] sm:$0xff]
          %v611 = vld [vmem:[%s6] sm:$0x1]
          %v613 = vlaneseq
          %v614 = vshrl.u32 %v613, 7
          %v615 = vsub.s32 0, %v614
          %v616 = vrot.slane %v611, %v615
          %vm618 = vcmask 523264
          %v620 = vsel %vm618, %v602, 0
          %622 = vmatprep.subr.mxu0 0.0
          %623 = vmatpush1.msra.mxu0 %v603
          %624 = vmatprep.subr.mxu0 0.0
          %625 = vmatpush1.msra.mxu0 %v604
          %626 = vmatprep.subr.mxu0 0.0
          %627 = vmatpush1.msra.mxu0 %v605
          %628 = vmatprep.subr.mxu0 0.0
          %629 = vmatpush1.msra.mxu0 %v606
          %630 = vmatprep.subr.mxu0 0.0
          %631 = vmatpush1.msra.mxu0 %v607
          %632 = vmatprep.subr.mxu0 0.0
          %633 = vmatpush1.msra.mxu0 %v608
          %634 = vmatprep.subr.mxu0 0.0
          %635 = vmatpush1.msra.mxu0 %v609
          %636 = vmatprep.subr.mxu0 0.0
          %637 = vmatpush1.msra.mxu0 %v610
          %638 = vmatprep.subr.mxu0 0.0
          %639 = vmatpush1.msra.mxu0 0.0
          %640 = vmatprep.subr.mxu0 0.0
          %641 = vmatpush1.msra.mxu0 0.0
          %642 = vmatprep.subr.mxu0 0.0
          %643 = vmatpush1.msra.mxu0 0.0
          %644 = vmatprep.subr.mxu0 0.0
          %645 = vmatpush1.msra.mxu0 0.0
          %646 = vmatprep.subr.mxu0 0.0
          %647 = vmatpush1.msra.mxu0 0.0
          %648 = vmatprep.subr.mxu0 0.0
          %649 = vmatpush1.msra.mxu0 0.0
          %650 = vmatprep.subr.mxu0 0.0
          %651 = vmatpush1.msra.mxu0 0.0
          %652 = vmatprep.subr.mxu0 0.0
          %653 = vmatpush1.msra.mxu0 0.0
          %654 = vmatprep.subr.mxu0 0.0
          %655 = vmatpush1.msra.mxu0 0.0
          %656 = vmatprep.subr.mxu0 0.0
          %657 = vmatpush1.msra.mxu0 0.0
          %658 = vmatprep.subr.mxu0 0.0
          %659 = vmatpush1.msra.mxu0 0.0
          %660 = vmatprep.subr.mxu0 0.0
          %661 = vmatpush1.msra.mxu0 0.0
          %662 = vmatprep.subr.mxu0 0.0
          %663 = vmatpush1.msra.mxu0 0.0
          %664 = vmatprep.subr.mxu0 0.0
          %665 = vmatpush1.msra.mxu0 0.0
          %666 = vmatprep.subr.mxu0 0.0
          %667 = vmatpush1.msra.mxu0 0.0
          %668 = vmatprep.subr.mxu0 0.0
          %669 = vmatpush1.msra.mxu0 0.0
          %670 = vmatprep.subr.mxu0 0.0
          %671 = vmatpush1.msra.mxu0 0.0
          %672 = vmatprep.subr.mxu0 0.0
          %673 = vmatpush1.msra.mxu0 0.0
          %674 = vmatprep.subr.mxu0 0.0
          %675 = vmatpush1.msra.mxu0 0.0
          %676 = vmatprep.subr.mxu0 0.0
          %677 = vmatpush1.msra.mxu0 0.0
          %678 = vmatprep.subr.mxu0 0.0
          %679 = vmatpush1.msra.mxu0 0.0
          %680 = vmatprep.subr.mxu0 0.0
          %681 = vmatpush1.msra.mxu0 0.0
          %682 = vmatprep.subr.mxu0 0.0
          %683 = vmatpush1.msra.mxu0 0.0
          %684 = vmatprep.subr.mxu0 0.0
          %685 = vmatpush1.msra.mxu0 0.0
          %686 = vmatprep.mubr.f32.mxu0 0.0
          %687 = vmatmul.mubr.f32.gmra.mrb[0].mxu0 %v620
          %v688 = vpop.f32.mrb[0].mxu0
          %v689 = vadd.f32 %v616, %v688
          %v690 = vpop.f32.mrb[0].mxu0
          %691 = vdwg.mxu0
          %692 = vst [vmem:[#allocation2] sm:$0xff] %v689
          %v693 = vld [vmem:[#allocation7] sm:$0xff]
          %v694 = vld [vmem:[#allocation12] sm:$0xff]
          %v695 = vld [vmem:[#allocation12 + $0x8] sm:$0xff]
          %v696 = vld [vmem:[#allocation12 + $0x10] sm:$0xff]
          %v697 = vld [vmem:[#allocation12 + $0x18] sm:$0xff]
          %v698 = vld [vmem:[#allocation12 + $0x20] sm:$0xff]
          %v699 = vld [vmem:[#allocation12 + $0x28] sm:$0xff]
          %v700 = vld [vmem:[#allocation12 + $0x30] sm:$0xff]
          %v701 = vld [vmem:[#allocation12 + $0x38] sm:$0xff]
          %v702 = vld [vmem:[%s8] sm:$0x1]
          %v704 = vlaneseq
          %v705 = vshrl.u32 %v704, 7
          %v706 = vsub.s32 0, %v705
          %v707 = vrot.slane %v702, %v706
          %v710 = vsel %vm618, %v693, 0
          %712 = vmatprep.subr.mxu0 0.0
          %713 = vmatpush1.msra.mxu0 %v694
          %714 = vmatprep.subr.mxu0 0.0
          %715 = vmatpush1.msra.mxu0 %v695
          %716 = vmatprep.subr.mxu0 0.0
          %717 = vmatpush1.msra.mxu0 %v696
          %718 = vmatprep.subr.mxu0 0.0
          %719 = vmatpush1.msra.mxu0 %v697
          %720 = vmatprep.subr.mxu0 0.0
          %721 = vmatpush1.msra.mxu0 %v698
          %722 = vmatprep.subr.mxu0 0.0
          %723 = vmatpush1.msra.mxu0 %v699
          %724 = vmatprep.subr.mxu0 0.0
          %725 = vmatpush1.msra.mxu0 %v700
          %726 = vmatprep.subr.mxu0 0.0
          %727 = vmatpush1.msra.mxu0 %v701
          %728 = vmatprep.subr.mxu0 0.0
          %729 = vmatpush1.msra.mxu0 0.0
          %730 = vmatprep.subr.mxu0 0.0
          %731 = vmatpush1.msra.mxu0 0.0
          %732 = vmatprep.subr.mxu0 0.0
          %733 = vmatpush1.msra.mxu0 0.0
          %734 = vmatprep.subr.mxu0 0.0
          %735 = vmatpush1.msra.mxu0 0.0
          %736 = vmatprep.subr.mxu0 0.0
          %737 = vmatpush1.msra.mxu0 0.0
          %738 = vmatprep.subr.mxu0 0.0
          %739 = vmatpush1.msra.mxu0 0.0
          %740 = vmatprep.subr.mxu0 0.0
          %741 = vmatpush1.msra.mxu0 0.0
          %742 = vmatprep.subr.mxu0 0.0
          %743 = vmatpush1.msra.mxu0 0.0
          %744 = vmatprep.subr.mxu0 0.0
          %745 = vmatpush1.msra.mxu0 0.0
          %746 = vmatprep.subr.mxu0 0.0
          %747 = vmatpush1.msra.mxu0 0.0
          %748 = vmatprep.subr.mxu0 0.0
          %749 = vmatpush1.msra.mxu0 0.0
          %750 = vmatprep.subr.mxu0 0.0
          %751 = vmatpush1.msra.mxu0 0.0
          %752 = vmatprep.subr.mxu0 0.0
          %753 = vmatpush1.msra.mxu0 0.0
          %754 = vmatprep.subr.mxu0 0.0
          %755 = vmatpush1.msra.mxu0 0.0
          %756 = vmatprep.subr.mxu0 0.0
          %757 = vmatpush1.msra.mxu0 0.0
          %758 = vmatprep.subr.mxu0 0.0
          %759 = vmatpush1.msra.mxu0 0.0
          %760 = vmatprep.subr.mxu0 0.0
          %761 = vmatpush1.msra.mxu0 0.0
          %762 = vmatprep.subr.mxu0 0.0
          %763 = vmatpush1.msra.mxu0 0.0
          %764 = vmatprep.subr.mxu0 0.0
          %765 = vmatpush1.msra.mxu0 0.0
          %766 = vmatprep.subr.mxu0 0.0
          %767 = vmatpush1.msra.mxu0 0.0
          %768 = vmatprep.subr.mxu0 0.0
          %769 = vmatpush1.msra.mxu0 0.0
          %770 = vmatprep.subr.mxu0 0.0
          %771 = vmatpush1.msra.mxu0 0.0
          %772 = vmatprep.subr.mxu0 0.0
          %773 = vmatpush1.msra.mxu0 0.0
          %774 = vmatprep.subr.mxu0 0.0
          %775 = vmatpush1.msra.mxu0 0.0
          %776 = vmatprep.mubr.f32.mxu0 0.0
          %777 = vmatmul.mubr.f32.gmra.mrb[0].mxu0 %v710
          %v778 = vpop.f32.mrb[0].mxu0
          %v779 = vadd.f32 %v707, %v778
          %v780 = vpop.f32.mrb[0].mxu0
          %781 = vdwg.mxu0
          %782 = vst [vmem:[#allocation3] sm:$0xff] %v779
          %783 = vst [vmem:[#allocation4] sm:$0x1] 0.0
          %784 = vst [vmem:[#allocation5] sm:$0x1] 0.0
          %785 = vst.msk [vmem:[#allocation6] sm:$0xff] %vm618, 0.0
        $region96: #{tpu_custom_call.1} parent=79 // pred_fallthru
          _
        %v786 = vlaneseq
        %v787 = vand.u32 %v786, 127
        %v788 = vld [vmem:[%s584] sm:$0xff]
        %v789 = vld [vmem:[%s584 + $0x8] sm:$0xff]
        %v790 = vld [vmem:[%s584 + $0x10] sm:$0xff]
        %v791 = vld [vmem:[%s584 + $0x18] sm:$0xff]
        %v792 = vld [vmem:[%s584 + $0x20] sm:$0xff]
        %v793 = vld [vmem:[%s584 + $0x28] sm:$0xff]
        %v794 = vld [vmem:[%s584 + $0x30] sm:$0xff]
        %v795 = vld [vmem:[%s584 + $0x38] sm:$0xff]
        %v796 = vld [vmem:[%s584 + $0x40] sm:$0xff]
        %v797 = vld [vmem:[%s584 + $0x48] sm:$0xff]
        %v798 = vld [vmem:[%s584 + $0x50] sm:$0xff]
        %v799 = vld [vmem:[%s584 + $0x58] sm:$0xff]
        %v800 = vld [vmem:[%s584 + $0x60] sm:$0xff]
        %v801 = vld [vmem:[%s584 + $0x68] sm:$0xff]
        %v802 = vld [vmem:[%s584 + $0x70] sm:$0xff]
        %v803 = vld [vmem:[%s584 + $0x78] sm:$0xff]
        %804 = vset.pattern.permute.xlu0 0
        %805 = vperm.xlu0 %804, %v788
        %v806 = vpop.permute.xlu0 %805
        %807 = vset.pattern.permute.xlu0 0
        %808 = vperm.xlu0 %807, %v789
        %v809 = vpop.permute.xlu0 %808
        %810 = vset.pattern.permute.xlu0 0
        %811 = vperm.xlu0 %810, %v790
        %v812 = vpop.permute.xlu0 %811
        %813 = vset.pattern.permute.xlu0 0
        %814 = vperm.xlu0 %813, %v791
        %v815 = vpop.permute.xlu0 %814
        %816 = vset.pattern.permute.xlu0 0
        %817 = vperm.xlu0 %816, %v792
        %v818 = vpop.permute.xlu0 %817
        %819 = vset.pattern.permute.xlu0 0
        %820 = vperm.xlu0 %819, %v793
        %v821 = vpop.permute.xlu0 %820
        %822 = vset.pattern.permute.xlu0 0
        %823 = vperm.xlu0 %822, %v794
        %v824 = vpop.permute.xlu0 %823
        %825 = vset.pattern.permute.xlu0 0
        %826 = vperm.xlu0 %825, %v795
        %v827 = vpop.permute.xlu0 %826
        %828 = vset.pattern.permute.xlu0 0
        %829 = vperm.xlu0 %828, %v796
        %v830 = vpop.permute.xlu0 %829
        %831 = vset.pattern.permute.xlu0 0
        %832 = vperm.xlu0 %831, %v797
        %v833 = vpop.permute.xlu0 %832
        %834 = vset.pattern.permute.xlu0 0
        %835 = vperm.xlu0 %834, %v798
        %v836 = vpop.permute.xlu0 %835
        %837 = vset.pattern.permute.xlu0 0
        %838 = vperm.xlu0 %837, %v799
        %v839 = vpop.permute.xlu0 %838
        %840 = vset.pattern.permute.xlu0 0
        %841 = vperm.xlu0 %840, %v800
        %v842 = vpop.permute.xlu0 %841
        %843 = vset.pattern.permute.xlu0 0
        %844 = vperm.xlu0 %843, %v801
        %v845 = vpop.permute.xlu0 %844
        %846 = vset.pattern.permute.xlu0 0
        %847 = vperm.xlu0 %846, %v802
        %v848 = vpop.permute.xlu0 %847
        %849 = vset.pattern.permute.xlu0 0
        %850 = vperm.xlu0 %849, %v803
        %v851 = vpop.permute.xlu0 %850
        %vm852 = vcmp.eq.s32.totalorder %v787, %v806
        %vm853 = vcmp.eq.s32.totalorder %v787, %v809
        %vm854 = vcmp.eq.s32.totalorder %v787, %v812
        %vm855 = vcmp.eq.s32.totalorder %v787, %v815
        %vm856 = vcmp.eq.s32.totalorder %v787, %v818
        %vm857 = vcmp.eq.s32.totalorder %v787, %v821
        %vm858 = vcmp.eq.s32.totalorder %v787, %v824
        %vm859 = vcmp.eq.s32.totalorder %v787, %v827
        %vm860 = vcmp.eq.s32.totalorder %v787, %v830
        %vm861 = vcmp.eq.s32.totalorder %v787, %v833
        %vm862 = vcmp.eq.s32.totalorder %v787, %v836
        %vm863 = vcmp.eq.s32.totalorder %v787, %v839
        %vm864 = vcmp.eq.s32.totalorder %v787, %v842
        %vm865 = vcmp.eq.s32.totalorder %v787, %v845
        %vm866 = vcmp.eq.s32.totalorder %v787, %v848
        %vm867 = vcmp.eq.s32.totalorder %v787, %v851
        %v868 = vsel %vm852, 1, 0
        %v869 = vsel %vm853, 1, 0
        %v870 = vsel %vm854, 1, 0
        %v871 = vsel %vm855, 1, 0
        %v872 = vsel %vm856, 1, 0
        %v873 = vsel %vm857, 1, 0
        %v874 = vsel %vm858, 1, 0
        %v875 = vsel %vm859, 1, 0
        %v876 = vsel %vm860, 1, 0
        %v877 = vsel %vm861, 1, 0
        %v878 = vsel %vm862, 1, 0
        %v879 = vsel %vm863, 1, 0
        %v880 = vsel %vm864, 1, 0
        %v881 = vsel %vm865, 1, 0
        %v882 = vsel %vm866, 1, 0
        %v883 = vsel %vm867, 1, 0
        %v884 = vcvt.s32.f32 %v868
        %v885 = vcvt.s32.f32 %v869
        %v886 = vcvt.s32.f32 %v870
        %v887 = vcvt.s32.f32 %v871
        %v888 = vcvt.s32.f32 %v872
        %v889 = vcvt.s32.f32 %v873
        %v890 = vcvt.s32.f32 %v874
        %v891 = vcvt.s32.f32 %v875
        %v892 = vcvt.s32.f32 %v876
        %v893 = vcvt.s32.f32 %v877
        %v894 = vcvt.s32.f32 %v878
        %v895 = vcvt.s32.f32 %v879
        %v896 = vcvt.s32.f32 %v880
        %v897 = vcvt.s32.f32 %v881
        %v898 = vcvt.s32.f32 %v882
        %v899 = vcvt.s32.f32 %v883
        %v900 = vld [vmem:[%s590] sm:$0xff]
        %v901 = vld [vmem:[%s590 + $0x8] sm:$0xff]
        %v902 = vld [vmem:[%s590 + $0x10] sm:$0xff]
        %v903 = vld [vmem:[%s590 + $0x18] sm:$0xff]
        %v904 = vld [vmem:[%s590 + $0x20] sm:$0xff]
        %v905 = vld [vmem:[%s590 + $0x28] sm:$0xff]
        %v906 = vld [vmem:[%s590 + $0x30] sm:$0xff]
        %v907 = vld [vmem:[%s590 + $0x38] sm:$0xff]
        %v908 = vld [vmem:[%s590 + $0x40] sm:$0xff]
        %v909 = vld [vmem:[%s590 + $0x48] sm:$0xff]
        %v910 = vld [vmem:[%s590 + $0x50] sm:$0xff]
        %v911 = vld [vmem:[%s590 + $0x58] sm:$0xff]
        %v912 = vld [vmem:[%s590 + $0x60] sm:$0xff]
        %v913 = vld [vmem:[%s590 + $0x68] sm:$0xff]
        %v914 = vld [vmem:[%s590 + $0x70] sm:$0xff]
        %v915 = vld [vmem:[%s590 + $0x78] sm:$0xff]
        %916 = vset.pattern.permute.xlu0 0
        %917 = vperm.xlu0 %916, %v900
        %v918 = vpop.permute.xlu0 %917
        %919 = vset.pattern.permute.xlu0 0
        %920 = vperm.xlu0 %919, %v901
        %v921 = vpop.permute.xlu0 %920
        %922 = vset.pattern.permute.xlu0 0
        %923 = vperm.xlu0 %922, %v902
        %v924 = vpop.permute.xlu0 %923
        %925 = vset.pattern.permute.xlu0 0
        %926 = vperm.xlu0 %925, %v903
        %v927 = vpop.permute.xlu0 %926
        %928 = vset.pattern.permute.xlu0 0
        %929 = vperm.xlu0 %928, %v904
        %v930 = vpop.permute.xlu0 %929
        %931 = vset.pattern.permute.xlu0 0
        %932 = vperm.xlu0 %931, %v905
        %v933 = vpop.permute.xlu0 %932
        %934 = vset.pattern.permute.xlu0 0
        %935 = vperm.xlu0 %934, %v906
        %v936 = vpop.permute.xlu0 %935
        %937 = vset.pattern.permute.xlu0 0
        %938 = vperm.xlu0 %937, %v907
        %v939 = vpop.permute.xlu0 %938
        %940 = vset.pattern.permute.xlu0 0
        %941 = vperm.xlu0 %940, %v908
        %v942 = vpop.permute.xlu0 %941
        %943 = vset.pattern.permute.xlu0 0
        %944 = vperm.xlu0 %943, %v909
        %v945 = vpop.permute.xlu0 %944
        %946 = vset.pattern.permute.xlu0 0
        %947 = vperm.xlu0 %946, %v910
        %v948 = vpop.permute.xlu0 %947
        %949 = vset.pattern.permute.xlu0 0
        %950 = vperm.xlu0 %949, %v911
        %v951 = vpop.permute.xlu0 %950
        %952 = vset.pattern.permute.xlu0 0
        %953 = vperm.xlu0 %952, %v912
        %v954 = vpop.permute.xlu0 %953
        %955 = vset.pattern.permute.xlu0 0
        %956 = vperm.xlu0 %955, %v913
        %v957 = vpop.permute.xlu0 %956
        %958 = vset.pattern.permute.xlu0 0
        %959 = vperm.xlu0 %958, %v914
        %v960 = vpop.permute.xlu0 %959
        %961 = vset.pattern.permute.xlu0 0
        %962 = vperm.xlu0 %961, %v915
        %v963 = vpop.permute.xlu0 %962
        %vm964 = vcmp.eq.s32.totalorder %v787, %v918
        %vm965 = vcmp.eq.s32.totalorder %v787, %v921
        %vm966 = vcmp.eq.s32.totalorder %v787, %v924
        %vm967 = vcmp.eq.s32.totalorder %v787, %v927
        %vm968 = vcmp.eq.s32.totalorder %v787, %v930
        %vm969 = vcmp.eq.s32.totalorder %v787, %v933
        %vm970 = vcmp.eq.s32.totalorder %v787, %v936
        %vm971 = vcmp.eq.s32.totalorder %v787, %v939
        %vm972 = vcmp.eq.s32.totalorder %v787, %v942
        %vm973 = vcmp.eq.s32.totalorder %v787, %v945
        %vm974 = vcmp.eq.s32.totalorder %v787, %v948
        %vm975 = vcmp.eq.s32.totalorder %v787, %v951
        %vm976 = vcmp.eq.s32.totalorder %v787, %v954
        %vm977 = vcmp.eq.s32.totalorder %v787, %v957
        %vm978 = vcmp.eq.s32.totalorder %v787, %v960
        %vm979 = vcmp.eq.s32.totalorder %v787, %v963
        %v980 = vsel %vm964, 1, 0
        %v981 = vsel %vm965, 1, 0
        %v982 = vsel %vm966, 1, 0
        %v983 = vsel %vm967, 1, 0
        %v984 = vsel %vm968, 1, 0
        %v985 = vsel %vm969, 1, 0
        %v986 = vsel %vm970, 1, 0
        %v987 = vsel %vm971, 1, 0
        %v988 = vsel %vm972, 1, 0
        %v989 = vsel %vm973, 1, 0
        %v990 = vsel %vm974, 1, 0
        %v991 = vsel %vm975, 1, 0
        %v992 = vsel %vm976, 1, 0
        %v993 = vsel %vm977, 1, 0
        %v994 = vsel %vm978, 1, 0
        %v995 = vsel %vm979, 1, 0
        %v996 = vcvt.s32.f32 %v980
        %v997 = vcvt.s32.f32 %v981
        %v998 = vcvt.s32.f32 %v982
        %v999 = vcvt.s32.f32 %v983
        %v1000 = vcvt.s32.f32 %v984
        %v1001 = vcvt.s32.f32 %v985
        %v1002 = vcvt.s32.f32 %v986
        %v1003 = vcvt.s32.f32 %v987
        %v1004 = vcvt.s32.f32 %v988
        %v1005 = vcvt.s32.f32 %v989
        %v1006 = vcvt.s32.f32 %v990
        %v1007 = vcvt.s32.f32 %v991
        %v1008 = vcvt.s32.f32 %v992
        %v1009 = vcvt.s32.f32 %v993
        %v1010 = vcvt.s32.f32 %v994
        %v1011 = vcvt.s32.f32 %v995
        %v1012 = vld [vmem:[%s578] sm:$0xff]
        %v1013 = vld [vmem:[%s578 + $0x8] sm:$0xff]
        %v1014 = vld [vmem:[%s578 + $0x10] sm:$0xff]
        %v1015 = vld [vmem:[%s578 + $0x18] sm:$0xff]
        %v1016 = vld [vmem:[%s578 + $0x20] sm:$0xff]
        %v1017 = vld [vmem:[%s578 + $0x28] sm:$0xff]
        %v1018 = vld [vmem:[%s578 + $0x30] sm:$0xff]
        %v1019 = vld [vmem:[%s578 + $0x38] sm:$0xff]
        %v1020 = vld [vmem:[%s578 + $0x40] sm:$0xff]
        %v1021 = vld [vmem:[%s578 + $0x48] sm:$0xff]
        %v1022 = vld [vmem:[%s578 + $0x50] sm:$0xff]
        %v1023 = vld [vmem:[%s578 + $0x58] sm:$0xff]
        %v1024 = vld [vmem:[%s578 + $0x60] sm:$0xff]
        %v1025 = vld [vmem:[%s578 + $0x68] sm:$0xff]
        %v1026 = vld [vmem:[%s578 + $0x70] sm:$0xff]
        %v1027 = vld [vmem:[%s578 + $0x78] sm:$0xff]
        %v1028 = vld [vmem:[%s9] sm:$0xff]
        %v1029 = vld [vmem:[%s9 + $0x8] sm:$0xff]
        %v1030 = vld [vmem:[%s9 + $0x10] sm:$0xff]
        %v1031 = vld [vmem:[%s9 + $0x18] sm:$0xff]
        %v1032 = vld [vmem:[%s9 + $0x20] sm:$0xff]
        %v1033 = vld [vmem:[%s9 + $0x28] sm:$0xff]
        %v1034 = vld [vmem:[%s9 + $0x30] sm:$0xff]
        %v1035 = vld [vmem:[%s9 + $0x38] sm:$0xff]
        %v1036 = vld [vmem:[%s9 + $0x40] sm:$0xff]
        %v1037 = vld [vmem:[%s9 + $0x48] sm:$0xff]
        %v1038 = vld [vmem:[%s9 + $0x50] sm:$0xff]
        %v1039 = vld [vmem:[%s9 + $0x58] sm:$0xff]
        %v1040 = vld [vmem:[%s9 + $0x60] sm:$0xff]
        %v1041 = vld [vmem:[%s9 + $0x68] sm:$0xff]
        %v1042 = vld [vmem:[%s9 + $0x70] sm:$0xff]
        %v1043 = vld [vmem:[%s9 + $0x78] sm:$0xff]
        %v1044 = vld [vmem:[%s10] sm:$0x1]
        %v1046 = vlaneseq
        %v1047 = vshrl.u32 %v1046, 7
        %v1048 = vsub.s32 0, %v1047
        %v1049 = vrot.slane %v1044, %v1048
        %1051 = vmatprep.subr.mxu0 0.0
        %1052 = vmatpush1.msra.mxu0 %v1028
        %1053 = vmatprep.subr.mxu0 0.0
        %1054 = vmatpush1.msra.mxu0 %v1029
        %1055 = vmatprep.subr.mxu0 0.0
        %1056 = vmatpush1.msra.mxu0 %v1030
        %1057 = vmatprep.subr.mxu0 0.0
        %1058 = vmatpush1.msra.mxu0 %v1031
        %1059 = vmatprep.subr.mxu0 0.0
        %1060 = vmatpush1.msra.mxu0 %v1032
        %1061 = vmatprep.subr.mxu0 0.0
        %1062 = vmatpush1.msra.mxu0 %v1033
        %1063 = vmatprep.subr.mxu0 0.0
        %1064 = vmatpush1.msra.mxu0 %v1034
        %1065 = vmatprep.subr.mxu0 0.0
        %1066 = vmatpush1.msra.mxu0 %v1035
        %1067 = vmatprep.subr.mxu0 0.0
        %1068 = vmatpush1.msra.mxu0 %v1036
        %1069 = vmatprep.subr.mxu0 0.0
        %1070 = vmatpush1.msra.mxu0 %v1037
        %1071 = vmatprep.subr.mxu0 0.0
        %1072 = vmatpush1.msra.mxu0 %v1038
        %1073 = vmatprep.subr.mxu0 0.0
        %1074 = vmatpush1.msra.mxu0 %v1039
        %1075 = vmatprep.subr.mxu0 0.0
        %1076 = vmatpush1.msra.mxu0 %v1040
        %1077 = vmatprep.subr.mxu0 0.0
        %1078 = vmatpush1.msra.mxu0 %v1041
        %1079 = vmatprep.subr.mxu0 0.0
        %1080 = vmatpush1.msra.mxu0 %v1042
        %1081 = vmatprep.subr.mxu0 0.0
        %1082 = vmatpush1.msra.mxu0 %v1043
        %1083 = vmatprep.subr.mxu0 0.0
        %1084 = vmatpush1.msra.mxu0 0.0
        %1085 = vmatprep.subr.mxu0 0.0
        %1086 = vmatpush1.msra.mxu0 0.0
        %1087 = vmatprep.subr.mxu0 0.0
        %1088 = vmatpush1.msra.mxu0 0.0
        %1089 = vmatprep.subr.mxu0 0.0
        %1090 = vmatpush1.msra.mxu0 0.0
        %1091 = vmatprep.subr.mxu0 0.0
        %1092 = vmatpush1.msra.mxu0 0.0
        %1093 = vmatprep.subr.mxu0 0.0
        %1094 = vmatpush1.msra.mxu0 0.0
        %1095 = vmatprep.subr.mxu0 0.0
        %1096 = vmatpush1.msra.mxu0 0.0
        %1097 = vmatprep.subr.mxu0 0.0
        %1098 = vmatpush1.msra.mxu0 0.0
        %1099 = vmatprep.subr.mxu0 0.0
        %1100 = vmatpush1.msra.mxu0 0.0
        %1101 = vmatprep.subr.mxu0 0.0
        %1102 = vmatpush1.msra.mxu0 0.0
        %1103 = vmatprep.subr.mxu0 0.0
        %1104 = vmatpush1.msra.mxu0 0.0
        %1105 = vmatprep.subr.mxu0 0.0
        %1106 = vmatpush1.msra.mxu0 0.0
        %1107 = vmatprep.subr.mxu0 0.0
        %1108 = vmatpush1.msra.mxu0 0.0
        %1109 = vmatprep.subr.mxu0 0.0
        %1110 = vmatpush1.msra.mxu0 0.0
        %1111 = vmatprep.subr.mxu0 0.0
        %1112 = vmatpush1.msra.mxu0 0.0
        %1113 = vmatprep.subr.mxu0 0.0
        %1114 = vmatpush1.msra.mxu0 0.0
        %1115 = vmatprep.mubr.f32.mxu0 0.0
        %1116 = vmatmul.mubr.f32.gmra.mrb[0].mxu0 %v1012
        %v1117 = vpop.f32.mrb[0].mxu0
        %v1118 = vadd.f32 %v1049, %v1117
        %v1119 = vpop.f32.mrb[0].mxu0
        %1120 = vmatprep.mubr.f32.mxu0 0.0
        %1121 = vmatmul.mubr.f32.gmra.mrb[0].mxu0 %v1013
        %v1122 = vpop.f32.mrb[0].mxu0
        %v1123 = vadd.f32 %v1049, %v1122
        %v1124 = vpop.f32.mrb[0].mxu0
        %1125 = vmatprep.mubr.f32.mxu0 0.0
        %1126 = vmatmul.mubr.f32.gmra.mrb[0].mxu0 %v1014
        %v1127 = vpop.f32.mrb[0].mxu0
        %v1128 = vadd.f32 %v1049, %v1127
        %v1129 = vpop.f32.mrb[0].mxu0
        %1130 = vmatprep.mubr.f32.mxu0 0.0
        %1131 = vmatmul.mubr.f32.gmra.mrb[0].mxu0 %v1015
        %v1132 = vpop.f32.mrb[0].mxu0
        %v1133 = vadd.f32 %v1049, %v1132
        %v1134 = vpop.f32.mrb[0].mxu0
        %1135 = vmatprep.mubr.f32.mxu0 0.0
        %1136 = vmatmul.mubr.f32.gmra.mrb[0].mxu0 %v1016
        %v1137 = vpop.f32.mrb[0].mxu0
        %v1138 = vadd.f32 %v1049, %v1137
        %v1139 = vpop.f32.mrb[0].mxu0
        %1140 = vmatprep.mubr.f32.mxu0 0.0
        %1141 = vmatmul.mubr.f32.gmra.mrb[0].mxu0 %v1017
        %v1142 = vpop.f32.mrb[0].mxu0
        %v1143 = vadd.f32 %v1049, %v1142
        %v1144 = vpop.f32.mrb[0].mxu0
        %1145 = vmatprep.mubr.f32.mxu0 0.0
        %1146 = vmatmul.mubr.f32.gmra.mrb[0].mxu0 %v1018
        %v1147 = vpop.f32.mrb[0].mxu0
        %v1148 = vadd.f32 %v1049, %v1147
        %v1149 = vpop.f32.mrb[0].mxu0
        %1150 = vmatprep.mubr.f32.mxu0 0.0
        %1151 = vmatmul.mubr.f32.gmra.mrb[0].mxu0 %v1019
        %v1152 = vpop.f32.mrb[0].mxu0
        %v1153 = vadd.f32 %v1049, %v1152
        %v1154 = vpop.f32.mrb[0].mxu0
        %1155 = vmatprep.mubr.f32.mxu0 0.0
        %1156 = vmatmul.mubr.f32.gmra.mrb[0].mxu0 %v1020
        %v1157 = vpop.f32.mrb[0].mxu0
        %v1158 = vadd.f32 %v1049, %v1157
        %v1159 = vpop.f32.mrb[0].mxu0
        %1160 = vmatprep.mubr.f32.mxu0 0.0
        %1161 = vmatmul.mubr.f32.gmra.mrb[0].mxu0 %v1021
        %v1162 = vpop.f32.mrb[0].mxu0
        %v1163 = vadd.f32 %v1049, %v1162
        %v1164 = vpop.f32.mrb[0].mxu0
        %1165 = vmatprep.mubr.f32.mxu0 0.0
        %1166 = vmatmul.mubr.f32.gmra.mrb[0].mxu0 %v1022
        %v1167 = vpop.f32.mrb[0].mxu0
        %v1168 = vadd.f32 %v1049, %v1167
        %v1169 = vpop.f32.mrb[0].mxu0
        %1170 = vmatprep.mubr.f32.mxu0 0.0
        %1171 = vmatmul.mubr.f32.gmra.mrb[0].mxu0 %v1023
        %v1172 = vpop.f32.mrb[0].mxu0
        %v1173 = vadd.f32 %v1049, %v1172
        %v1174 = vpop.f32.mrb[0].mxu0
        %1175 = vmatprep.mubr.f32.mxu0 0.0
        %1176 = vmatmul.mubr.f32.gmra.mrb[0].mxu0 %v1024
        %v1177 = vpop.f32.mrb[0].mxu0
        %v1178 = vadd.f32 %v1049, %v1177
        %v1179 = vpop.f32.mrb[0].mxu0
        %1180 = vmatprep.mubr.f32.mxu0 0.0
        %1181 = vmatmul.mubr.f32.gmra.mrb[0].mxu0 %v1025
        %v1182 = vpop.f32.mrb[0].mxu0
        %v1183 = vadd.f32 %v1049, %v1182
        %v1184 = vpop.f32.mrb[0].mxu0
        %1185 = vmatprep.mubr.f32.mxu0 0.0
        %1186 = vmatmul.mubr.f32.gmra.mrb[0].mxu0 %v1026
        %v1187 = vpop.f32.mrb[0].mxu0
        %v1188 = vadd.f32 %v1049, %v1187
        %v1189 = vpop.f32.mrb[0].mxu0
        %1190 = vmatprep.mubr.f32.mxu0 0.0
        %1191 = vmatmul.mubr.f32.gmra.mrb[0].mxu0 %v1027
        %v1192 = vpop.f32.mrb[0].mxu0
        %v1193 = vadd.f32 %v1049, %v1192
        %v1194 = vpop.f32.mrb[0].mxu0
        %1195 = vdwg.mxu0
        %v1196 = vld [vmem:[#allocation2] sm:$0xff]
        %vm1197 = vcmask 64512
        %v1199 = vsel %vm1197, %v884, 0
        %v1202 = vsel %vm1197, %v885, 0
        %v1205 = vsel %vm1197, %v886, 0
        %v1208 = vsel %vm1197, %v887, 0
        %v1211 = vsel %vm1197, %v888, 0
        %v1214 = vsel %vm1197, %v889, 0
        %v1217 = vsel %vm1197, %v890, 0
        %v1220 = vsel %vm1197, %v891, 0
        %v1223 = vsel %vm1197, %v892, 0
        %v1226 = vsel %vm1197, %v893, 0
        %v1229 = vsel %vm1197, %v894, 0
        %v1232 = vsel %vm1197, %v895, 0
        %v1235 = vsel %vm1197, %v896, 0
        %v1238 = vsel %vm1197, %v897, 0
        %v1241 = vsel %vm1197, %v898, 0
        %v1244 = vsel %vm1197, %v899, 0
        %1246 = vmatprep.subr.mxu0 0.0
        %1247 = vmatpush1.msra.mxu0 %v1196
        %1248 = vmatprep.subr.mxu0 0.0
        %1249 = vmatpush1.msra.mxu0 0.0
        %1250 = vmatprep.subr.mxu0 0.0
        %1251 = vmatpush1.msra.mxu0 0.0
        %1252 = vmatprep.subr.mxu0 0.0
        %1253 = vmatpush1.msra.mxu0 0.0
        %1254 = vmatprep.subr.mxu0 0.0
        %1255 = vmatpush1.msra.mxu0 0.0
        %1256 = vmatprep.subr.mxu0 0.0
        %1257 = vmatpush1.msra.mxu0 0.0
        %1258 = vmatprep.subr.mxu0 0.0
        %1259 = vmatpush1.msra.mxu0 0.0
        %1260 = vmatprep.subr.mxu0 0.0
        %1261 = vmatpush1.msra.mxu0 0.0
        %1262 = vmatprep.subr.mxu0 0.0
        %1263 = vmatpush1.msra.mxu0 0.0
        %1264 = vmatprep.subr.mxu0 0.0
        %1265 = vmatpush1.msra.mxu0 0.0
        %1266 = vmatprep.subr.mxu0 0.0
        %1267 = vmatpush1.msra.mxu0 0.0
        %1268 = vmatprep.subr.mxu0 0.0
        %1269 = vmatpush1.msra.mxu0 0.0
        %1270 = vmatprep.subr.mxu0 0.0
        %1271 = vmatpush1.msra.mxu0 0.0
        %1272 = vmatprep.subr.mxu0 0.0
        %1273 = vmatpush1.msra.mxu0 0.0
        %1274 = vmatprep.subr.mxu0 0.0
        %1275 = vmatpush1.msra.mxu0 0.0
        %1276 = vmatprep.subr.mxu0 0.0
        %1277 = vmatpush1.msra.mxu0 0.0
        %1278 = vmatprep.subr.mxu0 0.0
        %1279 = vmatpush1.msra.mxu0 0.0
        %1280 = vmatprep.subr.mxu0 0.0
        %1281 = vmatpush1.msra.mxu0 0.0
        %1282 = vmatprep.subr.mxu0 0.0
        %1283 = vmatpush1.msra.mxu0 0.0
        %1284 = vmatprep.subr.mxu0 0.0
        %1285 = vmatpush1.msra.mxu0 0.0
        %1286 = vmatprep.subr.mxu0 0.0
        %1287 = vmatpush1.msra.mxu0 0.0
        %1288 = vmatprep.subr.mxu0 0.0
        %1289 = vmatpush1.msra.mxu0 0.0
        %1290 = vmatprep.subr.mxu0 0.0
        %1291 = vmatpush1.msra.mxu0 0.0
        %1292 = vmatprep.subr.mxu0 0.0
        %1293 = vmatpush1.msra.mxu0 0.0
        %1294 = vmatprep.subr.mxu0 0.0
        %1295 = vmatpush1.msra.mxu0 0.0
        %1296 = vmatprep.subr.mxu0 0.0
        %1297 = vmatpush1.msra.mxu0 0.0
        %1298 = vmatprep.subr.mxu0 0.0
        %1299 = vmatpush1.msra.mxu0 0.0
        %1300 = vmatprep.subr.mxu0 0.0
        %1301 = vmatpush1.msra.mxu0 0.0
        %1302 = vmatprep.subr.mxu0 0.0
        %1303 = vmatpush1.msra.mxu0 0.0
        %1304 = vmatprep.subr.mxu0 0.0
        %1305 = vmatpush1.msra.mxu0 0.0
        %1306 = vmatprep.subr.mxu0 0.0
        %1307 = vmatpush1.msra.mxu0 0.0
        %1308 = vmatprep.subr.mxu0 0.0
        %1309 = vmatpush1.msra.mxu0 0.0
        %1310 = vmatprep.mubr.f32.mxu0 0.0
        %1311 = vmatmul.mubr.f32.gmra.mrb[0].mxu0 %v1199
        %v1312 = vpop.f32.mrb[0].mxu0
        %v1313 = vadd.f32 0.0, %v1312
        %v1314 = vpop.f32.mrb[0].mxu0
        %1315 = vmatprep.mubr.f32.mxu0 0.0
        %1316 = vmatmul.mubr.f32.gmra.mrb[0].mxu0 %v1202
        %v1317 = vpop.f32.mrb[0].mxu0
        %v1318 = vadd.f32 0.0, %v1317
        %v1319 = vpop.f32.mrb[0].mxu0
        %1320 = vmatprep.mubr.f32.mxu0 0.0
        %1321 = vmatmul.mubr.f32.gmra.mrb[0].mxu0 %v1205
        %v1322 = vpop.f32.mrb[0].mxu0
        %v1323 = vadd.f32 0.0, %v1322
        %v1324 = vpop.f32.mrb[0].mxu0
        %1325 = vmatprep.mubr.f32.mxu0 0.0
        %1326 = vmatmul.mubr.f32.gmra.mrb[0].mxu0 %v1208
        %v1327 = vpop.f32.mrb[0].mxu0
        %v1328 = vadd.f32 0.0, %v1327
        %v1329 = vpop.f32.mrb[0].mxu0
        %1330 = vmatprep.mubr.f32.mxu0 0.0
        %1331 = vmatmul.mubr.f32.gmra.mrb[0].mxu0 %v1211
        %v1332 = vpop.f32.mrb[0].mxu0
        %v1333 = vadd.f32 0.0, %v1332
        %v1334 = vpop.f32.mrb[0].mxu0
        %1335 = vmatprep.mubr.f32.mxu0 0.0
        %1336 = vmatmul.mubr.f32.gmra.mrb[0].mxu0 %v1214
        %v1337 = vpop.f32.mrb[0].mxu0
        %v1338 = vadd.f32 0.0, %v1337
        %v1339 = vpop.f32.mrb[0].mxu0
        %1340 = vmatprep.mubr.f32.mxu0 0.0
        %1341 = vmatmul.mubr.f32.gmra.mrb[0].mxu0 %v1217
        %v1342 = vpop.f32.mrb[0].mxu0
        %v1343 = vadd.f32 0.0, %v1342
        %v1344 = vpop.f32.mrb[0].mxu0
        %1345 = vmatprep.mubr.f32.mxu0 0.0
        %1346 = vmatmul.mubr.f32.gmra.mrb[0].mxu0 %v1220
        %v1347 = vpop.f32.mrb[0].mxu0
        %v1348 = vadd.f32 0.0, %v1347
        %v1349 = vpop.f32.mrb[0].mxu0
        %1350 = vmatprep.mubr.f32.mxu0 0.0
        %1351 = vmatmul.mubr.f32.gmra.mrb[0].mxu0 %v1223
        %v1352 = vpop.f32.mrb[0].mxu0
        %v1353 = vadd.f32 0.0, %v1352
        %v1354 = vpop.f32.mrb[0].mxu0
        %1355 = vmatprep.mubr.f32.mxu0 0.0
        %1356 = vmatmul.mubr.f32.gmra.mrb[0].mxu0 %v1226
        %v1357 = vpop.f32.mrb[0].mxu0
        %v1358 = vadd.f32 0.0, %v1357
        %v1359 = vpop.f32.mrb[0].mxu0
        %1360 = vmatprep.mubr.f32.mxu0 0.0
        %1361 = vmatmul.mubr.f32.gmra.mrb[0].mxu0 %v1229
        %v1362 = vpop.f32.mrb[0].mxu0
        %v1363 = vadd.f32 0.0, %v1362
        %v1364 = vpop.f32.mrb[0].mxu0
        %1365 = vmatprep.mubr.f32.mxu0 0.0
        %1366 = vmatmul.mubr.f32.gmra.mrb[0].mxu0 %v1232
        %v1367 = vpop.f32.mrb[0].mxu0
        %v1368 = vadd.f32 0.0, %v1367
        %v1369 = vpop.f32.mrb[0].mxu0
        %1370 = vmatprep.mubr.f32.mxu0 0.0
        %1371 = vmatmul.mubr.f32.gmra.mrb[0].mxu0 %v1235
        %v1372 = vpop.f32.mrb[0].mxu0
        %v1373 = vadd.f32 0.0, %v1372
        %v1374 = vpop.f32.mrb[0].mxu0
        %1375 = vmatprep.mubr.f32.mxu0 0.0
        %1376 = vmatmul.mubr.f32.gmra.mrb[0].mxu0 %v1238
        %v1377 = vpop.f32.mrb[0].mxu0
        %v1378 = vadd.f32 0.0, %v1377
        %v1379 = vpop.f32.mrb[0].mxu0
        %1380 = vmatprep.mubr.f32.mxu0 0.0
        %1381 = vmatmul.mubr.f32.gmra.mrb[0].mxu0 %v1241
        %v1382 = vpop.f32.mrb[0].mxu0
        %v1383 = vadd.f32 0.0, %v1382
        %v1384 = vpop.f32.mrb[0].mxu0
        %1385 = vmatprep.mubr.f32.mxu0 0.0
        %1386 = vmatmul.mubr.f32.gmra.mrb[0].mxu0 %v1244
        %v1387 = vpop.f32.mrb[0].mxu0
        %v1388 = vadd.f32 0.0, %v1387
        %v1389 = vpop.f32.mrb[0].mxu0
        %1390 = vdwg.mxu0
        %v1391 = vadd.f32 %v1118, %v1313
        %v1392 = vadd.f32 %v1123, %v1318
        %v1393 = vadd.f32 %v1128, %v1323
        %v1394 = vadd.f32 %v1133, %v1328
        %v1395 = vadd.f32 %v1138, %v1333
        %v1396 = vadd.f32 %v1143, %v1338
        %v1397 = vadd.f32 %v1148, %v1343
        %v1398 = vadd.f32 %v1153, %v1348
        %v1399 = vadd.f32 %v1158, %v1353
        %v1400 = vadd.f32 %v1163, %v1358
        %v1401 = vadd.f32 %v1168, %v1363
        %v1402 = vadd.f32 %v1173, %v1368
        %v1403 = vadd.f32 %v1178, %v1373
        %v1404 = vadd.f32 %v1183, %v1378
        %v1405 = vadd.f32 %v1188, %v1383
        %v1406 = vadd.f32 %v1193, %v1388
        %v1407 = vld [vmem:[#allocation3] sm:$0xff]
        %v1409 = vsel %vm1197, %v996, 0
        %v1412 = vsel %vm1197, %v997, 0
        %v1415 = vsel %vm1197, %v998, 0
        %v1418 = vsel %vm1197, %v999, 0
        %v1421 = vsel %vm1197, %v1000, 0
        %v1424 = vsel %vm1197, %v1001, 0
        %v1427 = vsel %vm1197, %v1002, 0
        %v1430 = vsel %vm1197, %v1003, 0
        %v1433 = vsel %vm1197, %v1004, 0
        %v1436 = vsel %vm1197, %v1005, 0
        %v1439 = vsel %vm1197, %v1006, 0
        %v1442 = vsel %vm1197, %v1007, 0
        %v1445 = vsel %vm1197, %v1008, 0
        %v1448 = vsel %vm1197, %v1009, 0
        %v1451 = vsel %vm1197, %v1010, 0
        %v1454 = vsel %vm1197, %v1011, 0
        %1456 = vmatprep.subr.mxu0 0.0
        %1457 = vmatpush1.msra.mxu0 %v1407
        %1458 = vmatprep.subr.mxu0 0.0
        %1459 = vmatpush1.msra.mxu0 0.0
        %1460 = vmatprep.subr.mxu0 0.0
        %1461 = vmatpush1.msra.mxu0 0.0
        %1462 = vmatprep.subr.mxu0 0.0
        %1463 = vmatpush1.msra.mxu0 0.0
        %1464 = vmatprep.subr.mxu0 0.0
        %1465 = vmatpush1.msra.mxu0 0.0
        %1466 = vmatprep.subr.mxu0 0.0
        %1467 = vmatpush1.msra.mxu0 0.0
        %1468 = vmatprep.subr.mxu0 0.0
        %1469 = vmatpush1.msra.mxu0 0.0
        %1470 = vmatprep.subr.mxu0 0.0
        %1471 = vmatpush1.msra.mxu0 0.0
        %1472 = vmatprep.subr.mxu0 0.0
        %1473 = vmatpush1.msra.mxu0 0.0
        %1474 = vmatprep.subr.mxu0 0.0
        %1475 = vmatpush1.msra.mxu0 0.0
        %1476 = vmatprep.subr.mxu0 0.0
        %1477 = vmatpush1.msra.mxu0 0.0
        %1478 = vmatprep.subr.mxu0 0.0
        %1479 = vmatpush1.msra.mxu0 0.0
        %1480 = vmatprep.subr.mxu0 0.0
        %1481 = vmatpush1.msra.mxu0 0.0
        %1482 = vmatprep.subr.mxu0 0.0
        %1483 = vmatpush1.msra.mxu0 0.0
        %1484 = vmatprep.subr.mxu0 0.0
        %1485 = vmatpush1.msra.mxu0 0.0
        %1486 = vmatprep.subr.mxu0 0.0
        %1487 = vmatpush1.msra.mxu0 0.0
        %1488 = vmatprep.subr.mxu0 0.0
        %1489 = vmatpush1.msra.mxu0 0.0
        %1490 = vmatprep.subr.mxu0 0.0
        %1491 = vmatpush1.msra.mxu0 0.0
        %1492 = vmatprep.subr.mxu0 0.0
        %1493 = vmatpush1.msra.mxu0 0.0
        %1494 = vmatprep.subr.mxu0 0.0
        %1495 = vmatpush1.msra.mxu0 0.0
        %1496 = vmatprep.subr.mxu0 0.0
        %1497 = vmatpush1.msra.mxu0 0.0
        %1498 = vmatprep.subr.mxu0 0.0
        %1499 = vmatpush1.msra.mxu0 0.0
        %1500 = vmatprep.subr.mxu0 0.0
        %1501 = vmatpush1.msra.mxu0 0.0
        %1502 = vmatprep.subr.mxu0 0.0
        %1503 = vmatpush1.msra.mxu0 0.0
        %1504 = vmatprep.subr.mxu0 0.0
        %1505 = vmatpush1.msra.mxu0 0.0
        %1506 = vmatprep.subr.mxu0 0.0
        %1507 = vmatpush1.msra.mxu0 0.0
        %1508 = vmatprep.subr.mxu0 0.0
        %1509 = vmatpush1.msra.mxu0 0.0
        %1510 = vmatprep.subr.mxu0 0.0
        %1511 = vmatpush1.msra.mxu0 0.0
        %1512 = vmatprep.subr.mxu0 0.0
        %1513 = vmatpush1.msra.mxu0 0.0
        %1514 = vmatprep.subr.mxu0 0.0
        %1515 = vmatpush1.msra.mxu0 0.0
        %1516 = vmatprep.subr.mxu0 0.0
        %1517 = vmatpush1.msra.mxu0 0.0
        %1518 = vmatprep.subr.mxu0 0.0
        %1519 = vmatpush1.msra.mxu0 0.0
        %1520 = vmatprep.mubr.f32.mxu0 0.0
        %1521 = vmatmul.mubr.f32.gmra.mrb[0].mxu0 %v1409
        %v1522 = vpop.f32.mrb[0].mxu0
        %v1523 = vadd.f32 0.0, %v1522
        %v1524 = vpop.f32.mrb[0].mxu0
        %1525 = vmatprep.mubr.f32.mxu0 0.0
        %1526 = vmatmul.mubr.f32.gmra.mrb[0].mxu0 %v1412
        %v1527 = vpop.f32.mrb[0].mxu0
        %v1528 = vadd.f32 0.0, %v1527
        %v1529 = vpop.f32.mrb[0].mxu0
        %1530 = vmatprep.mubr.f32.mxu0 0.0
        %1531 = vmatmul.mubr.f32.gmra.mrb[0].mxu0 %v1415
        %v1532 = vpop.f32.mrb[0].mxu0
        %v1533 = vadd.f32 0.0, %v1532
        %v1534 = vpop.f32.mrb[0].mxu0
        %1535 = vmatprep.mubr.f32.mxu0 0.0
        %1536 = vmatmul.mubr.f32.gmra.mrb[0].mxu0 %v1418
        %v1537 = vpop.f32.mrb[0].mxu0
        %v1538 = vadd.f32 0.0, %v1537
        %v1539 = vpop.f32.mrb[0].mxu0
        %1540 = vmatprep.mubr.f32.mxu0 0.0
        %1541 = vmatmul.mubr.f32.gmra.mrb[0].mxu0 %v1421
        %v1542 = vpop.f32.mrb[0].mxu0
        %v1543 = vadd.f32 0.0, %v1542
        %v1544 = vpop.f32.mrb[0].mxu0
        %1545 = vmatprep.mubr.f32.mxu0 0.0
        %1546 = vmatmul.mubr.f32.gmra.mrb[0].mxu0 %v1424
        %v1547 = vpop.f32.mrb[0].mxu0
        %v1548 = vadd.f32 0.0, %v1547
        %v1549 = vpop.f32.mrb[0].mxu0
        %1550 = vmatprep.mubr.f32.mxu0 0.0
        %1551 = vmatmul.mubr.f32.gmra.mrb[0].mxu0 %v1427
        %v1552 = vpop.f32.mrb[0].mxu0
        %v1553 = vadd.f32 0.0, %v1552
        %v1554 = vpop.f32.mrb[0].mxu0
        %1555 = vmatprep.mubr.f32.mxu0 0.0
        %1556 = vmatmul.mubr.f32.gmra.mrb[0].mxu0 %v1430
        %v1557 = vpop.f32.mrb[0].mxu0
        %v1558 = vadd.f32 0.0, %v1557
        %v1559 = vpop.f32.mrb[0].mxu0
        %1560 = vmatprep.mubr.f32.mxu0 0.0
        %1561 = vmatmul.mubr.f32.gmra.mrb[0].mxu0 %v1433
        %v1562 = vpop.f32.mrb[0].mxu0
        %v1563 = vadd.f32 0.0, %v1562
        %v1564 = vpop.f32.mrb[0].mxu0
        %1565 = vmatprep.mubr.f32.mxu0 0.0
        %1566 = vmatmul.mubr.f32.gmra.mrb[0].mxu0 %v1436
        %v1567 = vpop.f32.mrb[0].mxu0
        %v1568 = vadd.f32 0.0, %v1567
        %v1569 = vpop.f32.mrb[0].mxu0
        %1570 = vmatprep.mubr.f32.mxu0 0.0
        %1571 = vmatmul.mubr.f32.gmra.mrb[0].mxu0 %v1439
        %v1572 = vpop.f32.mrb[0].mxu0
        %v1573 = vadd.f32 0.0, %v1572
        %v1574 = vpop.f32.mrb[0].mxu0
        %1575 = vmatprep.mubr.f32.mxu0 0.0
        %1576 = vmatmul.mubr.f32.gmra.mrb[0].mxu0 %v1442
        %v1577 = vpop.f32.mrb[0].mxu0
        %v1578 = vadd.f32 0.0, %v1577
        %v1579 = vpop.f32.mrb[0].mxu0
        %1580 = vmatprep.mubr.f32.mxu0 0.0
        %1581 = vmatmul.mubr.f32.gmra.mrb[0].mxu0 %v1445
        %v1582 = vpop.f32.mrb[0].mxu0
        %v1583 = vadd.f32 0.0, %v1582
        %v1584 = vpop.f32.mrb[0].mxu0
        %1585 = vmatprep.mubr.f32.mxu0 0.0
        %1586 = vmatmul.mubr.f32.gmra.mrb[0].mxu0 %v1448
        %v1587 = vpop.f32.mrb[0].mxu0
        %v1588 = vadd.f32 0.0, %v1587
        %v1589 = vpop.f32.mrb[0].mxu0
        %1590 = vmatprep.mubr.f32.mxu0 0.0
        %1591 = vmatmul.mubr.f32.gmra.mrb[0].mxu0 %v1451
        %v1592 = vpop.f32.mrb[0].mxu0
        %v1593 = vadd.f32 0.0, %v1592
        %v1594 = vpop.f32.mrb[0].mxu0
        %1595 = vmatprep.mubr.f32.mxu0 0.0
        %1596 = vmatmul.mubr.f32.gmra.mrb[0].mxu0 %v1454
        %v1597 = vpop.f32.mrb[0].mxu0
        %v1598 = vadd.f32 0.0, %v1597
        %v1599 = vpop.f32.mrb[0].mxu0
        %1600 = vdwg.mxu0
        %v1601 = vadd.f32 %v1391, %v1523
        %v1602 = vadd.f32 %v1392, %v1528
        %v1603 = vadd.f32 %v1393, %v1533
        %v1604 = vadd.f32 %v1394, %v1538
        %v1605 = vadd.f32 %v1395, %v1543
        %v1606 = vadd.f32 %v1396, %v1548
        %v1607 = vadd.f32 %v1397, %v1553
        %v1608 = vadd.f32 %v1398, %v1558
        %v1609 = vadd.f32 %v1399, %v1563
        %v1610 = vadd.f32 %v1400, %v1568
        %v1611 = vadd.f32 %v1401, %v1573
        %v1612 = vadd.f32 %v1402, %v1578
        %v1613 = vadd.f32 %v1403, %v1583
        %v1614 = vadd.f32 %v1404, %v1588
        %v1615 = vadd.f32 %v1405, %v1593
        %v1616 = vadd.f32 %v1406, %v1598
        %v1617 = vlaneseq
        %v1618 = vshrl.u32 %v1617, 7
        %v1619 = vadd.s32 %v1618, 8
        %v1620 = vadd.s32 %v1618, 16
        %v1621 = vadd.s32 %v1618, 24
        %v1622 = vadd.s32 %v1618, 32
        %v1623 = vadd.s32 %v1618, 40
        %v1624 = vadd.s32 %v1618, 48
        %v1625 = vadd.s32 %v1618, 56
        %v1626 = vadd.s32 %v1618, 64
        %v1627 = vadd.s32 %v1618, 72
        %v1628 = vadd.s32 %v1618, 80
        %v1629 = vadd.s32 %v1618, 88
        %v1630 = vadd.s32 %v1618, 96
        %v1631 = vadd.s32 %v1618, 104
        %v1632 = vadd.s32 %v1618, 112
        %v1633 = vadd.s32 %v1618, 120
        %v1634 = vstv %s595
        %v1635 = vadd.s32 %v1634, %v1618
        %v1636 = vadd.s32 %v1634, %v1619
        %v1637 = vadd.s32 %v1634, %v1620
        %v1638 = vadd.s32 %v1634, %v1621
        %v1639 = vadd.s32 %v1634, %v1622
        %v1640 = vadd.s32 %v1634, %v1623
        %v1641 = vadd.s32 %v1634, %v1624
        %v1642 = vadd.s32 %v1634, %v1625
        %v1643 = vadd.s32 %v1634, %v1626
        %v1644 = vadd.s32 %v1634, %v1627
        %v1645 = vadd.s32 %v1634, %v1628
        %v1646 = vadd.s32 %v1634, %v1629
        %v1647 = vadd.s32 %v1634, %v1630
        %v1648 = vadd.s32 %v1634, %v1631
        %v1649 = vadd.s32 %v1634, %v1632
        %v1650 = vadd.s32 %v1634, %v1633
        %vm1651 = vcmp.lt.s32.totalorder %v1635, 20
        %vm1652 = vcmp.lt.s32.totalorder %v1636, 20
        %vm1653 = vcmp.lt.s32.totalorder %v1637, 20
        %vm1654 = vcmp.lt.s32.totalorder %v1638, 20
        %vm1655 = vcmp.lt.s32.totalorder %v1639, 20
        %vm1656 = vcmp.lt.s32.totalorder %v1640, 20
        %vm1657 = vcmp.lt.s32.totalorder %v1641, 20
        %vm1658 = vcmp.lt.s32.totalorder %v1642, 20
        %vm1659 = vcmp.lt.s32.totalorder %v1643, 20
        %vm1660 = vcmp.lt.s32.totalorder %v1644, 20
        %vm1661 = vcmp.lt.s32.totalorder %v1645, 20
        %vm1662 = vcmp.lt.s32.totalorder %v1646, 20
        %vm1663 = vcmp.lt.s32.totalorder %v1647, 20
        %vm1664 = vcmp.lt.s32.totalorder %v1648, 20
        %vm1665 = vcmp.lt.s32.totalorder %v1649, 20
        %vm1666 = vcmp.lt.s32.totalorder %v1650, 20
        // Predicated region
        $region97: #{tpu_custom_call.1} parent=79 // pred_check
          %p1667 = pneg %p596
        $region98: #{tpu_custom_call.1} parent=79 // pred_check_branch
          %1669 = sbr.rel (%p1667) target = $region100
        $region99: #{tpu_custom_call.1} parent=79 // pred_region
          %v1670 = vsel %vm1651, 1, 0
          %v1671 = vsel %vm1652, 1, 0
          %v1672 = vsel %vm1653, 1, 0
          %v1673 = vsel %vm1654, 1, 0
          %v1674 = vsel %vm1655, 1, 0
          %v1675 = vsel %vm1656, 1, 0
          %v1676 = vsel %vm1657, 1, 0
          %v1677 = vsel %vm1658, 1, 0
          %v1678 = vsel %vm1659, 1, 0
          %v1679 = vsel %vm1660, 1, 0
          %v1680 = vsel %vm1661, 1, 0
          %v1681 = vsel %vm1662, 1, 0
          %v1682 = vsel %vm1663, 1, 0
          %v1683 = vsel %vm1664, 1, 0
          %v1684 = vsel %vm1665, 1, 0
          %v1685 = vsel %vm1666, 1, 0
          %vm1686 = vcmp.eq.s32.totalorder %v1670, 1
          %vm1687 = vcmp.eq.s32.totalorder %v1671, 1
          %vm1688 = vcmp.eq.s32.totalorder %v1672, 1
          %vm1689 = vcmp.eq.s32.totalorder %v1673, 1
          %vm1690 = vcmp.eq.s32.totalorder %v1674, 1
          %vm1691 = vcmp.eq.s32.totalorder %v1675, 1
          %vm1692 = vcmp.eq.s32.totalorder %v1676, 1
          %vm1693 = vcmp.eq.s32.totalorder %v1677, 1
          %vm1694 = vcmp.eq.s32.totalorder %v1678, 1
          %vm1695 = vcmp.eq.s32.totalorder %v1679, 1
          %vm1696 = vcmp.eq.s32.totalorder %v1680, 1
          %vm1697 = vcmp.eq.s32.totalorder %v1681, 1
          %vm1698 = vcmp.eq.s32.totalorder %v1682, 1
          %vm1699 = vcmp.eq.s32.totalorder %v1683, 1
          %vm1700 = vcmp.eq.s32.totalorder %v1684, 1
          %vm1701 = vcmp.eq.s32.totalorder %v1685, 1
          %v1702 = vsel %vm1686, %v1601, 0.0
          %v1703 = vsel %vm1687, %v1602, 0.0
          %v1704 = vsel %vm1688, %v1603, 0.0
          %v1705 = vsel %vm1689, %v1604, 0.0
          %v1706 = vsel %vm1690, %v1605, 0.0
          %v1707 = vsel %vm1691, %v1606, 0.0
          %v1708 = vsel %vm1692, %v1607, 0.0
          %v1709 = vsel %vm1693, %v1608, 0.0
          %v1710 = vsel %vm1694, %v1609, 0.0
          %v1711 = vsel %vm1695, %v1610, 0.0
          %v1712 = vsel %vm1696, %v1611, 0.0
          %v1713 = vsel %vm1697, %v1612, 0.0
          %v1714 = vsel %vm1698, %v1613, 0.0
          %v1715 = vsel %vm1699, %v1614, 0.0
          %v1716 = vsel %vm1700, %v1615, 0.0
          %v1717 = vsel %vm1701, %v1616, 0.0
          %v1718 = vld [vmem:[#allocation4] sm:$0x1]
          %v1719 = vadd.f32 %v1702, %v1703
          %v1720 = vadd.f32 %v1719, %v1704
          %v1721 = vadd.f32 %v1720, %v1705
          %v1722 = vadd.f32 %v1721, %v1706
          %v1723 = vadd.f32 %v1722, %v1707
          %v1724 = vadd.f32 %v1723, %v1708
          %v1725 = vadd.f32 %v1724, %v1709
          %v1726 = vadd.f32 %v1725, %v1710
          %v1727 = vadd.f32 %v1726, %v1711
          %v1728 = vadd.f32 %v1727, %v1712
          %v1729 = vadd.f32 %v1728, %v1713
          %v1730 = vadd.f32 %v1729, %v1714
          %v1731 = vadd.f32 %v1730, %v1715
          %v1732 = vadd.f32 %v1731, %v1716
          %v1733 = vadd.f32 %v1732, %v1717
          %v1734 = vrot.slane %v1733, 4
          %v1735 = vadd.f32 %v1733, %v1734
          %v1736 = vrot.slane %v1735, 2
          %v1737 = vadd.f32 %v1735, %v1736
          %v1738 = vrot.slane %v1737, 1
          %v1739 = vadd.f32 %v1737, %v1738
          %v1740 = vadd.f32 %v1718, %v1739
          %1741 = vst [vmem:[#allocation4] sm:$0x1] %v1740
          %v1742 = vld [vmem:[#allocation5] sm:$0x1]
          %v1743 = vmul.f32 %v1702, %v1702
          %v1744 = vmul.f32 %v1703, %v1703
          %v1745 = vmul.f32 %v1704, %v1704
          %v1746 = vmul.f32 %v1705, %v1705
          %v1747 = vmul.f32 %v1706, %v1706
          %v1748 = vmul.f32 %v1707, %v1707
          %v1749 = vmul.f32 %v1708, %v1708
          %v1750 = vmul.f32 %v1709, %v1709
          %v1751 = vmul.f32 %v1710, %v1710
          %v1752 = vmul.f32 %v1711, %v1711
          %v1753 = vmul.f32 %v1712, %v1712
          %v1754 = vmul.f32 %v1713, %v1713
          %v1755 = vmul.f32 %v1714, %v1714
          %v1756 = vmul.f32 %v1715, %v1715
          %v1757 = vmul.f32 %v1716, %v1716
          %v1758 = vmul.f32 %v1717, %v1717
          %v1759 = vadd.f32 %v1743, %v1744
          %v1760 = vadd.f32 %v1759, %v1745
          %v1761 = vadd.f32 %v1760, %v1746
          %v1762 = vadd.f32 %v1761, %v1747
          %v1763 = vadd.f32 %v1762, %v1748
          %v1764 = vadd.f32 %v1763, %v1749
          %v1765 = vadd.f32 %v1764, %v1750
          %v1766 = vadd.f32 %v1765, %v1751
          %v1767 = vadd.f32 %v1766, %v1752
          %v1768 = vadd.f32 %v1767, %v1753
          %v1769 = vadd.f32 %v1768, %v1754
          %v1770 = vadd.f32 %v1769, %v1755
          %v1771 = vadd.f32 %v1770, %v1756
          %v1772 = vadd.f32 %v1771, %v1757
          %v1773 = vadd.f32 %v1772, %v1758
          %v1774 = vrot.slane %v1773, 4
          %v1775 = vadd.f32 %v1773, %v1774
          %v1776 = vrot.slane %v1775, 2
          %v1777 = vadd.f32 %v1775, %v1776
          %v1778 = vrot.slane %v1777, 1
          %v1779 = vadd.f32 %v1777, %v1778
          %v1780 = vadd.f32 %v1742, %v1779
          %1781 = vst [vmem:[#allocation5] sm:$0x1] %v1780
        $region100: #{tpu_custom_call.1} parent=79 // pred_fallthru
          _
        %p1782 = scmp.eq.s32.totalorder %s33, 1
        %p1783 = pnand %p1782, %p597
        %p1784 = pneg %p1783
        // Predicated region
        $region101: #{tpu_custom_call.1} parent=79 // pred_check
          _
        $region102: #{tpu_custom_call.1} parent=79 // pred_check_branch
          %1786 = sbr.rel (%p1783) target = $region104
        $region103: #{tpu_custom_call.1} parent=79 // pred_region
          %v1787 = vld [vmem:[#allocation4] sm:$0x1]
          %v1788 = vmul.f32 %v1787, 0.05
          %v1789 = vld [vmem:[#allocation5] sm:$0x1]
          %v1790 = vmul.f32 %v1789, 0.05
          %v1791 = vmul.f32 %v1788, %v1788
          %v1792 = vsub.f32 %v1790, %v1791
          %v1793 = vmax.f32 %v1792, 0.0
          %v1794 = vld [vmem:[%s11] sm:$0x1]
          %v1795 = vadd.f32 %v1793, 1e-05
          %v1796 = vrsqrt.pop %v1795
          %v1797 = vmul.f32 %v1794, %v1796
          %v1798 = vld [vmem:[%s12] sm:$0x1]
          %v1799 = vmul.f32 %v1788, %v1797
          %v1800 = vsub.f32 %v1798, %v1799
          %1801 = vst [vmem:[#allocation4] sm:$0x1] %v1797
          %1802 = vst [vmem:[#allocation5] sm:$0x1] %v1800
        $region104: #{tpu_custom_call.1} parent=79 // pred_fallthru
          _
        // Predicated region
        $region105: #{tpu_custom_call.1} parent=79 // pred_check
          %p1803 = pneg %p1782
        $region106: #{tpu_custom_call.1} parent=79 // pred_check_branch
          %1805 = sbr.rel (%p1803) target = $region108
        $region107: #{tpu_custom_call.1} parent=79 // pred_region
          %v1806 = vld [vmem:[#allocation4] sm:$0x1]
          %v1808 = vlaneseq
          %v1809 = vshrl.u32 %v1808, 7
          %v1810 = vsub.s32 0, %v1809
          %v1811 = vrot.slane %v1806, %v1810
          %v1813 = vmul.f32 %v1601, %v1811
          %v1814 = vmul.f32 %v1602, %v1811
          %v1815 = vmul.f32 %v1603, %v1811
          %v1816 = vmul.f32 %v1604, %v1811
          %v1817 = vmul.f32 %v1605, %v1811
          %v1818 = vmul.f32 %v1606, %v1811
          %v1819 = vmul.f32 %v1607, %v1811
          %v1820 = vmul.f32 %v1608, %v1811
          %v1821 = vmul.f32 %v1609, %v1811
          %v1822 = vmul.f32 %v1610, %v1811
          %v1823 = vmul.f32 %v1611, %v1811
          %v1824 = vmul.f32 %v1612, %v1811
          %v1825 = vmul.f32 %v1613, %v1811
          %v1826 = vmul.f32 %v1614, %v1811
          %v1827 = vmul.f32 %v1615, %v1811
          %v1828 = vmul.f32 %v1616, %v1811
          %v1829 = vld [vmem:[#allocation5] sm:$0x1]
          %v1831 = vlaneseq
          %v1832 = vshrl.u32 %v1831, 7
          %v1833 = vsub.s32 0, %v1832
          %v1834 = vrot.slane %v1829, %v1833
          %v1836 = vadd.f32 %v1813, %v1834
          %v1837 = vadd.f32 %v1814, %v1834
          %v1838 = vadd.f32 %v1815, %v1834
          %v1839 = vadd.f32 %v1816, %v1834
          %v1840 = vadd.f32 %v1817, %v1834
          %v1841 = vadd.f32 %v1818, %v1834
          %v1842 = vadd.f32 %v1819, %v1834
          %v1843 = vadd.f32 %v1820, %v1834
          %v1844 = vadd.f32 %v1821, %v1834
          %v1845 = vadd.f32 %v1822, %v1834
          %v1846 = vadd.f32 %v1823, %v1834
          %v1847 = vadd.f32 %v1824, %v1834
          %v1848 = vadd.f32 %v1825, %v1834
          %v1849 = vadd.f32 %v1826, %v1834
          %v1850 = vadd.f32 %v1827, %v1834
          %v1851 = vadd.f32 %v1828, %v1834
          %v1852 = vxor.u32 %v1836, 2147483648
          %v1853 = vxor.u32 %v1837, 2147483648
          %v1854 = vxor.u32 %v1838, 2147483648
          %v1855 = vxor.u32 %v1839, 2147483648
          %v1856 = vxor.u32 %v1840, 2147483648
          %v1857 = vxor.u32 %v1841, 2147483648
          %v1858 = vxor.u32 %v1842, 2147483648
          %v1859 = vxor.u32 %v1843, 2147483648
          %v1860 = vxor.u32 %v1844, 2147483648
          %v1861 = vxor.u32 %v1845, 2147483648
          %v1862 = vxor.u32 %v1846, 2147483648
          %v1863 = vxor.u32 %v1847, 2147483648
          %v1864 = vxor.u32 %v1848, 2147483648
          %v1865 = vxor.u32 %v1849, 2147483648
          %v1866 = vxor.u32 %v1850, 2147483648
          %v1867 = vxor.u32 %v1851, 2147483648
          %v1868 = vmul.f32 %v1852, 1.442695
          %v1869 = vpow.pop %v1868
          %v1870 = vmul.f32 %v1853, 1.442695
          %v1871 = vpow.pop %v1870
          %v1872 = vmul.f32 %v1854, 1.442695
          %v1873 = vpow.pop %v1872
          %v1874 = vmul.f32 %v1855, 1.442695
          %v1875 = vpow.pop %v1874
          %v1876 = vmul.f32 %v1856, 1.442695
          %v1877 = vpow.pop %v1876
          %v1878 = vmul.f32 %v1857, 1.442695
          %v1879 = vpow.pop %v1878
          %v1880 = vmul.f32 %v1858, 1.442695
          %v1881 = vpow.pop %v1880
          %v1882 = vmul.f32 %v1859, 1.442695
          %v1883 = vpow.pop %v1882
          %v1884 = vmul.f32 %v1860, 1.442695
          %v1885 = vpow.pop %v1884
          %v1886 = vmul.f32 %v1861, 1.442695
          %v1887 = vpow.pop %v1886
          %v1888 = vmul.f32 %v1862, 1.442695
          %v1889 = vpow.pop %v1888
          %v1890 = vmul.f32 %v1863, 1.442695
          %v1891 = vpow.pop %v1890
          %v1892 = vmul.f32 %v1864, 1.442695
          %v1893 = vpow.pop %v1892
          %v1894 = vmul.f32 %v1865, 1.442695
          %v1895 = vpow.pop %v1894
          %v1896 = vmul.f32 %v1866, 1.442695
          %v1897 = vpow.pop %v1896
          %v1898 = vmul.f32 %v1867, 1.442695
          %v1899 = vpow.pop %v1898
          %v1900 = vadd.f32 %v1869, 1.0
          %v1901 = vadd.f32 %v1871, 1.0
          %v1902 = vadd.f32 %v1873, 1.0
          %v1903 = vadd.f32 %v1875, 1.0
          %v1904 = vadd.f32 %v1877, 1.0
          %v1905 = vadd.f32 %v1879, 1.0
          %v1906 = vadd.f32 %v1881, 1.0
          %v1907 = vadd.f32 %v1883, 1.0
          %v1908 = vadd.f32 %v1885, 1.0
          %v1909 = vadd.f32 %v1887, 1.0
          %v1910 = vadd.f32 %v1889, 1.0
          %v1911 = vadd.f32 %v1891, 1.0
          %v1912 = vadd.f32 %v1893, 1.0
          %v1913 = vadd.f32 %v1895, 1.0
          %v1914 = vadd.f32 %v1897, 1.0
          %v1915 = vadd.f32 %v1899, 1.0
          %v1916 = vrcp.pop %v1900
          %v1917 = vmul.f32 1.0, %v1916
          %v1918 = vrcp.pop %v1901
          %v1919 = vmul.f32 1.0, %v1918
          %v1920 = vrcp.pop %v1902
          %v1921 = vmul.f32 1.0, %v1920
          %v1922 = vrcp.pop %v1903
          %v1923 = vmul.f32 1.0, %v1922
          %v1924 = vrcp.pop %v1904
          %v1925 = vmul.f32 1.0, %v1924
          %v1926 = vrcp.pop %v1905
          %v1927 = vmul.f32 1.0, %v1926
          %v1928 = vrcp.pop %v1906
          %v1929 = vmul.f32 1.0, %v1928
          %v1930 = vrcp.pop %v1907
          %v1931 = vmul.f32 1.0, %v1930
          %v1932 = vrcp.pop %v1908
          %v1933 = vmul.f32 1.0, %v1932
          %v1934 = vrcp.pop %v1909
          %v1935 = vmul.f32 1.0, %v1934
          %v1936 = vrcp.pop %v1910
          %v1937 = vmul.f32 1.0, %v1936
          %v1938 = vrcp.pop %v1911
          %v1939 = vmul.f32 1.0, %v1938
          %v1940 = vrcp.pop %v1912
          %v1941 = vmul.f32 1.0, %v1940
          %v1942 = vrcp.pop %v1913
          %v1943 = vmul.f32 1.0, %v1942
          %v1944 = vrcp.pop %v1914
          %v1945 = vmul.f32 1.0, %v1944
          %v1946 = vrcp.pop %v1915
          %v1947 = vmul.f32 1.0, %v1946
          %v1948 = vmax.f32 %v1836, 0.0
          %v1949 = vmax.f32 %v1837, 0.0
          %v1950 = vmax.f32 %v1838, 0.0
          %v1951 = vmax.f32 %v1839, 0.0
          %v1952 = vmax.f32 %v1840, 0.0
          %v1953 = vmax.f32 %v1841, 0.0
          %v1954 = vmax.f32 %v1842, 0.0
          %v1955 = vmax.f32 %v1843, 0.0
          %v1956 = vmax.f32 %v1844, 0.0
          %v1957 = vmax.f32 %v1845, 0.0
          %v1958 = vmax.f32 %v1846, 0.0
          %v1959 = vmax.f32 %v1847, 0.0
          %v1960 = vmax.f32 %v1848, 0.0
          %v1961 = vmax.f32 %v1849, 0.0
          %v1962 = vmax.f32 %v1850, 0.0
          %v1963 = vmax.f32 %v1851, 0.0
          %vm1964 = vcmp.ne.f32.partialorder %v1836, %v1836
          %vm1965 = vcmp.ne.f32.partialorder %v1837, %v1837
          %vm1966 = vcmp.ne.f32.partialorder %v1838, %v1838
          %vm1967 = vcmp.ne.f32.partialorder %v1839, %v1839
          %vm1968 = vcmp.ne.f32.partialorder %v1840, %v1840
          %vm1969 = vcmp.ne.f32.partialorder %v1841, %v1841
          %vm1970 = vcmp.ne.f32.partialorder %v1842, %v1842
          %vm1971 = vcmp.ne.f32.partialorder %v1843, %v1843
          %vm1972 = vcmp.ne.f32.partialorder %v1844, %v1844
          %vm1973 = vcmp.ne.f32.partialorder %v1845, %v1845
          %vm1974 = vcmp.ne.f32.partialorder %v1846, %v1846
          %vm1975 = vcmp.ne.f32.partialorder %v1847, %v1847
          %vm1976 = vcmp.ne.f32.partialorder %v1848, %v1848
          %vm1977 = vcmp.ne.f32.partialorder %v1849, %v1849
          %vm1978 = vcmp.ne.f32.partialorder %v1850, %v1850
          %vm1979 = vcmp.ne.f32.partialorder %v1851, %v1851
          %v1980 = vadd.f32 %v1836, 0.0
          %v1981 = vadd.f32 %v1837, 0.0
          %v1982 = vadd.f32 %v1838, 0.0
          %v1983 = vadd.f32 %v1839, 0.0
          %v1984 = vadd.f32 %v1840, 0.0
          %v1985 = vadd.f32 %v1841, 0.0
          %v1986 = vadd.f32 %v1842, 0.0
          %v1987 = vadd.f32 %v1843, 0.0
          %v1988 = vadd.f32 %v1844, 0.0
          %v1989 = vadd.f32 %v1845, 0.0
          %v1990 = vadd.f32 %v1846, 0.0
          %v1991 = vadd.f32 %v1847, 0.0
          %v1992 = vadd.f32 %v1848, 0.0
          %v1993 = vadd.f32 %v1849, 0.0
          %v1994 = vadd.f32 %v1850, 0.0
          %v1995 = vadd.f32 %v1851, 0.0
          %v1996 = vand.u32 2147483647, %v1836
          %v1997 = vand.u32 2147483647, %v1837
          %v1998 = vand.u32 2147483647, %v1838
          %v1999 = vand.u32 2147483647, %v1839
          %v2000 = vand.u32 2147483647, %v1840
          %v2001 = vand.u32 2147483647, %v1841
          %v2002 = vand.u32 2147483647, %v1842
          %v2003 = vand.u32 2147483647, %v1843
          %v2004 = vand.u32 2147483647, %v1844
          %v2005 = vand.u32 2147483647, %v1845
          %v2006 = vand.u32 2147483647, %v1846
          %v2007 = vand.u32 2147483647, %v1847
          %v2008 = vand.u32 2147483647, %v1848
          %v2009 = vand.u32 2147483647, %v1849
          %v2010 = vand.u32 2147483647, %v1850
          %v2011 = vand.u32 2147483647, %v1851
          %v2012 = vsub.f32 0.0, %v1996
          %v2013 = vsub.f32 0.0, %v1997
          %v2014 = vsub.f32 0.0, %v1998
          %v2015 = vsub.f32 0.0, %v1999
          %v2016 = vsub.f32 0.0, %v2000
          %v2017 = vsub.f32 0.0, %v2001
          %v2018 = vsub.f32 0.0, %v2002
          %v2019 = vsub.f32 0.0, %v2003
          %v2020 = vsub.f32 0.0, %v2004
          %v2021 = vsub.f32 0.0, %v2005
          %v2022 = vsub.f32 0.0, %v2006
          %v2023 = vsub.f32 0.0, %v2007
          %v2024 = vsub.f32 0.0, %v2008
          %v2025 = vsub.f32 0.0, %v2009
          %v2026 = vsub.f32 0.0, %v2010
          %v2027 = vsub.f32 0.0, %v2011
          %v2028 = vmul.f32 %v2012, 1.442695
          %v2029 = vpow.pop %v2028
          %v2030 = vmul.f32 %v2013, 1.442695
          %v2031 = vpow.pop %v2030
          %v2032 = vmul.f32 %v2014, 1.442695
          %v2033 = vpow.pop %v2032
          %v2034 = vmul.f32 %v2015, 1.442695
          %v2035 = vpow.pop %v2034
          %v2036 = vmul.f32 %v2016, 1.442695
          %v2037 = vpow.pop %v2036
          %v2038 = vmul.f32 %v2017, 1.442695
          %v2039 = vpow.pop %v2038
          %v2040 = vmul.f32 %v2018, 1.442695
          %v2041 = vpow.pop %v2040
          %v2042 = vmul.f32 %v2019, 1.442695
          %v2043 = vpow.pop %v2042
          %v2044 = vmul.f32 %v2020, 1.442695
          %v2045 = vpow.pop %v2044
          %v2046 = vmul.f32 %v2021, 1.442695
          %v2047 = vpow.pop %v2046
          %v2048 = vmul.f32 %v2022, 1.442695
          %v2049 = vpow.pop %v2048
          %v2050 = vmul.f32 %v2023, 1.442695
          %v2051 = vpow.pop %v2050
          %v2052 = vmul.f32 %v2024, 1.442695
          %v2053 = vpow.pop %v2052
          %v2054 = vmul.f32 %v2025, 1.442695
          %v2055 = vpow.pop %v2054
          %v2056 = vmul.f32 %v2026, 1.442695
          %v2057 = vpow.pop %v2056
          %v2058 = vmul.f32 %v2027, 1.442695
          %v2059 = vpow.pop %v2058
          %v2060 = vadd.f32 %v2029, 1.0
          %v2061 = vlog2.pop %v2060
          %v2062 = vmul.f32 %v2061, 0.6931472
          %v2063 = vmul.f32 -0.5, %v2029
          %v2064 = vadd.f32 %v2063, 1.0
          %v2065 = vmul.f32 %v2064, %v2029
          %v2066 = vand.u32 2147483647, %v2029
          %vm2067 = vcmp.lt.f32.partialorder %v2066, 0.0004427343
          %v2068 = vsel %vm2067, %v2065, %v2062
          %v2069 = vadd.f32 %v2031, 1.0
          %v2070 = vlog2.pop %v2069
          %v2071 = vmul.f32 %v2070, 0.6931472
          %v2072 = vmul.f32 -0.5, %v2031
          %v2073 = vadd.f32 %v2072, 1.0
          %v2074 = vmul.f32 %v2073, %v2031
          %v2075 = vand.u32 2147483647, %v2031
          %vm2076 = vcmp.lt.f32.partialorder %v2075, 0.0004427343
          %v2077 = vsel %vm2076, %v2074, %v2071
          %v2078 = vadd.f32 %v2033, 1.0
          %v2079 = vlog2.pop %v2078
          %v2080 = vmul.f32 %v2079, 0.6931472
          %v2081 = vmul.f32 -0.5, %v2033
          %v2082 = vadd.f32 %v2081, 1.0
          %v2083 = vmul.f32 %v2082, %v2033
          %v2084 = vand.u32 2147483647, %v2033
          %vm2085 = vcmp.lt.f32.partialorder %v2084, 0.0004427343
          %v2086 = vsel %vm2085, %v2083, %v2080
          %v2087 = vadd.f32 %v2035, 1.0
          %v2088 = vlog2.pop %v2087
          %v2089 = vmul.f32 %v2088, 0.6931472
          %v2090 = vmul.f32 -0.5, %v2035
          %v2091 = vadd.f32 %v2090, 1.0
          %v2092 = vmul.f32 %v2091, %v2035
          %v2093 = vand.u32 2147483647, %v2035
          %vm2094 = vcmp.lt.f32.partialorder %v2093, 0.0004427343
          %v2095 = vsel %vm2094, %v2092, %v2089
          %v2096 = vadd.f32 %v2037, 1.0
          %v2097 = vlog2.pop %v2096
          %v2098 = vmul.f32 %v2097, 0.6931472
          %v2099 = vmul.f32 -0.5, %v2037
          %v2100 = vadd.f32 %v2099, 1.0
          %v2101 = vmul.f32 %v2100, %v2037
          %v2102 = vand.u32 2147483647, %v2037
          %vm2103 = vcmp.lt.f32.partialorder %v2102, 0.0004427343
          %v2104 = vsel %vm2103, %v2101, %v2098
          %v2105 = vadd.f32 %v2039, 1.0
          %v2106 = vlog2.pop %v2105
          %v2107 = vmul.f32 %v2106, 0.6931472
          %v2108 = vmul.f32 -0.5, %v2039
          %v2109 = vadd.f32 %v2108, 1.0
          %v2110 = vmul.f32 %v2109, %v2039
          %v2111 = vand.u32 2147483647, %v2039
          %vm2112 = vcmp.lt.f32.partialorder %v2111, 0.0004427343
          %v2113 = vsel %vm2112, %v2110, %v2107
          %v2114 = vadd.f32 %v2041, 1.0
          %v2115 = vlog2.pop %v2114
          %v2116 = vmul.f32 %v2115, 0.6931472
          %v2117 = vmul.f32 -0.5, %v2041
          %v2118 = vadd.f32 %v2117, 1.0
          %v2119 = vmul.f32 %v2118, %v2041
          %v2120 = vand.u32 2147483647, %v2041
          %vm2121 = vcmp.lt.f32.partialorder %v2120, 0.0004427343
          %v2122 = vsel %vm2121, %v2119, %v2116
          %v2123 = vadd.f32 %v2043, 1.0
          %v2124 = vlog2.pop %v2123
          %v2125 = vmul.f32 %v2124, 0.6931472
          %v2126 = vmul.f32 -0.5, %v2043
          %v2127 = vadd.f32 %v2126, 1.0
          %v2128 = vmul.f32 %v2127, %v2043
          %v2129 = vand.u32 2147483647, %v2043
          %vm2130 = vcmp.lt.f32.partialorder %v2129, 0.0004427343
          %v2131 = vsel %vm2130, %v2128, %v2125
          %v2132 = vadd.f32 %v2045, 1.0
          %v2133 = vlog2.pop %v2132
          %v2134 = vmul.f32 %v2133, 0.6931472
          %v2135 = vmul.f32 -0.5, %v2045
          %v2136 = vadd.f32 %v2135, 1.0
          %v2137 = vmul.f32 %v2136, %v2045
          %v2138 = vand.u32 2147483647, %v2045
          %vm2139 = vcmp.lt.f32.partialorder %v2138, 0.0004427343
          %v2140 = vsel %vm2139, %v2137, %v2134
          %v2141 = vadd.f32 %v2047, 1.0
          %v2142 = vlog2.pop %v2141
          %v2143 = vmul.f32 %v2142, 0.6931472
          %v2144 = vmul.f32 -0.5, %v2047
          %v2145 = vadd.f32 %v2144, 1.0
          %v2146 = vmul.f32 %v2145, %v2047
          %v2147 = vand.u32 2147483647, %v2047
          %vm2148 = vcmp.lt.f32.partialorder %v2147, 0.0004427343
          %v2149 = vsel %vm2148, %v2146, %v2143
          %v2150 = vadd.f32 %v2049, 1.0
          %v2151 = vlog2.pop %v2150
          %v2152 = vmul.f32 %v2151, 0.6931472
          %v2153 = vmul.f32 -0.5, %v2049
          %v2154 = vadd.f32 %v2153, 1.0
          %v2155 = vmul.f32 %v2154, %v2049
          %v2156 = vand.u32 2147483647, %v2049
          %vm2157 = vcmp.lt.f32.partialorder %v2156, 0.0004427343
          %v2158 = vsel %vm2157, %v2155, %v2152
          %v2159 = vadd.f32 %v2051, 1.0
          %v2160 = vlog2.pop %v2159
          %v2161 = vmul.f32 %v2160, 0.6931472
          %v2162 = vmul.f32 -0.5, %v2051
          %v2163 = vadd.f32 %v2162, 1.0
          %v2164 = vmul.f32 %v2163, %v2051
          %v2165 = vand.u32 2147483647, %v2051
          %vm2166 = vcmp.lt.f32.partialorder %v2165, 0.0004427343
          %v2167 = vsel %vm2166, %v2164, %v2161
          %v2168 = vadd.f32 %v2053, 1.0
          %v2169 = vlog2.pop %v2168
          %v2170 = vmul.f32 %v2169, 0.6931472
          %v2171 = vmul.f32 -0.5, %v2053
          %v2172 = vadd.f32 %v2171, 1.0
          %v2173 = vmul.f32 %v2172, %v2053
          %v2174 = vand.u32 2147483647, %v2053
          %vm2175 = vcmp.lt.f32.partialorder %v2174, 0.0004427343
          %v2176 = vsel %vm2175, %v2173, %v2170
          %v2177 = vadd.f32 %v2055, 1.0
          %v2178 = vlog2.pop %v2177
          %v2179 = vmul.f32 %v2178, 0.6931472
          %v2180 = vmul.f32 -0.5, %v2055
          %v2181 = vadd.f32 %v2180, 1.0
          %v2182 = vmul.f32 %v2181, %v2055
          %v2183 = vand.u32 2147483647, %v2055
          %vm2184 = vcmp.lt.f32.partialorder %v2183, 0.0004427343
          %v2185 = vsel %vm2184, %v2182, %v2179
          %v2186 = vadd.f32 %v2057, 1.0
          %v2187 = vlog2.pop %v2186
          %v2188 = vmul.f32 %v2187, 0.6931472
          %v2189 = vmul.f32 -0.5, %v2057
          %v2190 = vadd.f32 %v2189, 1.0
          %v2191 = vmul.f32 %v2190, %v2057
          %v2192 = vand.u32 2147483647, %v2057
          %vm2193 = vcmp.lt.f32.partialorder %v2192, 0.0004427343
          %v2194 = vsel %vm2193, %v2191, %v2188
          %v2195 = vadd.f32 %v2059, 1.0
          %v2196 = vlog2.pop %v2195
          %v2197 = vmul.f32 %v2196, 0.6931472
          %v2198 = vmul.f32 -0.5, %v2059
          %v2199 = vadd.f32 %v2198, 1.0
          %v2200 = vmul.f32 %v2199, %v2059
          %v2201 = vand.u32 2147483647, %v2059
          %vm2202 = vcmp.lt.f32.partialorder %v2201, 0.0004427343
          %v2203 = vsel %vm2202, %v2200, %v2197
          %v2204 = vadd.f32 %v1948, %v2068
          %v2205 = vadd.f32 %v1949, %v2077
          %v2206 = vadd.f32 %v1950, %v2086
          %v2207 = vadd.f32 %v1951, %v2095
          %v2208 = vadd.f32 %v1952, %v2104
          %v2209 = vadd.f32 %v1953, %v2113
          %v2210 = vadd.f32 %v1954, %v2122
          %v2211 = vadd.f32 %v1955, %v2131
          %v2212 = vadd.f32 %v1956, %v2140
          %v2213 = vadd.f32 %v1957, %v2149
          %v2214 = vadd.f32 %v1958, %v2158
          %v2215 = vadd.f32 %v1959, %v2167
          %v2216 = vadd.f32 %v1960, %v2176
          %v2217 = vadd.f32 %v1961, %v2185
          %v2218 = vadd.f32 %v1962, %v2194
          %v2219 = vadd.f32 %v1963, %v2203
          %v2220 = vsel %vm1964, %v1980, %v2204
          %v2221 = vsel %vm1965, %v1981, %v2205
          %v2222 = vsel %vm1966, %v1982, %v2206
          %v2223 = vsel %vm1967, %v1983, %v2207
          %v2224 = vsel %vm1968, %v1984, %v2208
          %v2225 = vsel %vm1969, %v1985, %v2209
          %v2226 = vsel %vm1970, %v1986, %v2210
          %v2227 = vsel %vm1971, %v1987, %v2211
          %v2228 = vsel %vm1972, %v1988, %v2212
          %v2229 = vsel %vm1973, %v1989, %v2213
          %v2230 = vsel %vm1974, %v1990, %v2214
          %v2231 = vsel %vm1975, %v1991, %v2215
          %v2232 = vsel %vm1976, %v1992, %v2216
          %v2233 = vsel %vm1977, %v1993, %v2217
          %v2234 = vsel %vm1978, %v1994, %v2218
          %v2235 = vsel %vm1979, %v1995, %v2219
          %2252 = vrot.lane.b32.xlu0 %v2220, 64
          %v2253 = vpop.permute.xlu0 %2252
          %2254 = vrot.lane.b32.xlu0 %v2221, 64
          %v2255 = vpop.permute.xlu0 %2254
          %2256 = vrot.lane.b32.xlu0 %v2222, 64
          %v2257 = vpop.permute.xlu0 %2256
          %2258 = vrot.lane.b32.xlu0 %v2223, 64
          %v2259 = vpop.permute.xlu0 %2258
          %2260 = vrot.lane.b32.xlu0 %v2224, 64
          %v2261 = vpop.permute.xlu0 %2260
          %2262 = vrot.lane.b32.xlu0 %v2225, 64
          %v2263 = vpop.permute.xlu0 %2262
          %2264 = vrot.lane.b32.xlu0 %v2226, 64
          %v2265 = vpop.permute.xlu0 %2264
          %2266 = vrot.lane.b32.xlu0 %v2227, 64
          %v2267 = vpop.permute.xlu0 %2266
          %2268 = vrot.lane.b32.xlu0 %v2228, 64
          %v2269 = vpop.permute.xlu0 %2268
          %2270 = vrot.lane.b32.xlu0 %v2229, 64
          %v2271 = vpop.permute.xlu0 %2270
          %2272 = vrot.lane.b32.xlu0 %v2230, 64
          %v2273 = vpop.permute.xlu0 %2272
          %2274 = vrot.lane.b32.xlu0 %v2231, 64
          %v2275 = vpop.permute.xlu0 %2274
          %2276 = vrot.lane.b32.xlu0 %v2232, 64
          %v2277 = vpop.permute.xlu0 %2276
          %2278 = vrot.lane.b32.xlu0 %v2233, 64
          %v2279 = vpop.permute.xlu0 %2278
          %2280 = vrot.lane.b32.xlu0 %v2234, 64
          %v2281 = vpop.permute.xlu0 %2280
          %2282 = vrot.lane.b32.xlu0 %v2235, 64
          %v2283 = vpop.permute.xlu0 %2282
          %v2300 = vmul.f32 %v1917, %v2253
          %v2301 = vmul.f32 %v1919, %v2255
          %v2302 = vmul.f32 %v1921, %v2257
          %v2303 = vmul.f32 %v1923, %v2259
          %v2304 = vmul.f32 %v1925, %v2261
          %v2305 = vmul.f32 %v1927, %v2263
          %v2306 = vmul.f32 %v1929, %v2265
          %v2307 = vmul.f32 %v1931, %v2267
          %v2308 = vmul.f32 %v1933, %v2269
          %v2309 = vmul.f32 %v1935, %v2271
          %v2310 = vmul.f32 %v1937, %v2273
          %v2311 = vmul.f32 %v1939, %v2275
          %v2312 = vmul.f32 %v1941, %v2277
          %v2313 = vmul.f32 %v1943, %v2279
          %v2314 = vmul.f32 %v1945, %v2281
          %v2315 = vmul.f32 %v1947, %v2283
          %v2316 = vsel %vm1651, 1, 0
          %v2317 = vsel %vm1652, 1, 0
          %v2318 = vsel %vm1653, 1, 0
          %v2319 = vsel %vm1654, 1, 0
          %v2320 = vsel %vm1655, 1, 0
          %v2321 = vsel %vm1656, 1, 0
          %v2322 = vsel %vm1657, 1, 0
          %v2323 = vsel %vm1658, 1, 0
          %v2324 = vsel %vm1659, 1, 0
          %v2325 = vsel %vm1660, 1, 0
          %v2326 = vsel %vm1661, 1, 0
          %v2327 = vsel %vm1662, 1, 0
          %v2328 = vsel %vm1663, 1, 0
          %v2329 = vsel %vm1664, 1, 0
          %v2330 = vsel %vm1665, 1, 0
          %v2331 = vsel %vm1666, 1, 0
          %vm2332 = vcmp.eq.s32.totalorder %v2316, 1
          %vm2333 = vcmp.eq.s32.totalorder %v2317, 1
          %vm2334 = vcmp.eq.s32.totalorder %v2318, 1
          %vm2335 = vcmp.eq.s32.totalorder %v2319, 1
          %vm2336 = vcmp.eq.s32.totalorder %v2320, 1
          %vm2337 = vcmp.eq.s32.totalorder %v2321, 1
          %vm2338 = vcmp.eq.s32.totalorder %v2322, 1
          %vm2339 = vcmp.eq.s32.totalorder %v2323, 1
          %vm2340 = vcmp.eq.s32.totalorder %v2324, 1
          %vm2341 = vcmp.eq.s32.totalorder %v2325, 1
          %vm2342 = vcmp.eq.s32.totalorder %v2326, 1
          %vm2343 = vcmp.eq.s32.totalorder %v2327, 1
          %vm2344 = vcmp.eq.s32.totalorder %v2328, 1
          %vm2345 = vcmp.eq.s32.totalorder %v2329, 1
          %vm2346 = vcmp.eq.s32.totalorder %v2330, 1
          %vm2347 = vcmp.eq.s32.totalorder %v2331, 1
          %v2348 = vsel %vm2332, %v2300, 0.0
          %v2349 = vsel %vm2333, %v2301, 0.0
          %v2350 = vsel %vm2334, %v2302, 0.0
          %v2351 = vsel %vm2335, %v2303, 0.0
          %v2352 = vsel %vm2336, %v2304, 0.0
          %v2353 = vsel %vm2337, %v2305, 0.0
          %v2354 = vsel %vm2338, %v2306, 0.0
          %v2355 = vsel %vm2339, %v2307, 0.0
          %v2356 = vsel %vm2340, %v2308, 0.0
          %v2357 = vsel %vm2341, %v2309, 0.0
          %v2358 = vsel %vm2342, %v2310, 0.0
          %v2359 = vsel %vm2343, %v2311, 0.0
          %v2360 = vsel %vm2344, %v2312, 0.0
          %v2361 = vsel %vm2345, %v2313, 0.0
          %v2362 = vsel %vm2346, %v2314, 0.0
          %v2363 = vsel %vm2347, %v2315, 0.0
          %v2364 = vld [vmem:[%s594] sm:$0x1]
          %v2365 = vlaneseq
          %v2366 = vshrl.u32 %v2365, 7
          %v2367 = vsub.s32 0, %v2366
          %v2368 = vrot.slane %v2364, %v2367
          %vm2369 = vcmp.eq.s32.totalorder %v1618, %v2368
          %v2370 = vsel %vm2369, 1, 0
          %v2371 = vcvt.s32.f32 %v2370
          %v2372 = vld [vmem:[#allocation6] sm:$0xff]
          %2373 = vmatprep.subr.mxu0 0.0
          %2374 = vmatpush1.msra.mxu0 %v2348
          %2375 = vmatprep.subr.mxu0 0.0
          %2376 = vmatpush1.msra.mxu0 %v2349
          %2377 = vmatprep.subr.mxu0 0.0
          %2378 = vmatpush1.msra.mxu0 %v2350
          %2379 = vmatprep.subr.mxu0 0.0
          %2380 = vmatpush1.msra.mxu0 %v2351
          %2381 = vmatprep.subr.mxu0 0.0
          %2382 = vmatpush1.msra.mxu0 %v2352
          %2383 = vmatprep.subr.mxu0 0.0
          %2384 = vmatpush1.msra.mxu0 %v2353
          %2385 = vmatprep.subr.mxu0 0.0
          %2386 = vmatpush1.msra.mxu0 %v2354
          %2387 = vmatprep.subr.mxu0 0.0
          %2388 = vmatpush1.msra.mxu0 %v2355
          %2389 = vmatprep.subr.mxu0 0.0
          %2390 = vmatpush1.msra.mxu0 %v2356
          %2391 = vmatprep.subr.mxu0 0.0
          %2392 = vmatpush1.msra.mxu0 %v2357
          %2393 = vmatprep.subr.mxu0 0.0
          %2394 = vmatpush1.msra.mxu0 %v2358
          %2395 = vmatprep.subr.mxu0 0.0
          %2396 = vmatpush1.msra.mxu0 %v2359
          %2397 = vmatprep.subr.mxu0 0.0
          %2398 = vmatpush1.msra.mxu0 %v2360
          %2399 = vmatprep.subr.mxu0 0.0
          %2400 = vmatpush1.msra.mxu0 %v2361
          %2401 = vmatprep.subr.mxu0 0.0
          %2402 = vmatpush1.msra.mxu0 %v2362
          %2403 = vmatprep.subr.mxu0 0.0
          %2404 = vmatpush1.msra.mxu0 %v2363
          %2405 = vmatprep.subr.mxu0 0.0
          %2406 = vmatpush1.msra.mxu0 0.0
          %2407 = vmatprep.subr.mxu0 0.0
          %2408 = vmatpush1.msra.mxu0 0.0
          %2409 = vmatprep.subr.mxu0 0.0
          %2410 = vmatpush1.msra.mxu0 0.0
          %2411 = vmatprep.subr.mxu0 0.0
          %2412 = vmatpush1.msra.mxu0 0.0
          %2413 = vmatprep.subr.mxu0 0.0
          %2414 = vmatpush1.msra.mxu0 0.0
          %2415 = vmatprep.subr.mxu0 0.0
          %2416 = vmatpush1.msra.mxu0 0.0
          %2417 = vmatprep.subr.mxu0 0.0
          %2418 = vmatpush1.msra.mxu0 0.0
          %2419 = vmatprep.subr.mxu0 0.0
          %2420 = vmatpush1.msra.mxu0 0.0
          %2421 = vmatprep.subr.mxu0 0.0
          %2422 = vmatpush1.msra.mxu0 0.0
          %2423 = vmatprep.subr.mxu0 0.0
          %2424 = vmatpush1.msra.mxu0 0.0
          %2425 = vmatprep.subr.mxu0 0.0
          %2426 = vmatpush1.msra.mxu0 0.0
          %2427 = vmatprep.subr.mxu0 0.0
          %2428 = vmatpush1.msra.mxu0 0.0
          %2429 = vmatprep.subr.mxu0 0.0
          %2430 = vmatpush1.msra.mxu0 0.0
          %2431 = vmatprep.subr.mxu0 0.0
          %2432 = vmatpush1.msra.mxu0 0.0
          %2433 = vmatprep.subr.mxu0 0.0
          %2434 = vmatpush1.msra.mxu0 0.0
          %2435 = vmatprep.subr.mxu0 0.0
          %2436 = vmatpush1.msra.mxu0 0.0
          %2437 = vmatprep.mubr.f32.mxu0 0.0
          %2438 = vmatmul.mubr.f32.gmra.mrb[0].mxu0 %v2371
          %v2439 = vpop.f32.mrb[0].mxu0
          %v2440 = vadd.f32 0.0, %v2439
          %v2441 = vpop.f32.mrb[0].mxu0
          %2442 = vdwg.mxu0
          %v2443 = vadd.f32 %v2372, %v2440
          %vm2444 = vcmask 523264
          %2445 = vst.msk [vmem:[#allocation6] sm:$0xff] %vm2444, %v2443
        $region108: #{tpu_custom_call.1} parent=79 // pred_fallthru
          _
        // Predicated region
        $region109: #{tpu_custom_call.1} parent=79 // pred_check
          _
        $region110: #{tpu_custom_call.1} parent=79 // pred_check_branch
          %2447 = sbr.rel (%p1783) target = $region112
        $region111: #{tpu_custom_call.1} parent=79 // pred_region
          %v2448 = vld [vmem:[#allocation6] sm:$0xff]
          %vm2449 = vcmp.lt.s32.totalorder %v1618, 8
          %v2450 = vsel %vm2449, 1, 0
          %vm2451 = vcmp.eq.s32.totalorder %v2450, 1
          %v2452 = vsel %vm2451, %v2448, 0.0
          %vm2453 = vcmask 523264
          %v2454 = vsel %vm2453, %v2452, 0.0
          %v2455 = vrot.slane %v2454, 4
          %v2456 = vadd.f32 %v2454, %v2455
          %v2457 = vrot.slane %v2456, 2
          %v2458 = vadd.f32 %v2456, %v2457
          %v2459 = vrot.slane %v2458, 1
          %v2460 = vadd.f32 %v2458, %v2459
          %v2461 = vmul.f32 %v2460, 0.125
          %v2462 = vsub.f32 %v2448, %v2461
          %v2463 = vmul.f32 %v2462, %v2462
          %v2464 = vsel %vm2451, %v2463, 0.0
          %v2465 = vsel %vm2453, %v2464, 0.0
          %v2466 = vrot.slane %v2465, 4
          %v2467 = vadd.f32 %v2465, %v2466
          %v2468 = vrot.slane %v2467, 2
          %v2469 = vadd.f32 %v2467, %v2468
          %v2470 = vrot.slane %v2469, 1
          %v2471 = vadd.f32 %v2469, %v2470
          %v2472 = vmul.f32 %v2471, 0.125
          %v2473 = vadd.f32 %v2472, 1e-05
          %v2474 = vrsqrt.pop %v2473
          %v2475 = vmul.f32 %v2462, %v2474
          %v2476 = vld [vmem:[%s13] sm:$0x1]
          %v2478 = vlaneseq
          %v2479 = vshrl.u32 %v2478, 7
          %v2480 = vsub.s32 0, %v2479
          %v2481 = vrot.slane %v2476, %v2480
          %v2483 = vmul.f32 %v2475, %v2481
          %v2484 = vld [vmem:[%s14] sm:$0x1]
          %v2486 = vlaneseq
          %v2487 = vshrl.u32 %v2486, 7
          %v2488 = vsub.s32 0, %v2487
          %v2489 = vrot.slane %v2484, %v2488
          %v2491 = vadd.f32 %v2483, %v2489
          %v2492 = vld [vmem:[#allocation7] sm:$0xff]
          %v2493 = vadd.f32 %v2492, %v2491
          %v2494 = vmax.f32 %v2493, 0.0
          %vm2495 = vcmp.ne.f32.partialorder %v2493, %v2493
          %v2496 = vadd.f32 %v2493, 0.0
          %v2497 = vand.u32 2147483647, %v2493
          %v2498 = vsub.f32 0.0, %v2497
          %v2499 = vmul.f32 %v2498, 1.442695
          %v2500 = vpow.pop %v2499
          %v2501 = vadd.f32 %v2500, 1.0
          %v2502 = vlog2.pop %v2501
          %v2503 = vmul.f32 %v2502, 0.6931472
          %v2504 = vmul.f32 -0.5, %v2500
          %v2505 = vadd.f32 %v2504, 1.0
          %v2506 = vmul.f32 %v2505, %v2500
          %v2507 = vand.u32 2147483647, %v2500
          %vm2508 = vcmp.lt.f32.partialorder %v2507, 0.0004427343
          %v2509 = vsel %vm2508, %v2506, %v2503
          %v2510 = vadd.f32 %v2494, %v2509
          %v2511 = vsel %vm2495, %v2496, %v2510
          %2512 = vst.msk [vmem:[#allocation13] sm:$0xff] %vm2453, %v2511
        $region112: #{tpu_custom_call.1} parent=79 // pred_fallthru
          _
        // Predicated region
        $region113: #{tpu_custom_call.1} parent=79 // pred_check
          %p2513 = pneg %p389
        $region114: #{tpu_custom_call.1} parent=79 // pred_check_branch
          %2515 = sbr.rel (%p2513) target = $region116
        $region115: #{tpu_custom_call.1} parent=79 // pred_region
          %s2517 = ssub.s32 128, 128
          %2518 = vsyncadd [#allocation9], %s2517
          %s2520 = sshll.u32 [#allocation13], 4
          %s2521 = int_to_ptr.vmem [resolvable:$true] %s2520
          %2523 = dma.vmem_to_hbm [thread:$0]  %s2521, 128, %s15, [#allocation9]
        $region116: #{tpu_custom_call.1} parent=79 // pred_fallthru
          _
        // Predicated region
        $region117: #{tpu_custom_call.1} parent=79 // pred_check
          %p2524 = pneg %p389
        $region118: #{tpu_custom_call.1} parent=79 // pred_check_branch
          %2526 = sbr.rel (%p2524) target = $region120
        $region119: #{tpu_custom_call.1} parent=79 // pred_region
          %2527 = dma.done [#allocation9], 128
        $region120: #{tpu_custom_call.1} parent=79 // pred_fallthru
          _
      $region80: #{tpu_custom_call.1} parent=5 // pred_fallthru
        _
      %p2528 = scmp.le.s32.totalorder 2, %s24
      // Predicated region
      $region121: #{tpu_custom_call.1} parent=5 // pred_check
        %p2529 = pneg %p2528
      $region122: #{tpu_custom_call.1} parent=5 // pred_check_branch
        %2531 = sbr.rel (%p2529) target = $region124
      $region123: #{tpu_custom_call.1} parent=5 // pred_region
        %s2532 = ssub.s32 %s24, 2
      $region124: #{tpu_custom_call.1} parent=5 // pred_fallthru
        _
    $region6: #{tpu_custom_call.1} parent=1 // loop_footer
      %s28 = sadd.s32 1, %s24
    $region7: #{tpu_custom_call.1} parent=1 // loop_footer_branch
      %23 = sbr.rel target = $region3
    $region8: #{tpu_custom_call.1} parent=1 // loop_exit
      _
    %2533 = vsyncpa [#allocation8], 1
    %s2534 = scalar_lea.sflag [#allocation8], 1
    %2535 = vsyncpa %s2534, 1
    %2536 = vsyncpa [#allocation11], 1
    %2537 = vsyncpa [#allocation9], 1
    %s2538 = scalar_lea.sflag [#allocation9], 1
    %2539 = vsyncpa %s2538, 1

</llo_original>
